<compile_context>
chip_gen: v7x
topology: tpu7x:2x2x1
jax: 0.10.0
libtpu: 0.0.40
codegen_flags: <defaults>
</compile_context>

<pallas_src>
import functools

import jax
import jax.numpy as jnp
import numpy as np
from jax import lax
from jax.experimental import pallas as pl
from jax.experimental.pallas import tpu as pltpu


# ----------------------------------------------------------------------------- kernel
def multi_gcn_kernel(x_ref, a_ref, w_ref, b_ref, o_ref, h_ref, *, C, C_out, L, order):
    """Fused diffusion-GCN + dense 1x1-conv MLP for one batch tile.

    x_ref: (bt, V, L*C)      channels-last activations, lanes = (l, c)
    a_ref: (S, V, V)         support / adjacency matrices (resident)
    w_ref: (NF*C, C_out)     dense MLP weight, row index = f*C + c (resident)
    b_ref: (1, C_out)        bias (resident)
    o_ref: (bt, V, L*C_out)  lane-dense output block
    h_ref: (bt*L*V, NF*C)    VMEM scratch holding the concatenated features with
                             rows = (i, l, v) and lanes = (f, c)
    """
    bt, V, _ = x_ref.shape
    S = a_ref.shape[0]
    VL = V * L

    def scatter_feature(feat, i, f):
        # feat: (V, L*C) with lanes (l, c).  Re-layout into h_ref rows (i,l,v),
        # lanes (f, c) via static, aligned slice copies (no jnp.reshape needed).
        base = i * VL
        for l in range(L):
            h_ref[base + l * V: base + (l + 1) * V, f * C: (f + 1) * C] = \
                feat[:, l * C: (l + 1) * C]

    # ---- diffusion: fat lane-dense MXU dots, features scattered into h_ref ----
    for i in range(bt):                         # static unroll over the batch tile
        x0 = x_ref[i]                           # (V, L*C) f32
        scatter_feature(x0, i, 0)               # feature 0 = identity block of cat
        f = 1
        for s in range(S):
            a = a_ref[s]                        # (V, V)
            xk = x0
            for _ in range(order):
                # graph diffusion along nodes: x1 = a @ x  (matches torch nconv)
                xk = jnp.dot(a, xk, preferred_element_type=jnp.float32)
                scatter_feature(xk, i, f)
                f += 1

    # ---- 1x1 conv: ONE dense matmul over the whole tile, K = NF*C, M = bt*L*V ----
    h = h_ref[...]                              # (bt*L*V, NF*C)
    res = jnp.dot(h, w_ref[...], preferred_element_type=jnp.float32)   # (bt*L*V, C_out)
    res = (res + b_ref[...]).astype(o_ref.dtype)

    # ---- unscramble rows (i, l, v) back into the lane-dense (V, L*C_out) output ----
    for i in range(bt):
        base = i * VL
        for l in range(L):
            o_ref[i, :, l * C_out: (l + 1) * C_out] = \
                res[base + l * V: base + (l + 1) * V, :]


# ----------------------------------------------------------------------------- wrapper
def multi_gcn_pallas(x, supports, W, b, *, order=2, batch_tile=1):
    """x: (B, C, V, L) (PyTorch NCHW layout). Returns (B, C_out, V, L)."""
    B, C, V, L = x.shape
    S = len(supports)
    NF = order * S + 1
    C_out, C_total = W.shape
    assert C_total == NF * C, (C_total, NF, C)

    bt = batch_tile if (B % batch_tile == 0) else 1

    # ---- cheap wrapper-side layout plumbing (no weight blow-up anymore) ----
    # channels-last, (time, channel) flattened onto the lane axis: lanes = l*C + c
    xk = jnp.transpose(x, (0, 2, 3, 1)).reshape(B, V, L * C).astype(jnp.float32)
    A = jnp.stack(list(supports)).astype(jnp.float32)            # (S, V, V)
    Wd = jnp.transpose(W, (1, 0)).astype(jnp.float32)            # (NF*C, C_out), row = f*C + c
    bias = b.astype(jnp.float32)[None, :]                        # (1, C_out)

    kernel = functools.partial(multi_gcn_kernel, C=C, C_out=C_out, L=L, order=order)

    out = pl.pallas_call(
        kernel,
        out_shape=jax.ShapeDtypeStruct((B, V, L * C_out), jnp.float32),
        grid=(B // bt,),
        in_specs=[
            pl.BlockSpec((bt, V, L * C), lambda i: (i, 0, 0)),   # activations (per step)
            pl.BlockSpec((S, V, V), lambda i: (0, 0, 0)),        # supports  (resident, ~3 KiB)
            pl.BlockSpec((NF * C, C_out), lambda i: (0, 0)),     # dense MLP weight (resident, 28 KiB)
            pl.BlockSpec((1, C_out), lambda i: (0, 0)),          # bias (resident)
        ],
        out_specs=pl.BlockSpec((bt, V, L * C_out), lambda i: (i, 0, 0)),
        scratch_shapes=[pltpu.VMEM((bt * L * V, NF * C), jnp.float32)],
        compiler_params=pltpu.CompilerParams(
            dimension_semantics=("parallel",)),
    )(xk, A, Wd, bias)

    # TODO(synk): F.dropout is identity in eval mode; training-mode dropout would use
    # pltpu.prng_seed / pltpu.prng_random_bits in-kernel.
    return out.reshape(B, V, L, C_out).transpose(0, 3, 1, 2)     # (B, C_out, V, L)


# ----------------------------------------------------------------------------- reference
def multi_gcn_ref(x, supports, W, b, *, order=2):
    """Pure-JAX mirror of the PyTorch forward (eval mode, dropout = identity)."""
    hp = lax.Precision.HIGHEST
    out = [x]
    for a in supports:
        # torch nconv: A = a^T; einsum('ncvl,vw->ncwl', x, A) == einsum('ncvl,wv->ncwl', x, a)
        x1 = jnp.einsum('ncvl,wv->ncwl', x, a, precision=hp)
        out.append(x1)
        for _ in range(2, order + 1):
            x1 = jnp.einsum('ncvl,wv->ncwl', x1, a, precision=hp)
            out.append(x1)
    h = jnp.concatenate(out, axis=1)                             # (B, NF*C, V, L)
    h = jnp.einsum('ncvl,oc->novl', h, W, precision=hp) + b[None, :, None, None]
    return h


# ----------------------------------------------------------------------------- main
if __name__ == "__main__":
    key = jax.random.PRNGKey(0)
    ks = jax.random.split(key, 8)

    B, C, V, L = 4, 32, 16, 12           # batch, channels, num_nodes, time
    C_out, support_len, order = 32, 3, 2
    NF = order * support_len + 1         # 7 -> mlp input channels = 224

    x = jax.random.normal(ks[0], (B, C, V, L), jnp.float32)
    supports = [
        jax.nn.softmax(jax.random.normal(ks[1 + i], (V, V), jnp.float32), axis=-1)
        for i in range(support_len)
    ]
    bound = 1.0 / np.sqrt(NF * C)
    W = jax.random.uniform(ks[5], (C_out, NF * C), jnp.float32, -bound, bound)
    b = jax.random.uniform(ks[6], (C_out,), jnp.float32, -bound, bound)

    fn = jax.jit(functools.partial(multi_gcn_pallas, order=order, batch_tile=1))
    out = jax.block_until_ready(fn(x, supports, W, b))

    ref = multi_gcn_ref(x, supports, W, b, order=order)
    assert out.shape == (B, C_out, V, L), out.shape
    np.testing.assert_allclose(np.asarray(out), np.asarray(ref),
                               rtol=5e-4, atol=5e-4)
    print("KERNEL_OK")
</pallas_src>

<mosaic_0001>
module attributes {stable_mosaic.version = 11 : i64} {
  func.func @multi_gcn_kernel(%arg0: i32, %arg1: memref<1x16x384xf32, #tpu.memory_space<vmem>>, %arg2: memref<3x16x16xf32, #tpu.memory_space<vmem>>, %arg3: memref<224x32xf32, #tpu.memory_space<vmem>>, %arg4: memref<1x32xf32, #tpu.memory_space<vmem>>, %arg5: memref<1x16x384xf32, #tpu.memory_space<vmem>>, %arg6: memref<192x224xf32, #tpu.memory_space<vmem>>) attributes {dimension_semantics = [#tpu.dimension_semantics<parallel>], iteration_bounds = array<i64: 4>, scalar_prefetch = 0 : i64, scratch_operands = 1 : i64, tpu.core_type = #tpu.core_type<tc>, window_params = [{transform_indices = @transform_0, window_bounds = array<i64: 1, 16, 384>}, {pipeline_mode = #tpu.pipeline_mode<synchronous>, transform_indices = @transform_1, window_bounds = array<i64: 3, 16, 16>}, {pipeline_mode = #tpu.pipeline_mode<synchronous>, transform_indices = @transform_2, window_bounds = array<i64: 224, 32>}, {pipeline_mode = #tpu.pipeline_mode<synchronous>, transform_indices = @transform_3, window_bounds = array<i64: 1, 32>}, {transform_indices = @transform_4, window_bounds = array<i64: 1, 16, 384>}]} {
    %c0 = arith.constant 0 : index
    %c0_0 = arith.constant 0 : index
    %c0_1 = arith.constant 0 : index
    %0 = vector.load %arg1[%c0, %c0_0, %c0_1] : memref<1x16x384xf32, #tpu.memory_space<vmem>>, vector<1x16x384xf32>
    %1 = vector.shape_cast %0 : vector<1x16x384xf32> to vector<16x384xf32>
    %2 = vector.extract_strided_slice %1 {offsets = [0, 0], sizes = [16, 32], strides = [1, 1]} : vector<16x384xf32> to vector<16x32xf32>
    %c0_2 = arith.constant 0 : index
    %c0_3 = arith.constant 0 : index
    %3 = vector.load %arg6[%c0_2, %c0_3] : memref<192x224xf32, #tpu.memory_space<vmem>>, vector<16x32xf32>
    tpu.vector_store %arg6[%c0_2, %c0_3], %2 {strides = array<i32>} : memref<192x224xf32, #tpu.memory_space<vmem>>, vector<16x32xf32>,
    %4 = vector.extract_strided_slice %1 {offsets = [0, 32], sizes = [16, 32], strides = [1, 1]} : vector<16x384xf32> to vector<16x32xf32>
    %c16 = arith.constant 16 : index
    %c0_4 = arith.constant 0 : index
    %5 = vector.load %arg6[%c16, %c0_4] : memref<192x224xf32, #tpu.memory_space<vmem>>, vector<16x32xf32>
    tpu.vector_store %arg6[%c16, %c0_4], %4 {strides = array<i32>} : memref<192x224xf32, #tpu.memory_space<vmem>>, vector<16x32xf32>,
    %6 = vector.extract_strided_slice %1 {offsets = [0, 64], sizes = [16, 32], strides = [1, 1]} : vector<16x384xf32> to vector<16x32xf32>
    %c32 = arith.constant 32 : index
    %c0_5 = arith.constant 0 : index
    %7 = vector.load %arg6[%c32, %c0_5] : memref<192x224xf32, #tpu.memory_space<vmem>>, vector<16x32xf32>
    tpu.vector_store %arg6[%c32, %c0_5], %6 {strides = array<i32>} : memref<192x224xf32, #tpu.memory_space<vmem>>, vector<16x32xf32>,
    %8 = vector.extract_strided_slice %1 {offsets = [0, 96], sizes = [16, 32], strides = [1, 1]} : vector<16x384xf32> to vector<16x32xf32>
    %c48 = arith.constant 48 : index
    %c0_6 = arith.constant 0 : index
    %9 = vector.load %arg6[%c48, %c0_6] : memref<192x224xf32, #tpu.memory_space<vmem>>, vector<16x32xf32>
    tpu.vector_store %arg6[%c48, %c0_6], %8 {strides = array<i32>} : memref<192x224xf32, #tpu.memory_space<vmem>>, vector<16x32xf32>,
    %10 = vector.extract_strided_slice %1 {offsets = [0, 128], sizes = [16, 32], strides = [1, 1]} : vector<16x384xf32> to vector<16x32xf32>
    %c64 = arith.constant 64 : index
    %c0_7 = arith.constant 0 : index
    %11 = vector.load %arg6[%c64, %c0_7] : memref<192x224xf32, #tpu.memory_space<vmem>>, vector<16x32xf32>
    tpu.vector_store %arg6[%c64, %c0_7], %10 {strides = array<i32>} : memref<192x224xf32, #tpu.memory_space<vmem>>, vector<16x32xf32>,
    %12 = vector.extract_strided_slice %1 {offsets = [0, 160], sizes = [16, 32], strides = [1, 1]} : vector<16x384xf32> to vector<16x32xf32>
    %c80 = arith.constant 80 : index
    %c0_8 = arith.constant 0 : index
    %13 = vector.load %arg6[%c80, %c0_8] : memref<192x224xf32, #tpu.memory_space<vmem>>, vector<16x32xf32>
    tpu.vector_store %arg6[%c80, %c0_8], %12 {strides = array<i32>} : memref<192x224xf32, #tpu.memory_space<vmem>>, vector<16x32xf32>,
    %14 = vector.extract_strided_slice %1 {offsets = [0, 192], sizes = [16, 32], strides = [1, 1]} : vector<16x384xf32> to vector<16x32xf32>
    %c96 = arith.constant 96 : index
    %c0_9 = arith.constant 0 : index
    %15 = vector.load %arg6[%c96, %c0_9] : memref<192x224xf32, #tpu.memory_space<vmem>>, vector<16x32xf32>
    tpu.vector_store %arg6[%c96, %c0_9], %14 {strides = array<i32>} : memref<192x224xf32, #tpu.memory_space<vmem>>, vector<16x32xf32>,
    %16 = vector.extract_strided_slice %1 {offsets = [0, 224], sizes = [16, 32], strides = [1, 1]} : vector<16x384xf32> to vector<16x32xf32>
    %c112 = arith.constant 112 : index
    %c0_10 = arith.constant 0 : index
    %17 = vector.load %arg6[%c112, %c0_10] : memref<192x224xf32, #tpu.memory_space<vmem>>, vector<16x32xf32>
    tpu.vector_store %arg6[%c112, %c0_10], %16 {strides = array<i32>} : memref<192x224xf32, #tpu.memory_space<vmem>>, vector<16x32xf32>,
    %18 = vector.extract_strided_slice %1 {offsets = [0, 256], sizes = [16, 32], strides = [1, 1]} : vector<16x384xf32> to vector<16x32xf32>
    %c128 = arith.constant 128 : index
    %c0_11 = arith.constant 0 : index
    %19 = vector.load %arg6[%c128, %c0_11] : memref<192x224xf32, #tpu.memory_space<vmem>>, vector<16x32xf32>
    tpu.vector_store %arg6[%c128, %c0_11], %18 {strides = array<i32>} : memref<192x224xf32, #tpu.memory_space<vmem>>, vector<16x32xf32>,
    %20 = vector.extract_strided_slice %1 {offsets = [0, 288], sizes = [16, 32], strides = [1, 1]} : vector<16x384xf32> to vector<16x32xf32>
    %c144 = arith.constant 144 : index
    %c0_12 = arith.constant 0 : index
    %21 = vector.load %arg6[%c144, %c0_12] : memref<192x224xf32, #tpu.memory_space<vmem>>, vector<16x32xf32>
    tpu.vector_store %arg6[%c144, %c0_12], %20 {strides = array<i32>} : memref<192x224xf32, #tpu.memory_space<vmem>>, vector<16x32xf32>,
    %22 = vector.extract_strided_slice %1 {offsets = [0, 320], sizes = [16, 32], strides = [1, 1]} : vector<16x384xf32> to vector<16x32xf32>
    %c160 = arith.constant 160 : index
    %c0_13 = arith.constant 0 : index
    %23 = vector.load %arg6[%c160, %c0_13] : memref<192x224xf32, #tpu.memory_space<vmem>>, vector<16x32xf32>
    tpu.vector_store %arg6[%c160, %c0_13], %22 {strides = array<i32>} : memref<192x224xf32, #tpu.memory_space<vmem>>, vector<16x32xf32>,
    %24 = vector.extract_strided_slice %1 {offsets = [0, 352], sizes = [16, 32], strides = [1, 1]} : vector<16x384xf32> to vector<16x32xf32>
    %c176 = arith.constant 176 : index
    %c0_14 = arith.constant 0 : index
    %25 = vector.load %arg6[%c176, %c0_14] : memref<192x224xf32, #tpu.memory_space<vmem>>, vector<16x32xf32>
    tpu.vector_store %arg6[%c176, %c0_14], %24 {strides = array<i32>} : memref<192x224xf32, #tpu.memory_space<vmem>>, vector<16x32xf32>,
    %c0_15 = arith.constant 0 : index
    %c0_16 = arith.constant 0 : index
    %c0_17 = arith.constant 0 : index
    %26 = vector.load %arg2[%c0_15, %c0_16, %c0_17] : memref<3x16x16xf32, #tpu.memory_space<vmem>>, vector<1x16x16xf32>
    %27 = vector.shape_cast %26 : vector<1x16x16xf32> to vector<16x16xf32>
    %cst = arith.constant dense<0.000000e+00> : vector<16x384xf32>
    %28 = tpu.matmul %27, %1, %cst {dimension_numbers = #tpu.dot_dimension_numbers<[1], [0], [0], [1], [0, 0, 1, 1], [], []>} : vector<16x16xf32>, vector<16x384xf32>, vector<16x384xf32> -> vector<16x384xf32>
    %29 = vector.extract_strided_slice %28 {offsets = [0, 0], sizes = [16, 32], strides = [1, 1]} : vector<16x384xf32> to vector<16x32xf32>
    %c0_18 = arith.constant 0 : index
    %c32_19 = arith.constant 32 : index
    %30 = vector.load %arg6[%c0_18, %c32_19] : memref<192x224xf32, #tpu.memory_space<vmem>>, vector<16x32xf32>
    tpu.vector_store %arg6[%c0_18, %c32_19], %29 {strides = array<i32>} : memref<192x224xf32, #tpu.memory_space<vmem>>, vector<16x32xf32>,
    %31 = vector.extract_strided_slice %28 {offsets = [0, 32], sizes = [16, 32], strides = [1, 1]} : vector<16x384xf32> to vector<16x32xf32>
    %c16_20 = arith.constant 16 : index
    %c32_21 = arith.constant 32 : index
    %32 = vector.load %arg6[%c16_20, %c32_21] : memref<192x224xf32, #tpu.memory_space<vmem>>, vector<16x32xf32>
    tpu.vector_store %arg6[%c16_20, %c32_21], %31 {strides = array<i32>} : memref<192x224xf32, #tpu.memory_space<vmem>>, vector<16x32xf32>,
    %33 = vector.extract_strided_slice %28 {offsets = [0, 64], sizes = [16, 32], strides = [1, 1]} : vector<16x384xf32> to vector<16x32xf32>
    %c32_22 = arith.constant 32 : index
    %c32_23 = arith.constant 32 : index
    %34 = vector.load %arg6[%c32_22, %c32_23] : memref<192x224xf32, #tpu.memory_space<vmem>>, vector<16x32xf32>
    tpu.vector_store %arg6[%c32_22, %c32_23], %33 {strides = array<i32>} : memref<192x224xf32, #tpu.memory_space<vmem>>, vector<16x32xf32>,
    %35 = vector.extract_strided_slice %28 {offsets = [0, 96], sizes = [16, 32], strides = [1, 1]} : vector<16x384xf32> to vector<16x32xf32>
    %c48_24 = arith.constant 48 : index
    %c32_25 = arith.constant 32 : index
    %36 = vector.load %arg6[%c48_24, %c32_25] : memref<192x224xf32, #tpu.memory_space<vmem>>, vector<16x32xf32>
    tpu.vector_store %arg6[%c48_24, %c32_25], %35 {strides = array<i32>} : memref<192x224xf32, #tpu.memory_space<vmem>>, vector<16x32xf32>,
    %37 = vector.extract_strided_slice %28 {offsets = [0, 128], sizes = [16, 32], strides = [1, 1]} : vector<16x384xf32> to vector<16x32xf32>
    %c64_26 = arith.constant 64 : index
    %c32_27 = arith.constant 32 : index
    %38 = vector.load %arg6[%c64_26, %c32_27] : memref<192x224xf32, #tpu.memory_space<vmem>>, vector<16x32xf32>
    tpu.vector_store %arg6[%c64_26, %c32_27], %37 {strides = array<i32>} : memref<192x224xf32, #tpu.memory_space<vmem>>, vector<16x32xf32>,
    %39 = vector.extract_strided_slice %28 {offsets = [0, 160], sizes = [16, 32], strides = [1, 1]} : vector<16x384xf32> to vector<16x32xf32>
    %c80_28 = arith.constant 80 : index
    %c32_29 = arith.constant 32 : index
    %40 = vector.load %arg6[%c80_28, %c32_29] : memref<192x224xf32, #tpu.memory_space<vmem>>, vector<16x32xf32>
    tpu.vector_store %arg6[%c80_28, %c32_29], %39 {strides = array<i32>} : memref<192x224xf32, #tpu.memory_space<vmem>>, vector<16x32xf32>,
    %41 = vector.extract_strided_slice %28 {offsets = [0, 192], sizes = [16, 32], strides = [1, 1]} : vector<16x384xf32> to vector<16x32xf32>
    %c96_30 = arith.constant 96 : index
    %c32_31 = arith.constant 32 : index
    %42 = vector.load %arg6[%c96_30, %c32_31] : memref<192x224xf32, #tpu.memory_space<vmem>>, vector<16x32xf32>
    tpu.vector_store %arg6[%c96_30, %c32_31], %41 {strides = array<i32>} : memref<192x224xf32, #tpu.memory_space<vmem>>, vector<16x32xf32>,
    %43 = vector.extract_strided_slice %28 {offsets = [0, 224], sizes = [16, 32], strides = [1, 1]} : vector<16x384xf32> to vector<16x32xf32>
    %c112_32 = arith.constant 112 : index
    %c32_33 = arith.constant 32 : index
    %44 = vector.load %arg6[%c112_32, %c32_33] : memref<192x224xf32, #tpu.memory_space<vmem>>, vector<16x32xf32>
    tpu.vector_store %arg6[%c112_32, %c32_33], %43 {strides = array<i32>} : memref<192x224xf32, #tpu.memory_space<vmem>>, vector<16x32xf32>,
    %45 = vector.extract_strided_slice %28 {offsets = [0, 256], sizes = [16, 32], strides = [1, 1]} : vector<16x384xf32> to vector<16x32xf32>
    %c128_34 = arith.constant 128 : index
    %c32_35 = arith.constant 32 : index
    %46 = vector.load %arg6[%c128_34, %c32_35] : memref<192x224xf32, #tpu.memory_space<vmem>>, vector<16x32xf32>
    tpu.vector_store %arg6[%c128_34, %c32_35], %45 {strides = array<i32>} : memref<192x224xf32, #tpu.memory_space<vmem>>, vector<16x32xf32>,
    %47 = vector.extract_strided_slice %28 {offsets = [0, 288], sizes = [16, 32], strides = [1, 1]} : vector<16x384xf32> to vector<16x32xf32>
    %c144_36 = arith.constant 144 : index
    %c32_37 = arith.constant 32 : index
    %48 = vector.load %arg6[%c144_36, %c32_37] : memref<192x224xf32, #tpu.memory_space<vmem>>, vector<16x32xf32>
    tpu.vector_store %arg6[%c144_36, %c32_37], %47 {strides = array<i32>} : memref<192x224xf32, #tpu.memory_space<vmem>>, vector<16x32xf32>,
    %49 = vector.extract_strided_slice %28 {offsets = [0, 320], sizes = [16, 32], strides = [1, 1]} : vector<16x384xf32> to vector<16x32xf32>
    %c160_38 = arith.constant 160 : index
    %c32_39 = arith.constant 32 : index
    %50 = vector.load %arg6[%c160_38, %c32_39] : memref<192x224xf32, #tpu.memory_space<vmem>>, vector<16x32xf32>
    tpu.vector_store %arg6[%c160_38, %c32_39], %49 {strides = array<i32>} : memref<192x224xf32, #tpu.memory_space<vmem>>, vector<16x32xf32>,
    %51 = vector.extract_strided_slice %28 {offsets = [0, 352], sizes = [16, 32], strides = [1, 1]} : vector<16x384xf32> to vector<16x32xf32>
    %c176_40 = arith.constant 176 : index
    %c32_41 = arith.constant 32 : index
    %52 = vector.load %arg6[%c176_40, %c32_41] : memref<192x224xf32, #tpu.memory_space<vmem>>, vector<16x32xf32>
    tpu.vector_store %arg6[%c176_40, %c32_41], %51 {strides = array<i32>} : memref<192x224xf32, #tpu.memory_space<vmem>>, vector<16x32xf32>,
    %cst_42 = arith.constant dense<0.000000e+00> : vector<16x384xf32>
    %53 = tpu.matmul %27, %28, %cst_42 {dimension_numbers = #tpu.dot_dimension_numbers<[1], [0], [0], [1], [0, 0, 1, 1], [], []>} : vector<16x16xf32>, vector<16x384xf32>, vector<16x384xf32> -> vector<16x384xf32>
    %54 = vector.extract_strided_slice %53 {offsets = [0, 0], sizes = [16, 32], strides = [1, 1]} : vector<16x384xf32> to vector<16x32xf32>
    %c0_43 = arith.constant 0 : index
    %c64_44 = arith.constant 64 : index
    %55 = vector.load %arg6[%c0_43, %c64_44] : memref<192x224xf32, #tpu.memory_space<vmem>>, vector<16x32xf32>
    tpu.vector_store %arg6[%c0_43, %c64_44], %54 {strides = array<i32>} : memref<192x224xf32, #tpu.memory_space<vmem>>, vector<16x32xf32>,
    %56 = vector.extract_strided_slice %53 {offsets = [0, 32], sizes = [16, 32], strides = [1, 1]} : vector<16x384xf32> to vector<16x32xf32>
    %c16_45 = arith.constant 16 : index
    %c64_46 = arith.constant 64 : index
    %57 = vector.load %arg6[%c16_45, %c64_46] : memref<192x224xf32, #tpu.memory_space<vmem>>, vector<16x32xf32>
    tpu.vector_store %arg6[%c16_45, %c64_46], %56 {strides = array<i32>} : memref<192x224xf32, #tpu.memory_space<vmem>>, vector<16x32xf32>,
    %58 = vector.extract_strided_slice %53 {offsets = [0, 64], sizes = [16, 32], strides = [1, 1]} : vector<16x384xf32> to vector<16x32xf32>
    %c32_47 = arith.constant 32 : index
    %c64_48 = arith.constant 64 : index
    %59 = vector.load %arg6[%c32_47, %c64_48] : memref<192x224xf32, #tpu.memory_space<vmem>>, vector<16x32xf32>
    tpu.vector_store %arg6[%c32_47, %c64_48], %58 {strides = array<i32>} : memref<192x224xf32, #tpu.memory_space<vmem>>, vector<16x32xf32>,
    %60 = vector.extract_strided_slice %53 {offsets = [0, 96], sizes = [16, 32], strides = [1, 1]} : vector<16x384xf32> to vector<16x32xf32>
    %c48_49 = arith.constant 48 : index
    %c64_50 = arith.constant 64 : index
    %61 = vector.load %arg6[%c48_49, %c64_50] : memref<192x224xf32, #tpu.memory_space<vmem>>, vector<16x32xf32>
    tpu.vector_store %arg6[%c48_49, %c64_50], %60 {strides = array<i32>} : memref<192x224xf32, #tpu.memory_space<vmem>>, vector<16x32xf32>,
    %62 = vector.extract_strided_slice %53 {offsets = [0, 128], sizes = [16, 32], strides = [1, 1]} : vector<16x384xf32> to vector<16x32xf32>
    %c64_51 = arith.constant 64 : index
    %c64_52 = arith.constant 64 : index
    %63 = vector.load %arg6[%c64_51, %c64_52] : memref<192x224xf32, #tpu.memory_space<vmem>>, vector<16x32xf32>
    tpu.vector_store %arg6[%c64_51, %c64_52], %62 {strides = array<i32>} : memref<192x224xf32, #tpu.memory_space<vmem>>, vector<16x32xf32>,
    %64 = vector.extract_strided_slice %53 {offsets = [0, 160], sizes = [16, 32], strides = [1, 1]} : vector<16x384xf32> to vector<16x32xf32>
    %c80_53 = arith.constant 80 : index
    %c64_54 = arith.constant 64 : index
    %65 = vector.load %arg6[%c80_53, %c64_54] : memref<192x224xf32, #tpu.memory_space<vmem>>, vector<16x32xf32>
    tpu.vector_store %arg6[%c80_53, %c64_54], %64 {strides = array<i32>} : memref<192x224xf32, #tpu.memory_space<vmem>>, vector<16x32xf32>,
    %66 = vector.extract_strided_slice %53 {offsets = [0, 192], sizes = [16, 32], strides = [1, 1]} : vector<16x384xf32> to vector<16x32xf32>
    %c96_55 = arith.constant 96 : index
    %c64_56 = arith.constant 64 : index
    %67 = vector.load %arg6[%c96_55, %c64_56] : memref<192x224xf32, #tpu.memory_space<vmem>>, vector<16x32xf32>
    tpu.vector_store %arg6[%c96_55, %c64_56], %66 {strides = array<i32>} : memref<192x224xf32, #tpu.memory_space<vmem>>, vector<16x32xf32>,
    %68 = vector.extract_strided_slice %53 {offsets = [0, 224], sizes = [16, 32], strides = [1, 1]} : vector<16x384xf32> to vector<16x32xf32>
    %c112_57 = arith.constant 112 : index
    %c64_58 = arith.constant 64 : index
    %69 = vector.load %arg6[%c112_57, %c64_58] : memref<192x224xf32, #tpu.memory_space<vmem>>, vector<16x32xf32>
    tpu.vector_store %arg6[%c112_57, %c64_58], %68 {strides = array<i32>} : memref<192x224xf32, #tpu.memory_space<vmem>>, vector<16x32xf32>,
    %70 = vector.extract_strided_slice %53 {offsets = [0, 256], sizes = [16, 32], strides = [1, 1]} : vector<16x384xf32> to vector<16x32xf32>
    %c128_59 = arith.constant 128 : index
    %c64_60 = arith.constant 64 : index
    %71 = vector.load %arg6[%c128_59, %c64_60] : memref<192x224xf32, #tpu.memory_space<vmem>>, vector<16x32xf32>
    tpu.vector_store %arg6[%c128_59, %c64_60], %70 {strides = array<i32>} : memref<192x224xf32, #tpu.memory_space<vmem>>, vector<16x32xf32>,
    %72 = vector.extract_strided_slice %53 {offsets = [0, 288], sizes = [16, 32], strides = [1, 1]} : vector<16x384xf32> to vector<16x32xf32>
    %c144_61 = arith.constant 144 : index
    %c64_62 = arith.constant 64 : index
    %73 = vector.load %arg6[%c144_61, %c64_62] : memref<192x224xf32, #tpu.memory_space<vmem>>, vector<16x32xf32>
    tpu.vector_store %arg6[%c144_61, %c64_62], %72 {strides = array<i32>} : memref<192x224xf32, #tpu.memory_space<vmem>>, vector<16x32xf32>,
    %74 = vector.extract_strided_slice %53 {offsets = [0, 320], sizes = [16, 32], strides = [1, 1]} : vector<16x384xf32> to vector<16x32xf32>
    %c160_63 = arith.constant 160 : index
    %c64_64 = arith.constant 64 : index
    %75 = vector.load %arg6[%c160_63, %c64_64] : memref<192x224xf32, #tpu.memory_space<vmem>>, vector<16x32xf32>
    tpu.vector_store %arg6[%c160_63, %c64_64], %74 {strides = array<i32>} : memref<192x224xf32, #tpu.memory_space<vmem>>, vector<16x32xf32>,
    %76 = vector.extract_strided_slice %53 {offsets = [0, 352], sizes = [16, 32], strides = [1, 1]} : vector<16x384xf32> to vector<16x32xf32>
    %c176_65 = arith.constant 176 : index
    %c64_66 = arith.constant 64 : index
    %77 = vector.load %arg6[%c176_65, %c64_66] : memref<192x224xf32, #tpu.memory_space<vmem>>, vector<16x32xf32>
    tpu.vector_store %arg6[%c176_65, %c64_66], %76 {strides = array<i32>} : memref<192x224xf32, #tpu.memory_space<vmem>>, vector<16x32xf32>,
    %c1 = arith.constant 1 : index
    %c0_67 = arith.constant 0 : index
    %c0_68 = arith.constant 0 : index
    %78 = vector.load %arg2[%c1, %c0_67, %c0_68] : memref<3x16x16xf32, #tpu.memory_space<vmem>>, vector<1x16x16xf32>
    %79 = vector.shape_cast %78 : vector<1x16x16xf32> to vector<16x16xf32>
    %cst_69 = arith.constant dense<0.000000e+00> : vector<16x384xf32>
    %80 = tpu.matmul %79, %1, %cst_69 {dimension_numbers = #tpu.dot_dimension_numbers<[1], [0], [0], [1], [0, 0, 1, 1], [], []>} : vector<16x16xf32>, vector<16x384xf32>, vector<16x384xf32> -> vector<16x384xf32>
    %81 = vector.extract_strided_slice %80 {offsets = [0, 0], sizes = [16, 32], strides = [1, 1]} : vector<16x384xf32> to vector<16x32xf32>
    %c0_70 = arith.constant 0 : index
    %c96_71 = arith.constant 96 : index
    %82 = vector.load %arg6[%c0_70, %c96_71] : memref<192x224xf32, #tpu.memory_space<vmem>>, vector<16x32xf32>
    tpu.vector_store %arg6[%c0_70, %c96_71], %81 {strides = array<i32>} : memref<192x224xf32, #tpu.memory_space<vmem>>, vector<16x32xf32>,
    %83 = vector.extract_strided_slice %80 {offsets = [0, 32], sizes = [16, 32], strides = [1, 1]} : vector<16x384xf32> to vector<16x32xf32>
    %c16_72 = arith.constant 16 : index
    %c96_73 = arith.constant 96 : index
    %84 = vector.load %arg6[%c16_72, %c96_73] : memref<192x224xf32, #tpu.memory_space<vmem>>, vector<16x32xf32>
    tpu.vector_store %arg6[%c16_72, %c96_73], %83 {strides = array<i32>} : memref<192x224xf32, #tpu.memory_space<vmem>>, vector<16x32xf32>,
    %85 = vector.extract_strided_slice %80 {offsets = [0, 64], sizes = [16, 32], strides = [1, 1]} : vector<16x384xf32> to vector<16x32xf32>
    %c32_74 = arith.constant 32 : index
    %c96_75 = arith.constant 96 : index
    %86 = vector.load %arg6[%c32_74, %c96_75] : memref<192x224xf32, #tpu.memory_space<vmem>>, vector<16x32xf32>
    tpu.vector_store %arg6[%c32_74, %c96_75], %85 {strides = array<i32>} : memref<192x224xf32, #tpu.memory_space<vmem>>, vector<16x32xf32>,
    %87 = vector.extract_strided_slice %80 {offsets = [0, 96], sizes = [16, 32], strides = [1, 1]} : vector<16x384xf32> to vector<16x32xf32>
    %c48_76 = arith.constant 48 : index
    %c96_77 = arith.constant 96 : index
    %88 = vector.load %arg6[%c48_76, %c96_77] : memref<192x224xf32, #tpu.memory_space<vmem>>, vector<16x32xf32>
    tpu.vector_store %arg6[%c48_76, %c96_77], %87 {strides = array<i32>} : memref<192x224xf32, #tpu.memory_space<vmem>>, vector<16x32xf32>,
    %89 = vector.extract_strided_slice %80 {offsets = [0, 128], sizes = [16, 32], strides = [1, 1]} : vector<16x384xf32> to vector<16x32xf32>
    %c64_78 = arith.constant 64 : index
    %c96_79 = arith.constant 96 : index
    %90 = vector.load %arg6[%c64_78, %c96_79] : memref<192x224xf32, #tpu.memory_space<vmem>>, vector<16x32xf32>
    tpu.vector_store %arg6[%c64_78, %c96_79], %89 {strides = array<i32>} : memref<192x224xf32, #tpu.memory_space<vmem>>, vector<16x32xf32>,
    %91 = vector.extract_strided_slice %80 {offsets = [0, 160], sizes = [16, 32], strides = [1, 1]} : vector<16x384xf32> to vector<16x32xf32>
    %c80_80 = arith.constant 80 : index
    %c96_81 = arith.constant 96 : index
    %92 = vector.load %arg6[%c80_80, %c96_81] : memref<192x224xf32, #tpu.memory_space<vmem>>, vector<16x32xf32>
    tpu.vector_store %arg6[%c80_80, %c96_81], %91 {strides = array<i32>} : memref<192x224xf32, #tpu.memory_space<vmem>>, vector<16x32xf32>,
    %93 = vector.extract_strided_slice %80 {offsets = [0, 192], sizes = [16, 32], strides = [1, 1]} : vector<16x384xf32> to vector<16x32xf32>
    %c96_82 = arith.constant 96 : index
    %c96_83 = arith.constant 96 : index
    %94 = vector.load %arg6[%c96_82, %c96_83] : memref<192x224xf32, #tpu.memory_space<vmem>>, vector<16x32xf32>
    tpu.vector_store %arg6[%c96_82, %c96_83], %93 {strides = array<i32>} : memref<192x224xf32, #tpu.memory_space<vmem>>, vector<16x32xf32>,
    %95 = vector.extract_strided_slice %80 {offsets = [0, 224], sizes = [16, 32], strides = [1, 1]} : vector<16x384xf32> to vector<16x32xf32>
    %c112_84 = arith.constant 112 : index
    %c96_85 = arith.constant 96 : index
    %96 = vector.load %arg6[%c112_84, %c96_85] : memref<192x224xf32, #tpu.memory_space<vmem>>, vector<16x32xf32>
    tpu.vector_store %arg6[%c112_84, %c96_85], %95 {strides = array<i32>} : memref<192x224xf32, #tpu.memory_space<vmem>>, vector<16x32xf32>,
    %97 = vector.extract_strided_slice %80 {offsets = [0, 256], sizes = [16, 32], strides = [1, 1]} : vector<16x384xf32> to vector<16x32xf32>
    %c128_86 = arith.constant 128 : index
    %c96_87 = arith.constant 96 : index
    %98 = vector.load %arg6[%c128_86, %c96_87] : memref<192x224xf32, #tpu.memory_space<vmem>>, vector<16x32xf32>
    tpu.vector_store %arg6[%c128_86, %c96_87], %97 {strides = array<i32>} : memref<192x224xf32, #tpu.memory_space<vmem>>, vector<16x32xf32>,
    %99 = vector.extract_strided_slice %80 {offsets = [0, 288], sizes = [16, 32], strides = [1, 1]} : vector<16x384xf32> to vector<16x32xf32>
    %c144_88 = arith.constant 144 : index
    %c96_89 = arith.constant 96 : index
    %100 = vector.load %arg6[%c144_88, %c96_89] : memref<192x224xf32, #tpu.memory_space<vmem>>, vector<16x32xf32>
    tpu.vector_store %arg6[%c144_88, %c96_89], %99 {strides = array<i32>} : memref<192x224xf32, #tpu.memory_space<vmem>>, vector<16x32xf32>,
    %101 = vector.extract_strided_slice %80 {offsets = [0, 320], sizes = [16, 32], strides = [1, 1]} : vector<16x384xf32> to vector<16x32xf32>
    %c160_90 = arith.constant 160 : index
    %c96_91 = arith.constant 96 : index
    %102 = vector.load %arg6[%c160_90, %c96_91] : memref<192x224xf32, #tpu.memory_space<vmem>>, vector<16x32xf32>
    tpu.vector_store %arg6[%c160_90, %c96_91], %101 {strides = array<i32>} : memref<192x224xf32, #tpu.memory_space<vmem>>, vector<16x32xf32>,
    %103 = vector.extract_strided_slice %80 {offsets = [0, 352], sizes = [16, 32], strides = [1, 1]} : vector<16x384xf32> to vector<16x32xf32>
    %c176_92 = arith.constant 176 : index
    %c96_93 = arith.constant 96 : index
    %104 = vector.load %arg6[%c176_92, %c96_93] : memref<192x224xf32, #tpu.memory_space<vmem>>, vector<16x32xf32>
    tpu.vector_store %arg6[%c176_92, %c96_93], %103 {strides = array<i32>} : memref<192x224xf32, #tpu.memory_space<vmem>>, vector<16x32xf32>,
    %cst_94 = arith.constant dense<0.000000e+00> : vector<16x384xf32>
    %105 = tpu.matmul %79, %80, %cst_94 {dimension_numbers = #tpu.dot_dimension_numbers<[1], [0], [0], [1], [0, 0, 1, 1], [], []>} : vector<16x16xf32>, vector<16x384xf32>, vector<16x384xf32> -> vector<16x384xf32>
    %106 = vector.extract_strided_slice %105 {offsets = [0, 0], sizes = [16, 32], strides = [1, 1]} : vector<16x384xf32> to vector<16x32xf32>
    %c0_95 = arith.constant 0 : index
    %c128_96 = arith.constant 128 : index
    %107 = vector.load %arg6[%c0_95, %c128_96] : memref<192x224xf32, #tpu.memory_space<vmem>>, vector<16x32xf32>
    tpu.vector_store %arg6[%c0_95, %c128_96], %106 {strides = array<i32>} : memref<192x224xf32, #tpu.memory_space<vmem>>, vector<16x32xf32>,
    %108 = vector.extract_strided_slice %105 {offsets = [0, 32], sizes = [16, 32], strides = [1, 1]} : vector<16x384xf32> to vector<16x32xf32>
    %c16_97 = arith.constant 16 : index
    %c128_98 = arith.constant 128 : index
    %109 = vector.load %arg6[%c16_97, %c128_98] : memref<192x224xf32, #tpu.memory_space<vmem>>, vector<16x32xf32>
    tpu.vector_store %arg6[%c16_97, %c128_98], %108 {strides = array<i32>} : memref<192x224xf32, #tpu.memory_space<vmem>>, vector<16x32xf32>,
    %110 = vector.extract_strided_slice %105 {offsets = [0, 64], sizes = [16, 32], strides = [1, 1]} : vector<16x384xf32> to vector<16x32xf32>
    %c32_99 = arith.constant 32 : index
    %c128_100 = arith.constant 128 : index
    %111 = vector.load %arg6[%c32_99, %c128_100] : memref<192x224xf32, #tpu.memory_space<vmem>>, vector<16x32xf32>
    tpu.vector_store %arg6[%c32_99, %c128_100], %110 {strides = array<i32>} : memref<192x224xf32, #tpu.memory_space<vmem>>, vector<16x32xf32>,
    %112 = vector.extract_strided_slice %105 {offsets = [0, 96], sizes = [16, 32], strides = [1, 1]} : vector<16x384xf32> to vector<16x32xf32>
    %c48_101 = arith.constant 48 : index
    %c128_102 = arith.constant 128 : index
    %113 = vector.load %arg6[%c48_101, %c128_102] : memref<192x224xf32, #tpu.memory_space<vmem>>, vector<16x32xf32>
    tpu.vector_store %arg6[%c48_101, %c128_102], %112 {strides = array<i32>} : memref<192x224xf32, #tpu.memory_space<vmem>>, vector<16x32xf32>,
    %114 = vector.extract_strided_slice %105 {offsets = [0, 128], sizes = [16, 32], strides = [1, 1]} : vector<16x384xf32> to vector<16x32xf32>
    %c64_103 = arith.constant 64 : index
    %c128_104 = arith.constant 128 : index
    %115 = vector.load %arg6[%c64_103, %c128_104] : memref<192x224xf32, #tpu.memory_space<vmem>>, vector<16x32xf32>
    tpu.vector_store %arg6[%c64_103, %c128_104], %114 {strides = array<i32>} : memref<192x224xf32, #tpu.memory_space<vmem>>, vector<16x32xf32>,
    %116 = vector.extract_strided_slice %105 {offsets = [0, 160], sizes = [16, 32], strides = [1, 1]} : vector<16x384xf32> to vector<16x32xf32>
    %c80_105 = arith.constant 80 : index
    %c128_106 = arith.constant 128 : index
    %117 = vector.load %arg6[%c80_105, %c128_106] : memref<192x224xf32, #tpu.memory_space<vmem>>, vector<16x32xf32>
    tpu.vector_store %arg6[%c80_105, %c128_106], %116 {strides = array<i32>} : memref<192x224xf32, #tpu.memory_space<vmem>>, vector<16x32xf32>,
    %118 = vector.extract_strided_slice %105 {offsets = [0, 192], sizes = [16, 32], strides = [1, 1]} : vector<16x384xf32> to vector<16x32xf32>
    %c96_107 = arith.constant 96 : index
    %c128_108 = arith.constant 128 : index
    %119 = vector.load %arg6[%c96_107, %c128_108] : memref<192x224xf32, #tpu.memory_space<vmem>>, vector<16x32xf32>
    tpu.vector_store %arg6[%c96_107, %c128_108], %118 {strides = array<i32>} : memref<192x224xf32, #tpu.memory_space<vmem>>, vector<16x32xf32>,
    %120 = vector.extract_strided_slice %105 {offsets = [0, 224], sizes = [16, 32], strides = [1, 1]} : vector<16x384xf32> to vector<16x32xf32>
    %c112_109 = arith.constant 112 : index
    %c128_110 = arith.constant 128 : index
    %121 = vector.load %arg6[%c112_109, %c128_110] : memref<192x224xf32, #tpu.memory_space<vmem>>, vector<16x32xf32>
    tpu.vector_store %arg6[%c112_109, %c128_110], %120 {strides = array<i32>} : memref<192x224xf32, #tpu.memory_space<vmem>>, vector<16x32xf32>,
    %122 = vector.extract_strided_slice %105 {offsets = [0, 256], sizes = [16, 32], strides = [1, 1]} : vector<16x384xf32> to vector<16x32xf32>
    %c128_111 = arith.constant 128 : index
    %c128_112 = arith.constant 128 : index
    %123 = vector.load %arg6[%c128_111, %c128_112] : memref<192x224xf32, #tpu.memory_space<vmem>>, vector<16x32xf32>
    tpu.vector_store %arg6[%c128_111, %c128_112], %122 {strides = array<i32>} : memref<192x224xf32, #tpu.memory_space<vmem>>, vector<16x32xf32>,
    %124 = vector.extract_strided_slice %105 {offsets = [0, 288], sizes = [16, 32], strides = [1, 1]} : vector<16x384xf32> to vector<16x32xf32>
    %c144_113 = arith.constant 144 : index
    %c128_114 = arith.constant 128 : index
    %125 = vector.load %arg6[%c144_113, %c128_114] : memref<192x224xf32, #tpu.memory_space<vmem>>, vector<16x32xf32>
    tpu.vector_store %arg6[%c144_113, %c128_114], %124 {strides = array<i32>} : memref<192x224xf32, #tpu.memory_space<vmem>>, vector<16x32xf32>,
    %126 = vector.extract_strided_slice %105 {offsets = [0, 320], sizes = [16, 32], strides = [1, 1]} : vector<16x384xf32> to vector<16x32xf32>
    %c160_115 = arith.constant 160 : index
    %c128_116 = arith.constant 128 : index
    %127 = vector.load %arg6[%c160_115, %c128_116] : memref<192x224xf32, #tpu.memory_space<vmem>>, vector<16x32xf32>
    tpu.vector_store %arg6[%c160_115, %c128_116], %126 {strides = array<i32>} : memref<192x224xf32, #tpu.memory_space<vmem>>, vector<16x32xf32>,
    %128 = vector.extract_strided_slice %105 {offsets = [0, 352], sizes = [16, 32], strides = [1, 1]} : vector<16x384xf32> to vector<16x32xf32>
    %c176_117 = arith.constant 176 : index
    %c128_118 = arith.constant 128 : index
    %129 = vector.load %arg6[%c176_117, %c128_118] : memref<192x224xf32, #tpu.memory_space<vmem>>, vector<16x32xf32>
    tpu.vector_store %arg6[%c176_117, %c128_118], %128 {strides = array<i32>} : memref<192x224xf32, #tpu.memory_space<vmem>>, vector<16x32xf32>,
    %c2 = arith.constant 2 : index
    %c0_119 = arith.constant 0 : index
    %c0_120 = arith.constant 0 : index
    %130 = vector.load %arg2[%c2, %c0_119, %c0_120] : memref<3x16x16xf32, #tpu.memory_space<vmem>>, vector<1x16x16xf32>
    %131 = vector.shape_cast %130 : vector<1x16x16xf32> to vector<16x16xf32>
    %cst_121 = arith.constant dense<0.000000e+00> : vector<16x384xf32>
    %132 = tpu.matmul %131, %1, %cst_121 {dimension_numbers = #tpu.dot_dimension_numbers<[1], [0], [0], [1], [0, 0, 1, 1], [], []>} : vector<16x16xf32>, vector<16x384xf32>, vector<16x384xf32> -> vector<16x384xf32>
    %133 = vector.extract_strided_slice %132 {offsets = [0, 0], sizes = [16, 32], strides = [1, 1]} : vector<16x384xf32> to vector<16x32xf32>
    %c0_122 = arith.constant 0 : index
    %c160_123 = arith.constant 160 : index
    %134 = vector.load %arg6[%c0_122, %c160_123] : memref<192x224xf32, #tpu.memory_space<vmem>>, vector<16x32xf32>
    tpu.vector_store %arg6[%c0_122, %c160_123], %133 {strides = array<i32>} : memref<192x224xf32, #tpu.memory_space<vmem>>, vector<16x32xf32>,
    %135 = vector.extract_strided_slice %132 {offsets = [0, 32], sizes = [16, 32], strides = [1, 1]} : vector<16x384xf32> to vector<16x32xf32>
    %c16_124 = arith.constant 16 : index
    %c160_125 = arith.constant 160 : index
    %136 = vector.load %arg6[%c16_124, %c160_125] : memref<192x224xf32, #tpu.memory_space<vmem>>, vector<16x32xf32>
    tpu.vector_store %arg6[%c16_124, %c160_125], %135 {strides = array<i32>} : memref<192x224xf32, #tpu.memory_space<vmem>>, vector<16x32xf32>,
    %137 = vector.extract_strided_slice %132 {offsets = [0, 64], sizes = [16, 32], strides = [1, 1]} : vector<16x384xf32> to vector<16x32xf32>
    %c32_126 = arith.constant 32 : index
    %c160_127 = arith.constant 160 : index
    %138 = vector.load %arg6[%c32_126, %c160_127] : memref<192x224xf32, #tpu.memory_space<vmem>>, vector<16x32xf32>
    tpu.vector_store %arg6[%c32_126, %c160_127], %137 {strides = array<i32>} : memref<192x224xf32, #tpu.memory_space<vmem>>, vector<16x32xf32>,
    %139 = vector.extract_strided_slice %132 {offsets = [0, 96], sizes = [16, 32], strides = [1, 1]} : vector<16x384xf32> to vector<16x32xf32>
    %c48_128 = arith.constant 48 : index
    %c160_129 = arith.constant 160 : index
    %140 = vector.load %arg6[%c48_128, %c160_129] : memref<192x224xf32, #tpu.memory_space<vmem>>, vector<16x32xf32>
    tpu.vector_store %arg6[%c48_128, %c160_129], %139 {strides = array<i32>} : memref<192x224xf32, #tpu.memory_space<vmem>>, vector<16x32xf32>,
    %141 = vector.extract_strided_slice %132 {offsets = [0, 128], sizes = [16, 32], strides = [1, 1]} : vector<16x384xf32> to vector<16x32xf32>
    %c64_130 = arith.constant 64 : index
    %c160_131 = arith.constant 160 : index
    %142 = vector.load %arg6[%c64_130, %c160_131] : memref<192x224xf32, #tpu.memory_space<vmem>>, vector<16x32xf32>
    tpu.vector_store %arg6[%c64_130, %c160_131], %141 {strides = array<i32>} : memref<192x224xf32, #tpu.memory_space<vmem>>, vector<16x32xf32>,
    %143 = vector.extract_strided_slice %132 {offsets = [0, 160], sizes = [16, 32], strides = [1, 1]} : vector<16x384xf32> to vector<16x32xf32>
    %c80_132 = arith.constant 80 : index
    %c160_133 = arith.constant 160 : index
    %144 = vector.load %arg6[%c80_132, %c160_133] : memref<192x224xf32, #tpu.memory_space<vmem>>, vector<16x32xf32>
    tpu.vector_store %arg6[%c80_132, %c160_133], %143 {strides = array<i32>} : memref<192x224xf32, #tpu.memory_space<vmem>>, vector<16x32xf32>,
    %145 = vector.extract_strided_slice %132 {offsets = [0, 192], sizes = [16, 32], strides = [1, 1]} : vector<16x384xf32> to vector<16x32xf32>
    %c96_134 = arith.constant 96 : index
    %c160_135 = arith.constant 160 : index
    %146 = vector.load %arg6[%c96_134, %c160_135] : memref<192x224xf32, #tpu.memory_space<vmem>>, vector<16x32xf32>
    tpu.vector_store %arg6[%c96_134, %c160_135], %145 {strides = array<i32>} : memref<192x224xf32, #tpu.memory_space<vmem>>, vector<16x32xf32>,
    %147 = vector.extract_strided_slice %132 {offsets = [0, 224], sizes = [16, 32], strides = [1, 1]} : vector<16x384xf32> to vector<16x32xf32>
    %c112_136 = arith.constant 112 : index
    %c160_137 = arith.constant 160 : index
    %148 = vector.load %arg6[%c112_136, %c160_137] : memref<192x224xf32, #tpu.memory_space<vmem>>, vector<16x32xf32>
    tpu.vector_store %arg6[%c112_136, %c160_137], %147 {strides = array<i32>} : memref<192x224xf32, #tpu.memory_space<vmem>>, vector<16x32xf32>,
    %149 = vector.extract_strided_slice %132 {offsets = [0, 256], sizes = [16, 32], strides = [1, 1]} : vector<16x384xf32> to vector<16x32xf32>
    %c128_138 = arith.constant 128 : index
    %c160_139 = arith.constant 160 : index
    %150 = vector.load %arg6[%c128_138, %c160_139] : memref<192x224xf32, #tpu.memory_space<vmem>>, vector<16x32xf32>
    tpu.vector_store %arg6[%c128_138, %c160_139], %149 {strides = array<i32>} : memref<192x224xf32, #tpu.memory_space<vmem>>, vector<16x32xf32>,
    %151 = vector.extract_strided_slice %132 {offsets = [0, 288], sizes = [16, 32], strides = [1, 1]} : vector<16x384xf32> to vector<16x32xf32>
    %c144_140 = arith.constant 144 : index
    %c160_141 = arith.constant 160 : index
    %152 = vector.load %arg6[%c144_140, %c160_141] : memref<192x224xf32, #tpu.memory_space<vmem>>, vector<16x32xf32>
    tpu.vector_store %arg6[%c144_140, %c160_141], %151 {strides = array<i32>} : memref<192x224xf32, #tpu.memory_space<vmem>>, vector<16x32xf32>,
    %153 = vector.extract_strided_slice %132 {offsets = [0, 320], sizes = [16, 32], strides = [1, 1]} : vector<16x384xf32> to vector<16x32xf32>
    %c160_142 = arith.constant 160 : index
    %c160_143 = arith.constant 160 : index
    %154 = vector.load %arg6[%c160_142, %c160_143] : memref<192x224xf32, #tpu.memory_space<vmem>>, vector<16x32xf32>
    tpu.vector_store %arg6[%c160_142, %c160_143], %153 {strides = array<i32>} : memref<192x224xf32, #tpu.memory_space<vmem>>, vector<16x32xf32>,
    %155 = vector.extract_strided_slice %132 {offsets = [0, 352], sizes = [16, 32], strides = [1, 1]} : vector<16x384xf32> to vector<16x32xf32>
    %c176_144 = arith.constant 176 : index
    %c160_145 = arith.constant 160 : index
    %156 = vector.load %arg6[%c176_144, %c160_145] : memref<192x224xf32, #tpu.memory_space<vmem>>, vector<16x32xf32>
    tpu.vector_store %arg6[%c176_144, %c160_145], %155 {strides = array<i32>} : memref<192x224xf32, #tpu.memory_space<vmem>>, vector<16x32xf32>,
    %cst_146 = arith.constant dense<0.000000e+00> : vector<16x384xf32>
    %157 = tpu.matmul %131, %132, %cst_146 {dimension_numbers = #tpu.dot_dimension_numbers<[1], [0], [0], [1], [0, 0, 1, 1], [], []>} : vector<16x16xf32>, vector<16x384xf32>, vector<16x384xf32> -> vector<16x384xf32>
    %158 = vector.extract_strided_slice %157 {offsets = [0, 0], sizes = [16, 32], strides = [1, 1]} : vector<16x384xf32> to vector<16x32xf32>
    %c0_147 = arith.constant 0 : index
    %c192 = arith.constant 192 : index
    %159 = vector.load %arg6[%c0_147, %c192] : memref<192x224xf32, #tpu.memory_space<vmem>>, vector<16x32xf32>
    tpu.vector_store %arg6[%c0_147, %c192], %158 {strides = array<i32>} : memref<192x224xf32, #tpu.memory_space<vmem>>, vector<16x32xf32>,
    %160 = vector.extract_strided_slice %157 {offsets = [0, 32], sizes = [16, 32], strides = [1, 1]} : vector<16x384xf32> to vector<16x32xf32>
    %c16_148 = arith.constant 16 : index
    %c192_149 = arith.constant 192 : index
    %161 = vector.load %arg6[%c16_148, %c192_149] : memref<192x224xf32, #tpu.memory_space<vmem>>, vector<16x32xf32>
    tpu.vector_store %arg6[%c16_148, %c192_149], %160 {strides = array<i32>} : memref<192x224xf32, #tpu.memory_space<vmem>>, vector<16x32xf32>,
    %162 = vector.extract_strided_slice %157 {offsets = [0, 64], sizes = [16, 32], strides = [1, 1]} : vector<16x384xf32> to vector<16x32xf32>
    %c32_150 = arith.constant 32 : index
    %c192_151 = arith.constant 192 : index
    %163 = vector.load %arg6[%c32_150, %c192_151] : memref<192x224xf32, #tpu.memory_space<vmem>>, vector<16x32xf32>
    tpu.vector_store %arg6[%c32_150, %c192_151], %162 {strides = array<i32>} : memref<192x224xf32, #tpu.memory_space<vmem>>, vector<16x32xf32>,
    %164 = vector.extract_strided_slice %157 {offsets = [0, 96], sizes = [16, 32], strides = [1, 1]} : vector<16x384xf32> to vector<16x32xf32>
    %c48_152 = arith.constant 48 : index
    %c192_153 = arith.constant 192 : index
    %165 = vector.load %arg6[%c48_152, %c192_153] : memref<192x224xf32, #tpu.memory_space<vmem>>, vector<16x32xf32>
    tpu.vector_store %arg6[%c48_152, %c192_153], %164 {strides = array<i32>} : memref<192x224xf32, #tpu.memory_space<vmem>>, vector<16x32xf32>,
    %166 = vector.extract_strided_slice %157 {offsets = [0, 128], sizes = [16, 32], strides = [1, 1]} : vector<16x384xf32> to vector<16x32xf32>
    %c64_154 = arith.constant 64 : index
    %c192_155 = arith.constant 192 : index
    %167 = vector.load %arg6[%c64_154, %c192_155] : memref<192x224xf32, #tpu.memory_space<vmem>>, vector<16x32xf32>
    tpu.vector_store %arg6[%c64_154, %c192_155], %166 {strides = array<i32>} : memref<192x224xf32, #tpu.memory_space<vmem>>, vector<16x32xf32>,
    %168 = vector.extract_strided_slice %157 {offsets = [0, 160], sizes = [16, 32], strides = [1, 1]} : vector<16x384xf32> to vector<16x32xf32>
    %c80_156 = arith.constant 80 : index
    %c192_157 = arith.constant 192 : index
    %169 = vector.load %arg6[%c80_156, %c192_157] : memref<192x224xf32, #tpu.memory_space<vmem>>, vector<16x32xf32>
    tpu.vector_store %arg6[%c80_156, %c192_157], %168 {strides = array<i32>} : memref<192x224xf32, #tpu.memory_space<vmem>>, vector<16x32xf32>,
    %170 = vector.extract_strided_slice %157 {offsets = [0, 192], sizes = [16, 32], strides = [1, 1]} : vector<16x384xf32> to vector<16x32xf32>
    %c96_158 = arith.constant 96 : index
    %c192_159 = arith.constant 192 : index
    %171 = vector.load %arg6[%c96_158, %c192_159] : memref<192x224xf32, #tpu.memory_space<vmem>>, vector<16x32xf32>
    tpu.vector_store %arg6[%c96_158, %c192_159], %170 {strides = array<i32>} : memref<192x224xf32, #tpu.memory_space<vmem>>, vector<16x32xf32>,
    %172 = vector.extract_strided_slice %157 {offsets = [0, 224], sizes = [16, 32], strides = [1, 1]} : vector<16x384xf32> to vector<16x32xf32>
    %c112_160 = arith.constant 112 : index
    %c192_161 = arith.constant 192 : index
    %173 = vector.load %arg6[%c112_160, %c192_161] : memref<192x224xf32, #tpu.memory_space<vmem>>, vector<16x32xf32>
    tpu.vector_store %arg6[%c112_160, %c192_161], %172 {strides = array<i32>} : memref<192x224xf32, #tpu.memory_space<vmem>>, vector<16x32xf32>,
    %174 = vector.extract_strided_slice %157 {offsets = [0, 256], sizes = [16, 32], strides = [1, 1]} : vector<16x384xf32> to vector<16x32xf32>
    %c128_162 = arith.constant 128 : index
    %c192_163 = arith.constant 192 : index
    %175 = vector.load %arg6[%c128_162, %c192_163] : memref<192x224xf32, #tpu.memory_space<vmem>>, vector<16x32xf32>
    tpu.vector_store %arg6[%c128_162, %c192_163], %174 {strides = array<i32>} : memref<192x224xf32, #tpu.memory_space<vmem>>, vector<16x32xf32>,
    %176 = vector.extract_strided_slice %157 {offsets = [0, 288], sizes = [16, 32], strides = [1, 1]} : vector<16x384xf32> to vector<16x32xf32>
    %c144_164 = arith.constant 144 : index
    %c192_165 = arith.constant 192 : index
    %177 = vector.load %arg6[%c144_164, %c192_165] : memref<192x224xf32, #tpu.memory_space<vmem>>, vector<16x32xf32>
    tpu.vector_store %arg6[%c144_164, %c192_165], %176 {strides = array<i32>} : memref<192x224xf32, #tpu.memory_space<vmem>>, vector<16x32xf32>,
    %178 = vector.extract_strided_slice %157 {offsets = [0, 320], sizes = [16, 32], strides = [1, 1]} : vector<16x384xf32> to vector<16x32xf32>
    %c160_166 = arith.constant 160 : index
    %c192_167 = arith.constant 192 : index
    %179 = vector.load %arg6[%c160_166, %c192_167] : memref<192x224xf32, #tpu.memory_space<vmem>>, vector<16x32xf32>
    tpu.vector_store %arg6[%c160_166, %c192_167], %178 {strides = array<i32>} : memref<192x224xf32, #tpu.memory_space<vmem>>, vector<16x32xf32>,
    %180 = vector.extract_strided_slice %157 {offsets = [0, 352], sizes = [16, 32], strides = [1, 1]} : vector<16x384xf32> to vector<16x32xf32>
    %c176_168 = arith.constant 176 : index
    %c192_169 = arith.constant 192 : index
    %181 = vector.load %arg6[%c176_168, %c192_169] : memref<192x224xf32, #tpu.memory_space<vmem>>, vector<16x32xf32>
    tpu.vector_store %arg6[%c176_168, %c192_169], %180 {strides = array<i32>} : memref<192x224xf32, #tpu.memory_space<vmem>>, vector<16x32xf32>,
    %c0_170 = arith.constant 0 : index
    %c0_171 = arith.constant 0 : index
    %182 = vector.load %arg6[%c0_170, %c0_171] : memref<192x224xf32, #tpu.memory_space<vmem>>, vector<192x224xf32>
    %c0_172 = arith.constant 0 : index
    %c0_173 = arith.constant 0 : index
    %183 = vector.load %arg3[%c0_172, %c0_173] : memref<224x32xf32, #tpu.memory_space<vmem>>, vector<224x32xf32>
    %cst_174 = arith.constant dense<0.000000e+00> : vector<192x32xf32>
    %184 = tpu.matmul %182, %183, %cst_174 {dimension_numbers = #tpu.dot_dimension_numbers<[1], [0], [0], [1], [0, 0, 1, 1], [], []>} : vector<192x224xf32>, vector<224x32xf32>, vector<192x32xf32> -> vector<192x32xf32>
    %c0_175 = arith.constant 0 : index
    %c0_176 = arith.constant 0 : index
    %185 = vector.load %arg4[%c0_175, %c0_176] : memref<1x32xf32, #tpu.memory_space<vmem>>, vector<1x32xf32>
    %186 = vector.broadcast %185 : vector<1x32xf32> to vector<192x32xf32>
    %187 = arith.addf %184, %186 : vector<192x32xf32>
    %188 = vector.extract_strided_slice %187 {offsets = [0, 0], sizes = [16, 32], strides = [1, 1]} : vector<192x32xf32> to vector<16x32xf32>
    %c0_177 = arith.constant 0 : index
    %c0_178 = arith.constant 0 : index
    %c0_179 = arith.constant 0 : index
    %189 = vector.load %arg5[%c0_177, %c0_178, %c0_179] : memref<1x16x384xf32, #tpu.memory_space<vmem>>, vector<1x16x32xf32>
    %190 = vector.shape_cast %189 : vector<1x16x32xf32> to vector<16x32xf32>
    %191 = vector.shape_cast %188 : vector<16x32xf32> to vector<1x16x32xf32>
    tpu.vector_store %arg5[%c0_177, %c0_178, %c0_179], %191 {strides = array<i32>} : memref<1x16x384xf32, #tpu.memory_space<vmem>>, vector<1x16x32xf32>,
    %192 = vector.extract_strided_slice %187 {offsets = [16, 0], sizes = [16, 32], strides = [1, 1]} : vector<192x32xf32> to vector<16x32xf32>
    %c0_180 = arith.constant 0 : index
    %c0_181 = arith.constant 0 : index
    %c32_182 = arith.constant 32 : index
    %193 = vector.load %arg5[%c0_180, %c0_181, %c32_182] : memref<1x16x384xf32, #tpu.memory_space<vmem>>, vector<1x16x32xf32>
    %194 = vector.shape_cast %193 : vector<1x16x32xf32> to vector<16x32xf32>
    %195 = vector.shape_cast %192 : vector<16x32xf32> to vector<1x16x32xf32>
    tpu.vector_store %arg5[%c0_180, %c0_181, %c32_182], %195 {strides = array<i32>} : memref<1x16x384xf32, #tpu.memory_space<vmem>>, vector<1x16x32xf32>,
    %196 = vector.extract_strided_slice %187 {offsets = [32, 0], sizes = [16, 32], strides = [1, 1]} : vector<192x32xf32> to vector<16x32xf32>
    %c0_183 = arith.constant 0 : index
    %c0_184 = arith.constant 0 : index
    %c64_185 = arith.constant 64 : index
    %197 = vector.load %arg5[%c0_183, %c0_184, %c64_185] : memref<1x16x384xf32, #tpu.memory_space<vmem>>, vector<1x16x32xf32>
    %198 = vector.shape_cast %197 : vector<1x16x32xf32> to vector<16x32xf32>
    %199 = vector.shape_cast %196 : vector<16x32xf32> to vector<1x16x32xf32>
    tpu.vector_store %arg5[%c0_183, %c0_184, %c64_185], %199 {strides = array<i32>} : memref<1x16x384xf32, #tpu.memory_space<vmem>>, vector<1x16x32xf32>,
    %200 = vector.extract_strided_slice %187 {offsets = [48, 0], sizes = [16, 32], strides = [1, 1]} : vector<192x32xf32> to vector<16x32xf32>
    %c0_186 = arith.constant 0 : index
    %c0_187 = arith.constant 0 : index
    %c96_188 = arith.constant 96 : index
    %201 = vector.load %arg5[%c0_186, %c0_187, %c96_188] : memref<1x16x384xf32, #tpu.memory_space<vmem>>, vector<1x16x32xf32>
    %202 = vector.shape_cast %201 : vector<1x16x32xf32> to vector<16x32xf32>
    %203 = vector.shape_cast %200 : vector<16x32xf32> to vector<1x16x32xf32>
    tpu.vector_store %arg5[%c0_186, %c0_187, %c96_188], %203 {strides = array<i32>} : memref<1x16x384xf32, #tpu.memory_space<vmem>>, vector<1x16x32xf32>,
    %204 = vector.extract_strided_slice %187 {offsets = [64, 0], sizes = [16, 32], strides = [1, 1]} : vector<192x32xf32> to vector<16x32xf32>
    %c0_189 = arith.constant 0 : index
    %c0_190 = arith.constant 0 : index
    %c128_191 = arith.constant 128 : index
    %205 = vector.load %arg5[%c0_189, %c0_190, %c128_191] : memref<1x16x384xf32, #tpu.memory_space<vmem>>, vector<1x16x32xf32>
    %206 = vector.shape_cast %205 : vector<1x16x32xf32> to vector<16x32xf32>
    %207 = vector.shape_cast %204 : vector<16x32xf32> to vector<1x16x32xf32>
    tpu.vector_store %arg5[%c0_189, %c0_190, %c128_191], %207 {strides = array<i32>} : memref<1x16x384xf32, #tpu.memory_space<vmem>>, vector<1x16x32xf32>,
    %208 = vector.extract_strided_slice %187 {offsets = [80, 0], sizes = [16, 32], strides = [1, 1]} : vector<192x32xf32> to vector<16x32xf32>
    %c0_192 = arith.constant 0 : index
    %c0_193 = arith.constant 0 : index
    %c160_194 = arith.constant 160 : index
    %209 = vector.load %arg5[%c0_192, %c0_193, %c160_194] : memref<1x16x384xf32, #tpu.memory_space<vmem>>, vector<1x16x32xf32>
    %210 = vector.shape_cast %209 : vector<1x16x32xf32> to vector<16x32xf32>
    %211 = vector.shape_cast %208 : vector<16x32xf32> to vector<1x16x32xf32>
    tpu.vector_store %arg5[%c0_192, %c0_193, %c160_194], %211 {strides = array<i32>} : memref<1x16x384xf32, #tpu.memory_space<vmem>>, vector<1x16x32xf32>,
    %212 = vector.extract_strided_slice %187 {offsets = [96, 0], sizes = [16, 32], strides = [1, 1]} : vector<192x32xf32> to vector<16x32xf32>
    %c0_195 = arith.constant 0 : index
    %c0_196 = arith.constant 0 : index
    %c192_197 = arith.constant 192 : index
    %213 = vector.load %arg5[%c0_195, %c0_196, %c192_197] : memref<1x16x384xf32, #tpu.memory_space<vmem>>, vector<1x16x32xf32>
    %214 = vector.shape_cast %213 : vector<1x16x32xf32> to vector<16x32xf32>
    %215 = vector.shape_cast %212 : vector<16x32xf32> to vector<1x16x32xf32>
    tpu.vector_store %arg5[%c0_195, %c0_196, %c192_197], %215 {strides = array<i32>} : memref<1x16x384xf32, #tpu.memory_space<vmem>>, vector<1x16x32xf32>,
    %216 = vector.extract_strided_slice %187 {offsets = [112, 0], sizes = [16, 32], strides = [1, 1]} : vector<192x32xf32> to vector<16x32xf32>
    %c0_198 = arith.constant 0 : index
    %c0_199 = arith.constant 0 : index
    %c224 = arith.constant 224 : index
    %217 = vector.load %arg5[%c0_198, %c0_199, %c224] : memref<1x16x384xf32, #tpu.memory_space<vmem>>, vector<1x16x32xf32>
    %218 = vector.shape_cast %217 : vector<1x16x32xf32> to vector<16x32xf32>
    %219 = vector.shape_cast %216 : vector<16x32xf32> to vector<1x16x32xf32>
    tpu.vector_store %arg5[%c0_198, %c0_199, %c224], %219 {strides = array<i32>} : memref<1x16x384xf32, #tpu.memory_space<vmem>>, vector<1x16x32xf32>,
    %220 = vector.extract_strided_slice %187 {offsets = [128, 0], sizes = [16, 32], strides = [1, 1]} : vector<192x32xf32> to vector<16x32xf32>
    %c0_200 = arith.constant 0 : index
    %c0_201 = arith.constant 0 : index
    %c256 = arith.constant 256 : index
    %221 = vector.load %arg5[%c0_200, %c0_201, %c256] : memref<1x16x384xf32, #tpu.memory_space<vmem>>, vector<1x16x32xf32>
    %222 = vector.shape_cast %221 : vector<1x16x32xf32> to vector<16x32xf32>
    %223 = vector.shape_cast %220 : vector<16x32xf32> to vector<1x16x32xf32>
    tpu.vector_store %arg5[%c0_200, %c0_201, %c256], %223 {strides = array<i32>} : memref<1x16x384xf32, #tpu.memory_space<vmem>>, vector<1x16x32xf32>,
    %224 = vector.extract_strided_slice %187 {offsets = [144, 0], sizes = [16, 32], strides = [1, 1]} : vector<192x32xf32> to vector<16x32xf32>
    %c0_202 = arith.constant 0 : index
    %c0_203 = arith.constant 0 : index
    %c288 = arith.constant 288 : index
    %225 = vector.load %arg5[%c0_202, %c0_203, %c288] : memref<1x16x384xf32, #tpu.memory_space<vmem>>, vector<1x16x32xf32>
    %226 = vector.shape_cast %225 : vector<1x16x32xf32> to vector<16x32xf32>
    %227 = vector.shape_cast %224 : vector<16x32xf32> to vector<1x16x32xf32>
    tpu.vector_store %arg5[%c0_202, %c0_203, %c288], %227 {strides = array<i32>} : memref<1x16x384xf32, #tpu.memory_space<vmem>>, vector<1x16x32xf32>,
    %228 = vector.extract_strided_slice %187 {offsets = [160, 0], sizes = [16, 32], strides = [1, 1]} : vector<192x32xf32> to vector<16x32xf32>
    %c0_204 = arith.constant 0 : index
    %c0_205 = arith.constant 0 : index
    %c320 = arith.constant 320 : index
    %229 = vector.load %arg5[%c0_204, %c0_205, %c320] : memref<1x16x384xf32, #tpu.memory_space<vmem>>, vector<1x16x32xf32>
    %230 = vector.shape_cast %229 : vector<1x16x32xf32> to vector<16x32xf32>
    %231 = vector.shape_cast %228 : vector<16x32xf32> to vector<1x16x32xf32>
    tpu.vector_store %arg5[%c0_204, %c0_205, %c320], %231 {strides = array<i32>} : memref<1x16x384xf32, #tpu.memory_space<vmem>>, vector<1x16x32xf32>,
    %232 = vector.extract_strided_slice %187 {offsets = [176, 0], sizes = [16, 32], strides = [1, 1]} : vector<192x32xf32> to vector<16x32xf32>
    %c0_206 = arith.constant 0 : index
    %c0_207 = arith.constant 0 : index
    %c352 = arith.constant 352 : index
    %233 = vector.load %arg5[%c0_206, %c0_207, %c352] : memref<1x16x384xf32, #tpu.memory_space<vmem>>, vector<1x16x32xf32>
    %234 = vector.shape_cast %233 : vector<1x16x32xf32> to vector<16x32xf32>
    %235 = vector.shape_cast %232 : vector<16x32xf32> to vector<1x16x32xf32>
    tpu.vector_store %arg5[%c0_206, %c0_207, %c352], %235 {strides = array<i32>} : memref<1x16x384xf32, #tpu.memory_space<vmem>>, vector<1x16x32xf32>,
    return
  }
  func.func @transform_0(%arg0: i32) -> (i32, i32, i32) {
    %c0_i32 = arith.constant 0 : i32
    %c0_i32_0 = arith.constant 0 : i32
    %c0_i32_1 = arith.constant 0 : i32
    return %arg0, %c0_i32, %c0_i32_0 : i32, i32, i32
  }
  func.func @transform_1(%arg0: i32) -> (i32, i32, i32) {
    %c0_i32 = arith.constant 0 : i32
    %c0_i32_0 = arith.constant 0 : i32
    %c0_i32_1 = arith.constant 0 : i32
    %c0_i32_2 = arith.constant 0 : i32
    return %c0_i32, %c0_i32_0, %c0_i32_1 : i32, i32, i32
  }
  func.func @transform_2(%arg0: i32) -> (i32, i32) {
    %c0_i32 = arith.constant 0 : i32
    %c0_i32_0 = arith.constant 0 : i32
    %c0_i32_1 = arith.constant 0 : i32
    return %c0_i32, %c0_i32_0 : i32, i32
  }
  func.func @transform_3(%arg0: i32) -> (i32, i32) {
    %c0_i32 = arith.constant 0 : i32
    %c0_i32_0 = arith.constant 0 : i32
    %c0_i32_1 = arith.constant 0 : i32
    return %c0_i32, %c0_i32_0 : i32, i32
  }
  func.func @transform_4(%arg0: i32) -> (i32, i32, i32) {
    %c0_i32 = arith.constant 0 : i32
    %c0_i32_0 = arith.constant 0 : i32
    %c0_i32_1 = arith.constant 0 : i32
    return %arg0, %c0_i32, %c0_i32_0 : i32, i32, i32
  }
}

</mosaic_0001>

<llo_original>
// kernel: multi_gcn_pallas.1
$region0: #{multi_gcn_pallas.1}
  #allocation0 [shape = 'u32[]', space=smem, size = 0x4, offset = 0x4, fixed_abs, tag = 'smem constant byte address 0x4 - core index']
  #allocation1 [shape = 'u32[144,128]{1,0:T(1,128)}', space=vmem, size = 0x12000, scoped, tag = 'internal scratch']
  #allocation2 [shape = 'f32[192,224]{1,0:T(8,128)}', space=vmem, size = 0x30000, scoped, tag = 'scratch operand']
  %s0 = inlined_call_operand.vmem [shape: f32[4,16,384], index: 0, kind: input, shape index: {}]
  %s1 = inlined_call_operand.vmem [shape: f32[3,16,16], index: 1, kind: input, shape index: {}]
  %s2 = inlined_call_operand.vmem [shape: f32[224,32], index: 2, kind: input, shape index: {}]
  %s3 = inlined_call_operand.vmem [shape: f32[1,32], index: 3, kind: input, shape index: {}]
  %s4 = inlined_call_operand.vmem [shape: f32[4,16,384], index: 4, kind: output, shape index: {}]
  %s5 = sld [smem:[#allocation0]]
  $region49: #{multi_gcn_pallas.1} parent=0
    _
  %s7 = ssub.s32 1, %s5
  %s8 = scalar_select 0, %s7, %s5
  loop: start=0, step=1, limit=6
  $region2: #{multi_gcn_pallas.1} parent=0 // loop_pre_header
    _
  $region3: #{multi_gcn_pallas.1} parent=0 // loop_header
    %s10 = sphi 0, %s14
    %p11 = scmp.ge.s32.totalorder %s10, 6
    %s20 = sphi 0, %s22
    %s23 = sphi 0, %s20
    %s24 = sphi 0, %s23
    %s40 = sphi 0, %s24
    %s44 = sphi 0, %s44
    %s46 = sphi 0, %s44
    %s47 = sphi 0, %s46
    %s61 = sphi 0, %s47
    %s65 = sphi 0, %s65
    %s67 = sphi 0, %s65
    %s68 = sphi 0, %s67
    %s82 = sphi 0, %s68
    %s86 = sphi 0, %s86
    %s88 = sphi 0, %s86
    %s89 = sphi 0, %s88
    %s103 = sphi 0, %s89
    %s109 = sphi 0, %s111
    %s112 = sphi 0, %s109
    %s113 = sphi 0, %s112
    %s129 = sphi 0, %s113
  $region4: #{multi_gcn_pallas.1} parent=0 // loop_header_branch
    %13 = sbr.rel (%p11) target = $region8
  $region5: #{multi_gcn_pallas.1} parent=0 // loop_body
    %s15 = ssub.s32 %s10, 1
    %s16 = ssub.s32 %s10, 2
    %s17 = sadd.s32 %s10, 1
    %s18 = ssub.s32 %s10, %s17
    %p19 = scmp.eq.s32.totalorder %s18, 0
    %s21 = sadd.s32 %s20, 1
    %s22 = scalar_select %p19, %s20, %s21
    %p25 = pneg %p19
    %p26 = scmp.eq.s32.totalorder %s10, 3
    %p27 = por %p25, %p26
    %p28 = scmp.ne.s32.totalorder %s20, %s23
    %p29 = scmp.eq.s32.totalorder %s10, 0
    %p30 = por %p28, %p29
    %p31 = scmp.ne.s32.totalorder %s20, %s23
    %p32 = scmp.eq.s32.totalorder %s15, 3
    %p33 = por %p31, %p32
    %p34 = scmp.ne.s32.totalorder %s23, %s24
    %p35 = scmp.eq.s32.totalorder %s15, 0
    %p36 = por %p34, %p35
    %p37 = scmp.ne.s32.totalorder %s23, %s24
    %p38 = scmp.eq.s32.totalorder %s16, 3
    %p39 = por %p37, %p38
    %p41 = scmp.ne.s32.totalorder %s24, %s40
    %p42 = scmp.eq.s32.totalorder %s16, 0
    %p43 = por %p41, %p42
    %s45 = sadd.s32 %s44, 1
    %p48 = scmp.eq.s32.totalorder %s10, 3
    %p49 = scmp.ne.s32.totalorder %s44, %s46
    %p50 = scmp.eq.s32.totalorder %s10, 0
    %p51 = por %p49, %p50
    %p52 = scmp.ne.s32.totalorder %s44, %s46
    %p53 = scmp.eq.s32.totalorder %s15, 3
    %p54 = por %p52, %p53
    %p55 = scmp.ne.s32.totalorder %s46, %s47
    %p56 = scmp.eq.s32.totalorder %s15, 0
    %p57 = por %p55, %p56
    %p58 = scmp.ne.s32.totalorder %s46, %s47
    %p59 = scmp.eq.s32.totalorder %s16, 3
    %p60 = por %p58, %p59
    %p62 = scmp.ne.s32.totalorder %s47, %s61
    %p63 = scmp.eq.s32.totalorder %s16, 0
    %p64 = por %p62, %p63
    %s66 = sadd.s32 %s65, 1
    %p69 = scmp.eq.s32.totalorder %s10, 3
    %p70 = scmp.ne.s32.totalorder %s65, %s67
    %p71 = scmp.eq.s32.totalorder %s10, 0
    %p72 = por %p70, %p71
    %p73 = scmp.ne.s32.totalorder %s65, %s67
    %p74 = scmp.eq.s32.totalorder %s15, 3
    %p75 = por %p73, %p74
    %p76 = scmp.ne.s32.totalorder %s67, %s68
    %p77 = scmp.eq.s32.totalorder %s15, 0
    %p78 = por %p76, %p77
    %p79 = scmp.ne.s32.totalorder %s67, %s68
    %p80 = scmp.eq.s32.totalorder %s16, 3
    %p81 = por %p79, %p80
    %p83 = scmp.ne.s32.totalorder %s68, %s82
    %p84 = scmp.eq.s32.totalorder %s16, 0
    %p85 = por %p83, %p84
    %s87 = sadd.s32 %s86, 1
    %p90 = scmp.eq.s32.totalorder %s10, 3
    %p91 = scmp.ne.s32.totalorder %s86, %s88
    %p92 = scmp.eq.s32.totalorder %s10, 0
    %p93 = por %p91, %p92
    %p94 = scmp.ne.s32.totalorder %s86, %s88
    %p95 = scmp.eq.s32.totalorder %s15, 3
    %p96 = por %p94, %p95
    %p97 = scmp.ne.s32.totalorder %s88, %s89
    %p98 = scmp.eq.s32.totalorder %s15, 0
    %p99 = por %p97, %p98
    %p100 = scmp.ne.s32.totalorder %s88, %s89
    %p101 = scmp.eq.s32.totalorder %s16, 3
    %p102 = por %p100, %p101
    %p104 = scmp.ne.s32.totalorder %s89, %s103
    %p105 = scmp.eq.s32.totalorder %s16, 0
    %p106 = por %p104, %p105
    %s107 = ssub.s32 %s10, %s17
    %p108 = scmp.eq.s32.totalorder %s107, 0
    %s110 = sadd.s32 %s109, 1
    %s111 = scalar_select %p108, %s109, %s110
    %p114 = pneg %p108
    %p115 = scmp.eq.s32.totalorder %s10, 3
    %p116 = por %p114, %p115
    %p117 = scmp.ne.s32.totalorder %s109, %s112
    %p118 = scmp.eq.s32.totalorder %s10, 0
    %p119 = por %p117, %p118
    %p120 = scmp.ne.s32.totalorder %s109, %s112
    %p121 = scmp.eq.s32.totalorder %s15, 3
    %p122 = por %p120, %p121
    %p123 = scmp.ne.s32.totalorder %s112, %s113
    %p124 = scmp.eq.s32.totalorder %s15, 0
    %p125 = por %p123, %p124
    %p126 = scmp.ne.s32.totalorder %s112, %s113
    %p127 = scmp.eq.s32.totalorder %s16, 3
    %p128 = por %p126, %p127
    %p130 = scmp.ne.s32.totalorder %s113, %s129
    %p131 = scmp.eq.s32.totalorder %s16, 0
    %p132 = por %p130, %p131
    %p133 = scmp.le.s32.totalorder 1, %s10
    %p134 = scmp.lt.s32.totalorder %s10, 5
    %p135 = pnand %p133, %p134
    %p136 = pneg %p135
    // Predicated region
    $region9: #{multi_gcn_pallas.1} parent=5 // pred_check
      _
    $region10: #{multi_gcn_pallas.1} parent=5 // pred_check_branch
      %138 = sbr.rel (%p135) target = $region12
    $region11: #{multi_gcn_pallas.1} parent=5 // pred_region
      %s139 = ssub.s32 %s10, 1
      // Predicated region
      $region13: #{multi_gcn_pallas.1} parent=11 // pred_check
        %p140 = pneg %p57
      $region14: #{multi_gcn_pallas.1} parent=11 // pred_check_branch
        %142 = sbr.rel (%p140) target = $region16
      $region15: #{multi_gcn_pallas.1} parent=11 // pred_region
        _
      $region16: #{multi_gcn_pallas.1} parent=11 // pred_fallthru
        _
      // Predicated region
      $region17: #{multi_gcn_pallas.1} parent=11 // pred_check
        %p143 = pneg %p78
      $region18: #{multi_gcn_pallas.1} parent=11 // pred_check_branch
        %145 = sbr.rel (%p143) target = $region20
      $region19: #{multi_gcn_pallas.1} parent=11 // pred_region
        _
      $region20: #{multi_gcn_pallas.1} parent=11 // pred_fallthru
        _
      // Predicated region
      $region21: #{multi_gcn_pallas.1} parent=11 // pred_check
        %p146 = pneg %p99
      $region22: #{multi_gcn_pallas.1} parent=11 // pred_check_branch
        %148 = sbr.rel (%p146) target = $region24
      $region23: #{multi_gcn_pallas.1} parent=11 // pred_region
        _
      $region24: #{multi_gcn_pallas.1} parent=11 // pred_fallthru
        _
    $region12: #{multi_gcn_pallas.1} parent=5 // pred_fallthru
      _
    %p149 = scmp.lt.s32.totalorder %s10, 4
    // Predicated region
    $region25: #{multi_gcn_pallas.1} parent=5 // pred_check
      %p150 = pneg %p149
    $region26: #{multi_gcn_pallas.1} parent=5 // pred_check_branch
      %152 = sbr.rel (%p150) target = $region28
    $region27: #{multi_gcn_pallas.1} parent=5 // pred_region
      // Predicated region
      $region29: #{multi_gcn_pallas.1} parent=27 // pred_check
        %p153 = pneg %p30
      $region30: #{multi_gcn_pallas.1} parent=27 // pred_check_branch
        %155 = sbr.rel (%p153) target = $region32
      $region31: #{multi_gcn_pallas.1} parent=27 // pred_region
        %p156 = scmp.lt.s32.totalorder %s10, 3
        %s157 = scalar_select %p156, %s10, 3
        %s158 = smul.addr %s157, 6
        %s159 = smul.addr %s158, 8
        %s160 = scalar_lea.vmem %s0, %s159
      $region32: #{multi_gcn_pallas.1} parent=27 // pred_fallthru
        _
    $region28: #{multi_gcn_pallas.1} parent=5 // pred_fallthru
      _
    %p161 = scmp.le.s32.totalorder 1, %s10
    %p162 = scmp.lt.s32.totalorder %s10, 5
    %p163 = pnand %p161, %p162
    %p164 = pneg %p163
    // Predicated region
    $region33: #{multi_gcn_pallas.1} parent=5 // pred_check
      _
    $region34: #{multi_gcn_pallas.1} parent=5 // pred_check_branch
      %166 = sbr.rel (%p163) target = $region36
    $region35: #{multi_gcn_pallas.1} parent=5 // pred_region
      %s167 = ssub.s32 %s10, 1
      %p168 = scmp.lt.s32.totalorder %s15, 3
      %s169 = scalar_select %p168, %s15, 3
      %s170 = smul.addr %s169, 6
      %s171 = smul.addr %s170, 8
      %s172 = scalar_lea.vmem %s0, %s171
      %p173 = pneg %p36
      %p174 = pneg %p33
      %p175 = pneg %p57
      %p176 = pneg %p54
      %p177 = pneg %p78
      %p178 = pneg %p75
      %p179 = pneg %p99
      %p180 = pneg %p96
      %p181 = pneg %p125
      %p182 = pneg %p122
      %p183 = scmp.lt.s32.totalorder %s15, 3
      %s184 = scalar_select %p183, %s15, 3
      %s185 = smul.addr %s184, 6
      %s186 = smul.addr %s185, 8
      %s187 = scalar_lea.vmem %s4, %s186
      %p188 = scmp.lt.s32.totalorder %s15, 3
      %s189 = scalar_select %p188, %s15, 3
      %s190 = smul.addr %s189, 6
      %s191 = smul.addr %s190, 8
      %s192 = scalar_lea.vmem %s0, %s191
      %p193 = scmp.lt.s32.totalorder %s15, 3
      %s194 = scalar_select %p193, %s15, 3
      %s195 = smul.addr %s194, 6
      %s196 = smul.addr %s195, 8
      %s197 = scalar_lea.vmem %s4, %s196
      %v198 = vld [vmem:[%s192] sm:$0xff]
      %v199 = vld [vmem:[%s192 + $0x8] sm:$0xff]
      %v200 = vld [vmem:[%s192 + $0x10] sm:$0xff]
      %v201 = vld [vmem:[%s192 + $0x18] sm:$0xff]
      %v202 = vld [vmem:[%s192 + $0x20] sm:$0xff]
      %v203 = vld [vmem:[%s192 + $0x28] sm:$0xff]
      %vm204 = vcmask 261120
      %205 = vst.msk [vmem:[#allocation2] sm:$0xff] %vm204, %v198
      %206 = vst.msk [vmem:[#allocation2 + $0x10] sm:$0xff] %vm204, %v201
      %209 = vrot.lane.b32.xlu0 %v198, 96
      %v210 = vpop.permute.xlu0 %209
      %211 = vrot.lane.b32.xlu0 %v201, 96
      %v212 = vpop.permute.xlu0 %211
      %215 = vst.msk [vmem:[#allocation2 + $0x20] sm:$0xff] %vm204, %v210
      %216 = vst.msk [vmem:[#allocation2 + $0x30] sm:$0xff] %vm204, %v212
      %217 = vrot.lane.b32.xlu0 %v198, 64
      %v218 = vpop.permute.xlu0 %217
      %219 = vrot.lane.b32.xlu0 %v201, 64
      %v220 = vpop.permute.xlu0 %219
      %223 = vst.msk [vmem:[#allocation2 + $0x40] sm:$0xff] %vm204, %v218
      %224 = vst.msk [vmem:[#allocation2 + $0x50] sm:$0xff] %vm204, %v220
      %225 = vrot.lane.b32.xlu0 %v198, 32
      %v226 = vpop.permute.xlu0 %225
      %227 = vrot.lane.b32.xlu0 %v201, 32
      %v228 = vpop.permute.xlu0 %227
      %231 = vst.msk [vmem:[#allocation2 + $0x60] sm:$0xff] %vm204, %v226
      %232 = vst.msk [vmem:[#allocation2 + $0x70] sm:$0xff] %vm204, %v228
      %233 = vst.msk [vmem:[#allocation2 + $0x80] sm:$0xff] %vm204, %v199
      %234 = vst.msk [vmem:[#allocation2 + $0x90] sm:$0xff] %vm204, %v202
      %237 = vrot.lane.b32.xlu0 %v199, 96
      %v238 = vpop.permute.xlu0 %237
      %239 = vrot.lane.b32.xlu0 %v202, 96
      %v240 = vpop.permute.xlu0 %239
      %243 = vst.msk [vmem:[#allocation2 + $0xa0] sm:$0xff] %vm204, %v238
      %244 = vst.msk [vmem:[#allocation2 + $0xb0] sm:$0xff] %vm204, %v240
      %245 = vrot.lane.b32.xlu0 %v199, 64
      %v246 = vpop.permute.xlu0 %245
      %247 = vrot.lane.b32.xlu0 %v202, 64
      %v248 = vpop.permute.xlu0 %247
      %251 = vst.msk [vmem:[#allocation2 + $0xc0] sm:$0xff] %vm204, %v246
      %252 = vst.msk [vmem:[#allocation2 + $0xd0] sm:$0xff] %vm204, %v248
      %253 = vrot.lane.b32.xlu0 %v199, 32
      %v254 = vpop.permute.xlu0 %253
      %255 = vrot.lane.b32.xlu0 %v202, 32
      %v256 = vpop.permute.xlu0 %255
      %259 = vst.msk [vmem:[#allocation2 + $0xe0] sm:$0xff] %vm204, %v254
      %260 = vst.msk [vmem:[#allocation2 + $0xf0] sm:$0xff] %vm204, %v256
      %261 = vst.msk [vmem:[#allocation2 + $0x100] sm:$0xff] %vm204, %v200
      %262 = vst.msk [vmem:[#allocation2 + $0x110] sm:$0xff] %vm204, %v203
      %265 = vrot.lane.b32.xlu0 %v200, 96
      %v266 = vpop.permute.xlu0 %265
      %267 = vrot.lane.b32.xlu0 %v203, 96
      %v268 = vpop.permute.xlu0 %267
      %271 = vst.msk [vmem:[#allocation2 + $0x120] sm:$0xff] %vm204, %v266
      %272 = vst.msk [vmem:[#allocation2 + $0x130] sm:$0xff] %vm204, %v268
      %273 = vrot.lane.b32.xlu0 %v200, 64
      %v274 = vpop.permute.xlu0 %273
      %275 = vrot.lane.b32.xlu0 %v203, 64
      %v276 = vpop.permute.xlu0 %275
      %279 = vst.msk [vmem:[#allocation2 + $0x140] sm:$0xff] %vm204, %v274
      %280 = vst.msk [vmem:[#allocation2 + $0x150] sm:$0xff] %vm204, %v276
      %281 = vrot.lane.b32.xlu0 %v200, 32
      %v282 = vpop.permute.xlu0 %281
      %283 = vrot.lane.b32.xlu0 %v203, 32
      %v284 = vpop.permute.xlu0 %283
      %287 = vst.msk [vmem:[#allocation2 + $0x160] sm:$0xff] %vm204, %v282
      %288 = vst.msk [vmem:[#allocation2 + $0x170] sm:$0xff] %vm204, %v284
      %v289 = vld [vmem:[%s1] sm:$0xff]
      %v290 = vld [vmem:[%s1 + $0x8] sm:$0xff]
      %vm291 = vcmask 130048
      %v293 = vsel %vm291, %v289, 0
      %v296 = vsel %vm291, %v290, 0
      %298 = vmatprep.subr.mxu0 %v199
      %299 = vmatpush1.msra.mxu0 %v198
      %300 = vmatprep.subr.mxu0 %v202
      %301 = vmatpush1.msra.mxu0 %v201
      %302 = vmatprep.subr.mxu0 0.0
      %303 = vmatpush1.msra.mxu0 0.0
      %304 = vmatprep.subr.mxu0 0.0
      %305 = vmatpush1.msra.mxu0 0.0
      %306 = vmatprep.subr.mxu0 0.0
      %307 = vmatpush1.msra.mxu0 0.0
      %308 = vmatprep.subr.mxu0 0.0
      %309 = vmatpush1.msra.mxu0 0.0
      %310 = vmatprep.subr.mxu0 0.0
      %311 = vmatpush1.msra.mxu0 0.0
      %312 = vmatprep.subr.mxu0 0.0
      %313 = vmatpush1.msra.mxu0 0.0
      %314 = vmatprep.subr.mxu0 0.0
      %315 = vmatpush1.msra.mxu0 0.0
      %316 = vmatprep.subr.mxu0 0.0
      %317 = vmatpush1.msra.mxu0 0.0
      %318 = vmatprep.subr.mxu0 0.0
      %319 = vmatpush1.msra.mxu0 0.0
      %320 = vmatprep.subr.mxu0 0.0
      %321 = vmatpush1.msra.mxu0 0.0
      %322 = vmatprep.subr.mxu0 0.0
      %323 = vmatpush1.msra.mxu0 0.0
      %324 = vmatprep.subr.mxu0 0.0
      %325 = vmatpush1.msra.mxu0 0.0
      %326 = vmatprep.subr.mxu0 0.0
      %327 = vmatpush1.msra.mxu0 0.0
      %328 = vmatprep.subr.mxu0 0.0
      %329 = vmatpush1.msra.mxu0 0.0
      %330 = vmatprep.subr.mxu0 0.0
      %331 = vmatpush1.msra.mxu0 0.0
      %332 = vmatprep.subr.mxu0 0.0
      %333 = vmatpush1.msra.mxu0 0.0
      %334 = vmatprep.subr.mxu0 0.0
      %335 = vmatpush1.msra.mxu0 0.0
      %336 = vmatprep.subr.mxu0 0.0
      %337 = vmatpush1.msra.mxu0 0.0
      %338 = vmatprep.subr.mxu0 0.0
      %339 = vmatpush1.msra.mxu0 0.0
      %340 = vmatprep.subr.mxu0 0.0
      %341 = vmatpush1.msra.mxu0 0.0
      %342 = vmatprep.subr.mxu0 0.0
      %343 = vmatpush1.msra.mxu0 0.0
      %344 = vmatprep.subr.mxu0 0.0
      %345 = vmatpush1.msra.mxu0 0.0
      %346 = vmatprep.subr.mxu0 0.0
      %347 = vmatpush1.msra.mxu0 0.0
      %348 = vmatprep.subr.mxu0 0.0
      %349 = vmatpush1.msra.mxu0 0.0
      %350 = vmatprep.subr.mxu0 0.0
      %351 = vmatpush1.msra.mxu0 0.0
      %352 = vmatprep.subr.mxu0 0.0
      %353 = vmatpush1.msra.mxu0 0.0
      %354 = vmatprep.subr.mxu0 0.0
      %355 = vmatpush1.msra.mxu0 0.0
      %356 = vmatprep.subr.mxu0 0.0
      %357 = vmatpush1.msra.mxu0 0.0
      %358 = vmatprep.subr.mxu0 0.0
      %359 = vmatpush1.msra.mxu0 0.0
      %360 = vmatprep.subr.mxu0 0.0
      %361 = vmatpush1.msra.mxu0 0.0
      %362 = vmatprep.mubr.f32.mxu0 0.0
      %363 = vmatmul.mubr.f32.gmra.mrb[0].mxu0 %v293
      %v364 = vpop.f32.mrb[0].mxu0
      %v365 = vadd.f32 0.0, %v364
      %v366 = vpop.f32.mrb[0].mxu0
      %v367 = vadd.f32 0.0, %v366
      %368 = vmatprep.mubr.f32.mxu0 0.0
      %369 = vmatmul.mubr.f32.gmra.mrb[0].mxu0 %v296
      %v370 = vpop.f32.mrb[0].mxu0
      %v371 = vadd.f32 0.0, %v370
      %v372 = vpop.f32.mrb[0].mxu0
      %v373 = vadd.f32 0.0, %v372
      %374 = vdwg.mxu0
      %375 = vmatprep.subr.mxu0 0.0
      %376 = vmatpush1.msra.mxu0 %v200
      %377 = vmatprep.subr.mxu0 0.0
      %378 = vmatpush1.msra.mxu0 %v203
      %379 = vmatprep.subr.mxu0 0.0
      %380 = vmatpush1.msra.mxu0 0.0
      %381 = vmatprep.subr.mxu0 0.0
      %382 = vmatpush1.msra.mxu0 0.0
      %383 = vmatprep.subr.mxu0 0.0
      %384 = vmatpush1.msra.mxu0 0.0
      %385 = vmatprep.subr.mxu0 0.0
      %386 = vmatpush1.msra.mxu0 0.0
      %387 = vmatprep.subr.mxu0 0.0
      %388 = vmatpush1.msra.mxu0 0.0
      %389 = vmatprep.subr.mxu0 0.0
      %390 = vmatpush1.msra.mxu0 0.0
      %391 = vmatprep.subr.mxu0 0.0
      %392 = vmatpush1.msra.mxu0 0.0
      %393 = vmatprep.subr.mxu0 0.0
      %394 = vmatpush1.msra.mxu0 0.0
      %395 = vmatprep.subr.mxu0 0.0
      %396 = vmatpush1.msra.mxu0 0.0
      %397 = vmatprep.subr.mxu0 0.0
      %398 = vmatpush1.msra.mxu0 0.0
      %399 = vmatprep.subr.mxu0 0.0
      %400 = vmatpush1.msra.mxu0 0.0
      %401 = vmatprep.subr.mxu0 0.0
      %402 = vmatpush1.msra.mxu0 0.0
      %403 = vmatprep.subr.mxu0 0.0
      %404 = vmatpush1.msra.mxu0 0.0
      %405 = vmatprep.subr.mxu0 0.0
      %406 = vmatpush1.msra.mxu0 0.0
      %407 = vmatprep.subr.mxu0 0.0
      %408 = vmatpush1.msra.mxu0 0.0
      %409 = vmatprep.subr.mxu0 0.0
      %410 = vmatpush1.msra.mxu0 0.0
      %411 = vmatprep.subr.mxu0 0.0
      %412 = vmatpush1.msra.mxu0 0.0
      %413 = vmatprep.subr.mxu0 0.0
      %414 = vmatpush1.msra.mxu0 0.0
      %415 = vmatprep.subr.mxu0 0.0
      %416 = vmatpush1.msra.mxu0 0.0
      %417 = vmatprep.subr.mxu0 0.0
      %418 = vmatpush1.msra.mxu0 0.0
      %419 = vmatprep.subr.mxu0 0.0
      %420 = vmatpush1.msra.mxu0 0.0
      %421 = vmatprep.subr.mxu0 0.0
      %422 = vmatpush1.msra.mxu0 0.0
      %423 = vmatprep.subr.mxu0 0.0
      %424 = vmatpush1.msra.mxu0 0.0
      %425 = vmatprep.subr.mxu0 0.0
      %426 = vmatpush1.msra.mxu0 0.0
      %427 = vmatprep.subr.mxu0 0.0
      %428 = vmatpush1.msra.mxu0 0.0
      %429 = vmatprep.subr.mxu0 0.0
      %430 = vmatpush1.msra.mxu0 0.0
      %431 = vmatprep.subr.mxu0 0.0
      %432 = vmatpush1.msra.mxu0 0.0
      %433 = vmatprep.subr.mxu0 0.0
      %434 = vmatpush1.msra.mxu0 0.0
      %435 = vmatprep.subr.mxu0 0.0
      %436 = vmatpush1.msra.mxu0 0.0
      %437 = vmatprep.subr.mxu0 0.0
      %438 = vmatpush1.msra.mxu0 0.0
      %439 = vmatprep.mubr.f32.mxu0 0.0
      %440 = vmatmul.mubr.f32.gmra.mrb[0].mxu0 %v293
      %v441 = vpop.f32.mrb[0].mxu0
      %v442 = vadd.f32 0.0, %v441
      %v443 = vpop.f32.mrb[0].mxu0
      %444 = vmatprep.mubr.f32.mxu0 0.0
      %445 = vmatmul.mubr.f32.gmra.mrb[0].mxu0 %v296
      %v446 = vpop.f32.mrb[0].mxu0
      %v447 = vadd.f32 0.0, %v446
      %v448 = vpop.f32.mrb[0].mxu0
      %449 = vdwg.mxu0
      %452 = vrot.lane.b32.xlu0 %v365, 32
      %v453 = vpop.permute.xlu0 %452
      %454 = vrot.lane.b32.xlu0 %v371, 32
      %v455 = vpop.permute.xlu0 %454
      %vm458 = vcmask 523520
      %459 = vst.msk [vmem:[#allocation2] sm:$0xff] %vm458, %v453
      %460 = vst.msk [vmem:[#allocation2 + $0x10] sm:$0xff] %vm458, %v455
      %461 = vst.msk [vmem:[#allocation2 + $0x20] sm:$0xff] %vm458, %v365
      %462 = vst.msk [vmem:[#allocation2 + $0x30] sm:$0xff] %vm458, %v371
      %463 = vrot.lane.b32.xlu0 %v365, 96
      %v464 = vpop.permute.xlu0 %463
      %465 = vrot.lane.b32.xlu0 %v371, 96
      %v466 = vpop.permute.xlu0 %465
      %469 = vst.msk [vmem:[#allocation2 + $0x40] sm:$0xff] %vm458, %v464
      %470 = vst.msk [vmem:[#allocation2 + $0x50] sm:$0xff] %vm458, %v466
      %471 = vrot.lane.b32.xlu0 %v365, 64
      %v472 = vpop.permute.xlu0 %471
      %473 = vrot.lane.b32.xlu0 %v371, 64
      %v474 = vpop.permute.xlu0 %473
      %477 = vst.msk [vmem:[#allocation2 + $0x60] sm:$0xff] %vm458, %v472
      %478 = vst.msk [vmem:[#allocation2 + $0x70] sm:$0xff] %vm458, %v474
      %481 = vrot.lane.b32.xlu0 %v367, 32
      %v482 = vpop.permute.xlu0 %481
      %483 = vrot.lane.b32.xlu0 %v373, 32
      %v484 = vpop.permute.xlu0 %483
      %487 = vst.msk [vmem:[#allocation2 + $0x80] sm:$0xff] %vm458, %v482
      %488 = vst.msk [vmem:[#allocation2 + $0x90] sm:$0xff] %vm458, %v484
      %489 = vst.msk [vmem:[#allocation2 + $0xa0] sm:$0xff] %vm458, %v367
      %490 = vst.msk [vmem:[#allocation2 + $0xb0] sm:$0xff] %vm458, %v373
      %491 = vrot.lane.b32.xlu0 %v367, 96
      %v492 = vpop.permute.xlu0 %491
      %493 = vrot.lane.b32.xlu0 %v373, 96
      %v494 = vpop.permute.xlu0 %493
      %497 = vst.msk [vmem:[#allocation2 + $0xc0] sm:$0xff] %vm458, %v492
      %498 = vst.msk [vmem:[#allocation2 + $0xd0] sm:$0xff] %vm458, %v494
      %499 = vrot.lane.b32.xlu0 %v367, 64
      %v500 = vpop.permute.xlu0 %499
      %501 = vrot.lane.b32.xlu0 %v373, 64
      %v502 = vpop.permute.xlu0 %501
      %505 = vst.msk [vmem:[#allocation2 + $0xe0] sm:$0xff] %vm458, %v500
      %506 = vst.msk [vmem:[#allocation2 + $0xf0] sm:$0xff] %vm458, %v502
      %509 = vrot.lane.b32.xlu0 %v442, 32
      %v510 = vpop.permute.xlu0 %509
      %511 = vrot.lane.b32.xlu0 %v447, 32
      %v512 = vpop.permute.xlu0 %511
      %515 = vst.msk [vmem:[#allocation2 + $0x100] sm:$0xff] %vm458, %v510
      %516 = vst.msk [vmem:[#allocation2 + $0x110] sm:$0xff] %vm458, %v512
      %517 = vst.msk [vmem:[#allocation2 + $0x120] sm:$0xff] %vm458, %v442
      %518 = vst.msk [vmem:[#allocation2 + $0x130] sm:$0xff] %vm458, %v447
      %519 = vrot.lane.b32.xlu0 %v442, 96
      %v520 = vpop.permute.xlu0 %519
      %521 = vrot.lane.b32.xlu0 %v447, 96
      %v522 = vpop.permute.xlu0 %521
      %525 = vst.msk [vmem:[#allocation2 + $0x140] sm:$0xff] %vm458, %v520
      %526 = vst.msk [vmem:[#allocation2 + $0x150] sm:$0xff] %vm458, %v522
      %527 = vrot.lane.b32.xlu0 %v442, 64
      %v528 = vpop.permute.xlu0 %527
      %529 = vrot.lane.b32.xlu0 %v447, 64
      %v530 = vpop.permute.xlu0 %529
      %533 = vst.msk [vmem:[#allocation2 + $0x160] sm:$0xff] %vm458, %v528
      %534 = vst.msk [vmem:[#allocation2 + $0x170] sm:$0xff] %vm458, %v530
      %535 = vmatprep.subr.mxu0 %v367
      %536 = vmatpush1.msra.mxu0 %v365
      %537 = vmatprep.subr.mxu0 %v373
      %538 = vmatpush1.msra.mxu0 %v371
      %539 = vmatprep.subr.mxu0 0.0
      %540 = vmatpush1.msra.mxu0 0.0
      %541 = vmatprep.subr.mxu0 0.0
      %542 = vmatpush1.msra.mxu0 0.0
      %543 = vmatprep.subr.mxu0 0.0
      %544 = vmatpush1.msra.mxu0 0.0
      %545 = vmatprep.subr.mxu0 0.0
      %546 = vmatpush1.msra.mxu0 0.0
      %547 = vmatprep.subr.mxu0 0.0
      %548 = vmatpush1.msra.mxu0 0.0
      %549 = vmatprep.subr.mxu0 0.0
      %550 = vmatpush1.msra.mxu0 0.0
      %551 = vmatprep.subr.mxu0 0.0
      %552 = vmatpush1.msra.mxu0 0.0
      %553 = vmatprep.subr.mxu0 0.0
      %554 = vmatpush1.msra.mxu0 0.0
      %555 = vmatprep.subr.mxu0 0.0
      %556 = vmatpush1.msra.mxu0 0.0
      %557 = vmatprep.subr.mxu0 0.0
      %558 = vmatpush1.msra.mxu0 0.0
      %559 = vmatprep.subr.mxu0 0.0
      %560 = vmatpush1.msra.mxu0 0.0
      %561 = vmatprep.subr.mxu0 0.0
      %562 = vmatpush1.msra.mxu0 0.0
      %563 = vmatprep.subr.mxu0 0.0
      %564 = vmatpush1.msra.mxu0 0.0
      %565 = vmatprep.subr.mxu0 0.0
      %566 = vmatpush1.msra.mxu0 0.0
      %567 = vmatprep.subr.mxu0 0.0
      %568 = vmatpush1.msra.mxu0 0.0
      %569 = vmatprep.subr.mxu0 0.0
      %570 = vmatpush1.msra.mxu0 0.0
      %571 = vmatprep.subr.mxu0 0.0
      %572 = vmatpush1.msra.mxu0 0.0
      %573 = vmatprep.subr.mxu0 0.0
      %574 = vmatpush1.msra.mxu0 0.0
      %575 = vmatprep.subr.mxu0 0.0
      %576 = vmatpush1.msra.mxu0 0.0
      %577 = vmatprep.subr.mxu0 0.0
      %578 = vmatpush1.msra.mxu0 0.0
      %579 = vmatprep.subr.mxu0 0.0
      %580 = vmatpush1.msra.mxu0 0.0
      %581 = vmatprep.subr.mxu0 0.0
      %582 = vmatpush1.msra.mxu0 0.0
      %583 = vmatprep.subr.mxu0 0.0
      %584 = vmatpush1.msra.mxu0 0.0
      %585 = vmatprep.subr.mxu0 0.0
      %586 = vmatpush1.msra.mxu0 0.0
      %587 = vmatprep.subr.mxu0 0.0
      %588 = vmatpush1.msra.mxu0 0.0
      %589 = vmatprep.subr.mxu0 0.0
      %590 = vmatpush1.msra.mxu0 0.0
      %591 = vmatprep.subr.mxu0 0.0
      %592 = vmatpush1.msra.mxu0 0.0
      %593 = vmatprep.subr.mxu0 0.0
      %594 = vmatpush1.msra.mxu0 0.0
      %595 = vmatprep.subr.mxu0 0.0
      %596 = vmatpush1.msra.mxu0 0.0
      %597 = vmatprep.subr.mxu0 0.0
      %598 = vmatpush1.msra.mxu0 0.0
      %599 = vmatprep.mubr.f32.mxu0 0.0
      %600 = vmatmul.mubr.f32.gmra.mrb[0].mxu0 %v293
      %v601 = vpop.f32.mrb[0].mxu0
      %v602 = vadd.f32 0.0, %v601
      %v603 = vpop.f32.mrb[0].mxu0
      %v604 = vadd.f32 0.0, %v603
      %605 = vmatprep.mubr.f32.mxu0 0.0
      %606 = vmatmul.mubr.f32.gmra.mrb[0].mxu0 %v296
      %v607 = vpop.f32.mrb[0].mxu0
      %v608 = vadd.f32 0.0, %v607
      %v609 = vpop.f32.mrb[0].mxu0
      %v610 = vadd.f32 0.0, %v609
      %611 = vdwg.mxu0
      %612 = vmatprep.subr.mxu0 0.0
      %613 = vmatpush1.msra.mxu0 %v442
      %614 = vmatprep.subr.mxu0 0.0
      %615 = vmatpush1.msra.mxu0 %v447
      %616 = vmatprep.subr.mxu0 0.0
      %617 = vmatpush1.msra.mxu0 0.0
      %618 = vmatprep.subr.mxu0 0.0
      %619 = vmatpush1.msra.mxu0 0.0
      %620 = vmatprep.subr.mxu0 0.0
      %621 = vmatpush1.msra.mxu0 0.0
      %622 = vmatprep.subr.mxu0 0.0
      %623 = vmatpush1.msra.mxu0 0.0
      %624 = vmatprep.subr.mxu0 0.0
      %625 = vmatpush1.msra.mxu0 0.0
      %626 = vmatprep.subr.mxu0 0.0
      %627 = vmatpush1.msra.mxu0 0.0
      %628 = vmatprep.subr.mxu0 0.0
      %629 = vmatpush1.msra.mxu0 0.0
      %630 = vmatprep.subr.mxu0 0.0
      %631 = vmatpush1.msra.mxu0 0.0
      %632 = vmatprep.subr.mxu0 0.0
      %633 = vmatpush1.msra.mxu0 0.0
      %634 = vmatprep.subr.mxu0 0.0
      %635 = vmatpush1.msra.mxu0 0.0
      %636 = vmatprep.subr.mxu0 0.0
      %637 = vmatpush1.msra.mxu0 0.0
      %638 = vmatprep.subr.mxu0 0.0
      %639 = vmatpush1.msra.mxu0 0.0
      %640 = vmatprep.subr.mxu0 0.0
      %641 = vmatpush1.msra.mxu0 0.0
      %642 = vmatprep.subr.mxu0 0.0
      %643 = vmatpush1.msra.mxu0 0.0
      %644 = vmatprep.subr.mxu0 0.0
      %645 = vmatpush1.msra.mxu0 0.0
      %646 = vmatprep.subr.mxu0 0.0
      %647 = vmatpush1.msra.mxu0 0.0
      %648 = vmatprep.subr.mxu0 0.0
      %649 = vmatpush1.msra.mxu0 0.0
      %650 = vmatprep.subr.mxu0 0.0
      %651 = vmatpush1.msra.mxu0 0.0
      %652 = vmatprep.subr.mxu0 0.0
      %653 = vmatpush1.msra.mxu0 0.0
      %654 = vmatprep.subr.mxu0 0.0
      %655 = vmatpush1.msra.mxu0 0.0
      %656 = vmatprep.subr.mxu0 0.0
      %657 = vmatpush1.msra.mxu0 0.0
      %658 = vmatprep.subr.mxu0 0.0
      %659 = vmatpush1.msra.mxu0 0.0
      %660 = vmatprep.subr.mxu0 0.0
      %661 = vmatpush1.msra.mxu0 0.0
      %662 = vmatprep.subr.mxu0 0.0
      %663 = vmatpush1.msra.mxu0 0.0
      %664 = vmatprep.subr.mxu0 0.0
      %665 = vmatpush1.msra.mxu0 0.0
      %666 = vmatprep.subr.mxu0 0.0
      %667 = vmatpush1.msra.mxu0 0.0
      %668 = vmatprep.subr.mxu0 0.0
      %669 = vmatpush1.msra.mxu0 0.0
      %670 = vmatprep.subr.mxu0 0.0
      %671 = vmatpush1.msra.mxu0 0.0
      %672 = vmatprep.subr.mxu0 0.0
      %673 = vmatpush1.msra.mxu0 0.0
      %674 = vmatprep.subr.mxu0 0.0
      %675 = vmatpush1.msra.mxu0 0.0
      %676 = vmatprep.mubr.f32.mxu0 0.0
      %677 = vmatmul.mubr.f32.gmra.mrb[0].mxu0 %v293
      %v678 = vpop.f32.mrb[0].mxu0
      %v679 = vadd.f32 0.0, %v678
      %v680 = vpop.f32.mrb[0].mxu0
      %681 = vmatprep.mubr.f32.mxu0 0.0
      %682 = vmatmul.mubr.f32.gmra.mrb[0].mxu0 %v296
      %v683 = vpop.f32.mrb[0].mxu0
      %v684 = vadd.f32 0.0, %v683
      %v685 = vpop.f32.mrb[0].mxu0
      %686 = vdwg.mxu0
      %689 = vrot.lane.b32.xlu0 %v602, 64
      %v690 = vpop.permute.xlu0 %689
      %691 = vrot.lane.b32.xlu0 %v608, 64
      %v692 = vpop.permute.xlu0 %691
      %vm695 = vcmask 785920
      %696 = vst.msk [vmem:[#allocation2] sm:$0xff] %vm695, %v690
      %697 = vst.msk [vmem:[#allocation2 + $0x10] sm:$0xff] %vm695, %v692
      %698 = vrot.lane.b32.xlu0 %v602, 32
      %v699 = vpop.permute.xlu0 %698
      %700 = vrot.lane.b32.xlu0 %v608, 32
      %v701 = vpop.permute.xlu0 %700
      %704 = vst.msk [vmem:[#allocation2 + $0x20] sm:$0xff] %vm695, %v699
      %705 = vst.msk [vmem:[#allocation2 + $0x30] sm:$0xff] %vm695, %v701
      %706 = vst.msk [vmem:[#allocation2 + $0x40] sm:$0xff] %vm695, %v602
      %707 = vst.msk [vmem:[#allocation2 + $0x50] sm:$0xff] %vm695, %v608
      %708 = vrot.lane.b32.xlu0 %v602, 96
      %v709 = vpop.permute.xlu0 %708
      %710 = vrot.lane.b32.xlu0 %v608, 96
      %v711 = vpop.permute.xlu0 %710
      %714 = vst.msk [vmem:[#allocation2 + $0x60] sm:$0xff] %vm695, %v709
      %715 = vst.msk [vmem:[#allocation2 + $0x70] sm:$0xff] %vm695, %v711
      %718 = vrot.lane.b32.xlu0 %v604, 64
      %v719 = vpop.permute.xlu0 %718
      %720 = vrot.lane.b32.xlu0 %v610, 64
      %v721 = vpop.permute.xlu0 %720
      %724 = vst.msk [vmem:[#allocation2 + $0x80] sm:$0xff] %vm695, %v719
      %725 = vst.msk [vmem:[#allocation2 + $0x90] sm:$0xff] %vm695, %v721
      %726 = vrot.lane.b32.xlu0 %v604, 32
      %v727 = vpop.permute.xlu0 %726
      %728 = vrot.lane.b32.xlu0 %v610, 32
      %v729 = vpop.permute.xlu0 %728
      %732 = vst.msk [vmem:[#allocation2 + $0xa0] sm:$0xff] %vm695, %v727
      %733 = vst.msk [vmem:[#allocation2 + $0xb0] sm:$0xff] %vm695, %v729
      %734 = vst.msk [vmem:[#allocation2 + $0xc0] sm:$0xff] %vm695, %v604
      %735 = vst.msk [vmem:[#allocation2 + $0xd0] sm:$0xff] %vm695, %v610
      %736 = vrot.lane.b32.xlu0 %v604, 96
      %v737 = vpop.permute.xlu0 %736
      %738 = vrot.lane.b32.xlu0 %v610, 96
      %v739 = vpop.permute.xlu0 %738
      %742 = vst.msk [vmem:[#allocation2 + $0xe0] sm:$0xff] %vm695, %v737
      %743 = vst.msk [vmem:[#allocation2 + $0xf0] sm:$0xff] %vm695, %v739
      %746 = vrot.lane.b32.xlu0 %v679, 64
      %v747 = vpop.permute.xlu0 %746
      %748 = vrot.lane.b32.xlu0 %v684, 64
      %v749 = vpop.permute.xlu0 %748
      %752 = vst.msk [vmem:[#allocation2 + $0x100] sm:$0xff] %vm695, %v747
      %753 = vst.msk [vmem:[#allocation2 + $0x110] sm:$0xff] %vm695, %v749
      %754 = vrot.lane.b32.xlu0 %v679, 32
      %v755 = vpop.permute.xlu0 %754
      %756 = vrot.lane.b32.xlu0 %v684, 32
      %v757 = vpop.permute.xlu0 %756
      %760 = vst.msk [vmem:[#allocation2 + $0x120] sm:$0xff] %vm695, %v755
      %761 = vst.msk [vmem:[#allocation2 + $0x130] sm:$0xff] %vm695, %v757
      %762 = vst.msk [vmem:[#allocation2 + $0x140] sm:$0xff] %vm695, %v679
      %763 = vst.msk [vmem:[#allocation2 + $0x150] sm:$0xff] %vm695, %v684
      %764 = vrot.lane.b32.xlu0 %v679, 96
      %v765 = vpop.permute.xlu0 %764
      %766 = vrot.lane.b32.xlu0 %v684, 96
      %v767 = vpop.permute.xlu0 %766
      %770 = vst.msk [vmem:[#allocation2 + $0x160] sm:$0xff] %vm695, %v765
      %771 = vst.msk [vmem:[#allocation2 + $0x170] sm:$0xff] %vm695, %v767
      %s772 = scalar_lea.vmem %s1, 16
      %v773 = vld [vmem:[%s772] sm:$0xff]
      %v774 = vld [vmem:[%s772 + $0x8] sm:$0xff]
      %v776 = vsel %vm291, %v773, 0
      %v779 = vsel %vm291, %v774, 0
      %781 = vmatprep.subr.mxu0 %v199
      %782 = vmatpush1.msra.mxu0 %v198
      %783 = vmatprep.subr.mxu0 %v202
      %784 = vmatpush1.msra.mxu0 %v201
      %785 = vmatprep.subr.mxu0 0.0
      %786 = vmatpush1.msra.mxu0 0.0
      %787 = vmatprep.subr.mxu0 0.0
      %788 = vmatpush1.msra.mxu0 0.0
      %789 = vmatprep.subr.mxu0 0.0
      %790 = vmatpush1.msra.mxu0 0.0
      %791 = vmatprep.subr.mxu0 0.0
      %792 = vmatpush1.msra.mxu0 0.0
      %793 = vmatprep.subr.mxu0 0.0
      %794 = vmatpush1.msra.mxu0 0.0
      %795 = vmatprep.subr.mxu0 0.0
      %796 = vmatpush1.msra.mxu0 0.0
      %797 = vmatprep.subr.mxu0 0.0
      %798 = vmatpush1.msra.mxu0 0.0
      %799 = vmatprep.subr.mxu0 0.0
      %800 = vmatpush1.msra.mxu0 0.0
      %801 = vmatprep.subr.mxu0 0.0
      %802 = vmatpush1.msra.mxu0 0.0
      %803 = vmatprep.subr.mxu0 0.0
      %804 = vmatpush1.msra.mxu0 0.0
      %805 = vmatprep.subr.mxu0 0.0
      %806 = vmatpush1.msra.mxu0 0.0
      %807 = vmatprep.subr.mxu0 0.0
      %808 = vmatpush1.msra.mxu0 0.0
      %809 = vmatprep.subr.mxu0 0.0
      %810 = vmatpush1.msra.mxu0 0.0
      %811 = vmatprep.subr.mxu0 0.0
      %812 = vmatpush1.msra.mxu0 0.0
      %813 = vmatprep.subr.mxu0 0.0
      %814 = vmatpush1.msra.mxu0 0.0
      %815 = vmatprep.subr.mxu0 0.0
      %816 = vmatpush1.msra.mxu0 0.0
      %817 = vmatprep.subr.mxu0 0.0
      %818 = vmatpush1.msra.mxu0 0.0
      %819 = vmatprep.subr.mxu0 0.0
      %820 = vmatpush1.msra.mxu0 0.0
      %821 = vmatprep.subr.mxu0 0.0
      %822 = vmatpush1.msra.mxu0 0.0
      %823 = vmatprep.subr.mxu0 0.0
      %824 = vmatpush1.msra.mxu0 0.0
      %825 = vmatprep.subr.mxu0 0.0
      %826 = vmatpush1.msra.mxu0 0.0
      %827 = vmatprep.subr.mxu0 0.0
      %828 = vmatpush1.msra.mxu0 0.0
      %829 = vmatprep.subr.mxu0 0.0
      %830 = vmatpush1.msra.mxu0 0.0
      %831 = vmatprep.subr.mxu0 0.0
      %832 = vmatpush1.msra.mxu0 0.0
      %833 = vmatprep.subr.mxu0 0.0
      %834 = vmatpush1.msra.mxu0 0.0
      %835 = vmatprep.subr.mxu0 0.0
      %836 = vmatpush1.msra.mxu0 0.0
      %837 = vmatprep.subr.mxu0 0.0
      %838 = vmatpush1.msra.mxu0 0.0
      %839 = vmatprep.subr.mxu0 0.0
      %840 = vmatpush1.msra.mxu0 0.0
      %841 = vmatprep.subr.mxu0 0.0
      %842 = vmatpush1.msra.mxu0 0.0
      %843 = vmatprep.subr.mxu0 0.0
      %844 = vmatpush1.msra.mxu0 0.0
      %845 = vmatprep.mubr.f32.mxu0 0.0
      %846 = vmatmul.mubr.f32.gmra.mrb[0].mxu0 %v776
      %v847 = vpop.f32.mrb[0].mxu0
      %v848 = vadd.f32 0.0, %v847
      %v849 = vpop.f32.mrb[0].mxu0
      %v850 = vadd.f32 0.0, %v849
      %851 = vmatprep.mubr.f32.mxu0 0.0
      %852 = vmatmul.mubr.f32.gmra.mrb[0].mxu0 %v779
      %v853 = vpop.f32.mrb[0].mxu0
      %v854 = vadd.f32 0.0, %v853
      %v855 = vpop.f32.mrb[0].mxu0
      %v856 = vadd.f32 0.0, %v855
      %857 = vdwg.mxu0
      %858 = vmatprep.subr.mxu0 0.0
      %859 = vmatpush1.msra.mxu0 %v200
      %860 = vmatprep.subr.mxu0 0.0
      %861 = vmatpush1.msra.mxu0 %v203
      %862 = vmatprep.subr.mxu0 0.0
      %863 = vmatpush1.msra.mxu0 0.0
      %864 = vmatprep.subr.mxu0 0.0
      %865 = vmatpush1.msra.mxu0 0.0
      %866 = vmatprep.subr.mxu0 0.0
      %867 = vmatpush1.msra.mxu0 0.0
      %868 = vmatprep.subr.mxu0 0.0
      %869 = vmatpush1.msra.mxu0 0.0
      %870 = vmatprep.subr.mxu0 0.0
      %871 = vmatpush1.msra.mxu0 0.0
      %872 = vmatprep.subr.mxu0 0.0
      %873 = vmatpush1.msra.mxu0 0.0
      %874 = vmatprep.subr.mxu0 0.0
      %875 = vmatpush1.msra.mxu0 0.0
      %876 = vmatprep.subr.mxu0 0.0
      %877 = vmatpush1.msra.mxu0 0.0
      %878 = vmatprep.subr.mxu0 0.0
      %879 = vmatpush1.msra.mxu0 0.0
      %880 = vmatprep.subr.mxu0 0.0
      %881 = vmatpush1.msra.mxu0 0.0
      %882 = vmatprep.subr.mxu0 0.0
      %883 = vmatpush1.msra.mxu0 0.0
      %884 = vmatprep.subr.mxu0 0.0
      %885 = vmatpush1.msra.mxu0 0.0
      %886 = vmatprep.subr.mxu0 0.0
      %887 = vmatpush1.msra.mxu0 0.0
      %888 = vmatprep.subr.mxu0 0.0
      %889 = vmatpush1.msra.mxu0 0.0
      %890 = vmatprep.subr.mxu0 0.0
      %891 = vmatpush1.msra.mxu0 0.0
      %892 = vmatprep.subr.mxu0 0.0
      %893 = vmatpush1.msra.mxu0 0.0
      %894 = vmatprep.subr.mxu0 0.0
      %895 = vmatpush1.msra.mxu0 0.0
      %896 = vmatprep.subr.mxu0 0.0
      %897 = vmatpush1.msra.mxu0 0.0
      %898 = vmatprep.subr.mxu0 0.0
      %899 = vmatpush1.msra.mxu0 0.0
      %900 = vmatprep.subr.mxu0 0.0
      %901 = vmatpush1.msra.mxu0 0.0
      %902 = vmatprep.subr.mxu0 0.0
      %903 = vmatpush1.msra.mxu0 0.0
      %904 = vmatprep.subr.mxu0 0.0
      %905 = vmatpush1.msra.mxu0 0.0
      %906 = vmatprep.subr.mxu0 0.0
      %907 = vmatpush1.msra.mxu0 0.0
      %908 = vmatprep.subr.mxu0 0.0
      %909 = vmatpush1.msra.mxu0 0.0
      %910 = vmatprep.subr.mxu0 0.0
      %911 = vmatpush1.msra.mxu0 0.0
      %912 = vmatprep.subr.mxu0 0.0
      %913 = vmatpush1.msra.mxu0 0.0
      %914 = vmatprep.subr.mxu0 0.0
      %915 = vmatpush1.msra.mxu0 0.0
      %916 = vmatprep.subr.mxu0 0.0
      %917 = vmatpush1.msra.mxu0 0.0
      %918 = vmatprep.subr.mxu0 0.0
      %919 = vmatpush1.msra.mxu0 0.0
      %920 = vmatprep.subr.mxu0 0.0
      %921 = vmatpush1.msra.mxu0 0.0
      %922 = vmatprep.mubr.f32.mxu0 0.0
      %923 = vmatmul.mubr.f32.gmra.mrb[0].mxu0 %v776
      %v924 = vpop.f32.mrb[0].mxu0
      %v925 = vadd.f32 0.0, %v924
      %v926 = vpop.f32.mrb[0].mxu0
      %927 = vmatprep.mubr.f32.mxu0 0.0
      %928 = vmatmul.mubr.f32.gmra.mrb[0].mxu0 %v779
      %v929 = vpop.f32.mrb[0].mxu0
      %v930 = vadd.f32 0.0, %v929
      %v931 = vpop.f32.mrb[0].mxu0
      %932 = vdwg.mxu0
      %935 = vrot.lane.b32.xlu0 %v848, 96
      %v936 = vpop.permute.xlu0 %935
      %937 = vrot.lane.b32.xlu0 %v854, 96
      %v938 = vpop.permute.xlu0 %937
      %vm941 = vcmask 1048320
      %942 = vst.msk [vmem:[#allocation2] sm:$0xff] %vm941, %v936
      %943 = vst.msk [vmem:[#allocation2 + $0x10] sm:$0xff] %vm941, %v938
      %944 = vrot.lane.b32.xlu0 %v848, 64
      %v945 = vpop.permute.xlu0 %944
      %946 = vrot.lane.b32.xlu0 %v854, 64
      %v947 = vpop.permute.xlu0 %946
      %950 = vst.msk [vmem:[#allocation2 + $0x20] sm:$0xff] %vm941, %v945
      %951 = vst.msk [vmem:[#allocation2 + $0x30] sm:$0xff] %vm941, %v947
      %952 = vrot.lane.b32.xlu0 %v848, 32
      %v953 = vpop.permute.xlu0 %952
      %954 = vrot.lane.b32.xlu0 %v854, 32
      %v955 = vpop.permute.xlu0 %954
      %958 = vst.msk [vmem:[#allocation2 + $0x40] sm:$0xff] %vm941, %v953
      %959 = vst.msk [vmem:[#allocation2 + $0x50] sm:$0xff] %vm941, %v955
      %960 = vst.msk [vmem:[#allocation2 + $0x60] sm:$0xff] %vm941, %v848
      %961 = vst.msk [vmem:[#allocation2 + $0x70] sm:$0xff] %vm941, %v854
      %964 = vrot.lane.b32.xlu0 %v850, 96
      %v965 = vpop.permute.xlu0 %964
      %966 = vrot.lane.b32.xlu0 %v856, 96
      %v967 = vpop.permute.xlu0 %966
      %970 = vst.msk [vmem:[#allocation2 + $0x80] sm:$0xff] %vm941, %v965
      %971 = vst.msk [vmem:[#allocation2 + $0x90] sm:$0xff] %vm941, %v967
      %972 = vrot.lane.b32.xlu0 %v850, 64
      %v973 = vpop.permute.xlu0 %972
      %974 = vrot.lane.b32.xlu0 %v856, 64
      %v975 = vpop.permute.xlu0 %974
      %978 = vst.msk [vmem:[#allocation2 + $0xa0] sm:$0xff] %vm941, %v973
      %979 = vst.msk [vmem:[#allocation2 + $0xb0] sm:$0xff] %vm941, %v975
      %980 = vrot.lane.b32.xlu0 %v850, 32
      %v981 = vpop.permute.xlu0 %980
      %982 = vrot.lane.b32.xlu0 %v856, 32
      %v983 = vpop.permute.xlu0 %982
      %986 = vst.msk [vmem:[#allocation2 + $0xc0] sm:$0xff] %vm941, %v981
      %987 = vst.msk [vmem:[#allocation2 + $0xd0] sm:$0xff] %vm941, %v983
      %988 = vst.msk [vmem:[#allocation2 + $0xe0] sm:$0xff] %vm941, %v850
      %989 = vst.msk [vmem:[#allocation2 + $0xf0] sm:$0xff] %vm941, %v856
      %992 = vrot.lane.b32.xlu0 %v925, 96
      %v993 = vpop.permute.xlu0 %992
      %994 = vrot.lane.b32.xlu0 %v930, 96
      %v995 = vpop.permute.xlu0 %994
      %998 = vst.msk [vmem:[#allocation2 + $0x100] sm:$0xff] %vm941, %v993
      %999 = vst.msk [vmem:[#allocation2 + $0x110] sm:$0xff] %vm941, %v995
      %1000 = vrot.lane.b32.xlu0 %v925, 64
      %v1001 = vpop.permute.xlu0 %1000
      %1002 = vrot.lane.b32.xlu0 %v930, 64
      %v1003 = vpop.permute.xlu0 %1002
      %1006 = vst.msk [vmem:[#allocation2 + $0x120] sm:$0xff] %vm941, %v1001
      %1007 = vst.msk [vmem:[#allocation2 + $0x130] sm:$0xff] %vm941, %v1003
      %1008 = vrot.lane.b32.xlu0 %v925, 32
      %v1009 = vpop.permute.xlu0 %1008
      %1010 = vrot.lane.b32.xlu0 %v930, 32
      %v1011 = vpop.permute.xlu0 %1010
      %1014 = vst.msk [vmem:[#allocation2 + $0x140] sm:$0xff] %vm941, %v1009
      %1015 = vst.msk [vmem:[#allocation2 + $0x150] sm:$0xff] %vm941, %v1011
      %1016 = vst.msk [vmem:[#allocation2 + $0x160] sm:$0xff] %vm941, %v925
      %1017 = vst.msk [vmem:[#allocation2 + $0x170] sm:$0xff] %vm941, %v930
      %1018 = vmatprep.subr.mxu0 %v850
      %1019 = vmatpush1.msra.mxu0 %v848
      %1020 = vmatprep.subr.mxu0 %v856
      %1021 = vmatpush1.msra.mxu0 %v854
      %1022 = vmatprep.subr.mxu0 0.0
      %1023 = vmatpush1.msra.mxu0 0.0
      %1024 = vmatprep.subr.mxu0 0.0
      %1025 = vmatpush1.msra.mxu0 0.0
      %1026 = vmatprep.subr.mxu0 0.0
      %1027 = vmatpush1.msra.mxu0 0.0
      %1028 = vmatprep.subr.mxu0 0.0
      %1029 = vmatpush1.msra.mxu0 0.0
      %1030 = vmatprep.subr.mxu0 0.0
      %1031 = vmatpush1.msra.mxu0 0.0
      %1032 = vmatprep.subr.mxu0 0.0
      %1033 = vmatpush1.msra.mxu0 0.0
      %1034 = vmatprep.subr.mxu0 0.0
      %1035 = vmatpush1.msra.mxu0 0.0
      %1036 = vmatprep.subr.mxu0 0.0
      %1037 = vmatpush1.msra.mxu0 0.0
      %1038 = vmatprep.subr.mxu0 0.0
      %1039 = vmatpush1.msra.mxu0 0.0
      %1040 = vmatprep.subr.mxu0 0.0
      %1041 = vmatpush1.msra.mxu0 0.0
      %1042 = vmatprep.subr.mxu0 0.0
      %1043 = vmatpush1.msra.mxu0 0.0
      %1044 = vmatprep.subr.mxu0 0.0
      %1045 = vmatpush1.msra.mxu0 0.0
      %1046 = vmatprep.subr.mxu0 0.0
      %1047 = vmatpush1.msra.mxu0 0.0
      %1048 = vmatprep.subr.mxu0 0.0
      %1049 = vmatpush1.msra.mxu0 0.0
      %1050 = vmatprep.subr.mxu0 0.0
      %1051 = vmatpush1.msra.mxu0 0.0
      %1052 = vmatprep.subr.mxu0 0.0
      %1053 = vmatpush1.msra.mxu0 0.0
      %1054 = vmatprep.subr.mxu0 0.0
      %1055 = vmatpush1.msra.mxu0 0.0
      %1056 = vmatprep.subr.mxu0 0.0
      %1057 = vmatpush1.msra.mxu0 0.0
      %1058 = vmatprep.subr.mxu0 0.0
      %1059 = vmatpush1.msra.mxu0 0.0
      %1060 = vmatprep.subr.mxu0 0.0
      %1061 = vmatpush1.msra.mxu0 0.0
      %1062 = vmatprep.subr.mxu0 0.0
      %1063 = vmatpush1.msra.mxu0 0.0
      %1064 = vmatprep.subr.mxu0 0.0
      %1065 = vmatpush1.msra.mxu0 0.0
      %1066 = vmatprep.subr.mxu0 0.0
      %1067 = vmatpush1.msra.mxu0 0.0
      %1068 = vmatprep.subr.mxu0 0.0
      %1069 = vmatpush1.msra.mxu0 0.0
      %1070 = vmatprep.subr.mxu0 0.0
      %1071 = vmatpush1.msra.mxu0 0.0
      %1072 = vmatprep.subr.mxu0 0.0
      %1073 = vmatpush1.msra.mxu0 0.0
      %1074 = vmatprep.subr.mxu0 0.0
      %1075 = vmatpush1.msra.mxu0 0.0
      %1076 = vmatprep.subr.mxu0 0.0
      %1077 = vmatpush1.msra.mxu0 0.0
      %1078 = vmatprep.subr.mxu0 0.0
      %1079 = vmatpush1.msra.mxu0 0.0
      %1080 = vmatprep.subr.mxu0 0.0
      %1081 = vmatpush1.msra.mxu0 0.0
      %1082 = vmatprep.mubr.f32.mxu0 0.0
      %1083 = vmatmul.mubr.f32.gmra.mrb[0].mxu0 %v776
      %v1084 = vpop.f32.mrb[0].mxu0
      %v1085 = vadd.f32 0.0, %v1084
      %v1086 = vpop.f32.mrb[0].mxu0
      %v1087 = vadd.f32 0.0, %v1086
      %1088 = vmatprep.mubr.f32.mxu0 0.0
      %1089 = vmatmul.mubr.f32.gmra.mrb[0].mxu0 %v779
      %v1090 = vpop.f32.mrb[0].mxu0
      %v1091 = vadd.f32 0.0, %v1090
      %v1092 = vpop.f32.mrb[0].mxu0
      %v1093 = vadd.f32 0.0, %v1092
      %1094 = vdwg.mxu0
      %1095 = vmatprep.subr.mxu0 0.0
      %1096 = vmatpush1.msra.mxu0 %v925
      %1097 = vmatprep.subr.mxu0 0.0
      %1098 = vmatpush1.msra.mxu0 %v930
      %1099 = vmatprep.subr.mxu0 0.0
      %1100 = vmatpush1.msra.mxu0 0.0
      %1101 = vmatprep.subr.mxu0 0.0
      %1102 = vmatpush1.msra.mxu0 0.0
      %1103 = vmatprep.subr.mxu0 0.0
      %1104 = vmatpush1.msra.mxu0 0.0
      %1105 = vmatprep.subr.mxu0 0.0
      %1106 = vmatpush1.msra.mxu0 0.0
      %1107 = vmatprep.subr.mxu0 0.0
      %1108 = vmatpush1.msra.mxu0 0.0
      %1109 = vmatprep.subr.mxu0 0.0
      %1110 = vmatpush1.msra.mxu0 0.0
      %1111 = vmatprep.subr.mxu0 0.0
      %1112 = vmatpush1.msra.mxu0 0.0
      %1113 = vmatprep.subr.mxu0 0.0
      %1114 = vmatpush1.msra.mxu0 0.0
      %1115 = vmatprep.subr.mxu0 0.0
      %1116 = vmatpush1.msra.mxu0 0.0
      %1117 = vmatprep.subr.mxu0 0.0
      %1118 = vmatpush1.msra.mxu0 0.0
      %1119 = vmatprep.subr.mxu0 0.0
      %1120 = vmatpush1.msra.mxu0 0.0
      %1121 = vmatprep.subr.mxu0 0.0
      %1122 = vmatpush1.msra.mxu0 0.0
      %1123 = vmatprep.subr.mxu0 0.0
      %1124 = vmatpush1.msra.mxu0 0.0
      %1125 = vmatprep.subr.mxu0 0.0
      %1126 = vmatpush1.msra.mxu0 0.0
      %1127 = vmatprep.subr.mxu0 0.0
      %1128 = vmatpush1.msra.mxu0 0.0
      %1129 = vmatprep.subr.mxu0 0.0
      %1130 = vmatpush1.msra.mxu0 0.0
      %1131 = vmatprep.subr.mxu0 0.0
      %1132 = vmatpush1.msra.mxu0 0.0
      %1133 = vmatprep.subr.mxu0 0.0
      %1134 = vmatpush1.msra.mxu0 0.0
      %1135 = vmatprep.subr.mxu0 0.0
      %1136 = vmatpush1.msra.mxu0 0.0
      %1137 = vmatprep.subr.mxu0 0.0
      %1138 = vmatpush1.msra.mxu0 0.0
      %1139 = vmatprep.subr.mxu0 0.0
      %1140 = vmatpush1.msra.mxu0 0.0
      %1141 = vmatprep.subr.mxu0 0.0
      %1142 = vmatpush1.msra.mxu0 0.0
      %1143 = vmatprep.subr.mxu0 0.0
      %1144 = vmatpush1.msra.mxu0 0.0
      %1145 = vmatprep.subr.mxu0 0.0
      %1146 = vmatpush1.msra.mxu0 0.0
      %1147 = vmatprep.subr.mxu0 0.0
      %1148 = vmatpush1.msra.mxu0 0.0
      %1149 = vmatprep.subr.mxu0 0.0
      %1150 = vmatpush1.msra.mxu0 0.0
      %1151 = vmatprep.subr.mxu0 0.0
      %1152 = vmatpush1.msra.mxu0 0.0
      %1153 = vmatprep.subr.mxu0 0.0
      %1154 = vmatpush1.msra.mxu0 0.0
      %1155 = vmatprep.subr.mxu0 0.0
      %1156 = vmatpush1.msra.mxu0 0.0
      %1157 = vmatprep.subr.mxu0 0.0
      %1158 = vmatpush1.msra.mxu0 0.0
      %1159 = vmatprep.mubr.f32.mxu0 0.0
      %1160 = vmatmul.mubr.f32.gmra.mrb[0].mxu0 %v776
      %v1161 = vpop.f32.mrb[0].mxu0
      %v1162 = vadd.f32 0.0, %v1161
      %v1163 = vpop.f32.mrb[0].mxu0
      %1164 = vmatprep.mubr.f32.mxu0 0.0
      %1165 = vmatmul.mubr.f32.gmra.mrb[0].mxu0 %v779
      %v1166 = vpop.f32.mrb[0].mxu0
      %v1167 = vadd.f32 0.0, %v1166
      %v1168 = vpop.f32.mrb[0].mxu0
      %1169 = vdwg.mxu0
      %1170 = vst.msk [vmem:[#allocation2 + $0x8] sm:$0xff] %vm204, %v1085
      %1171 = vst.msk [vmem:[#allocation2 + $0x18] sm:$0xff] %vm204, %v1091
      %1174 = vrot.lane.b32.xlu0 %v1085, 96
      %v1175 = vpop.permute.xlu0 %1174
      %1176 = vrot.lane.b32.xlu0 %v1091, 96
      %v1177 = vpop.permute.xlu0 %1176
      %1180 = vst.msk [vmem:[#allocation2 + $0x28] sm:$0xff] %vm204, %v1175
      %1181 = vst.msk [vmem:[#allocation2 + $0x38] sm:$0xff] %vm204, %v1177
      %1182 = vrot.lane.b32.xlu0 %v1085, 64
      %v1183 = vpop.permute.xlu0 %1182
      %1184 = vrot.lane.b32.xlu0 %v1091, 64
      %v1185 = vpop.permute.xlu0 %1184
      %1188 = vst.msk [vmem:[#allocation2 + $0x48] sm:$0xff] %vm204, %v1183
      %1189 = vst.msk [vmem:[#allocation2 + $0x58] sm:$0xff] %vm204, %v1185
      %1190 = vrot.lane.b32.xlu0 %v1085, 32
      %v1191 = vpop.permute.xlu0 %1190
      %1192 = vrot.lane.b32.xlu0 %v1091, 32
      %v1193 = vpop.permute.xlu0 %1192
      %1196 = vst.msk [vmem:[#allocation2 + $0x68] sm:$0xff] %vm204, %v1191
      %1197 = vst.msk [vmem:[#allocation2 + $0x78] sm:$0xff] %vm204, %v1193
      %1198 = vst.msk [vmem:[#allocation2 + $0x88] sm:$0xff] %vm204, %v1087
      %1199 = vst.msk [vmem:[#allocation2 + $0x98] sm:$0xff] %vm204, %v1093
      %1202 = vrot.lane.b32.xlu0 %v1087, 96
      %v1203 = vpop.permute.xlu0 %1202
      %1204 = vrot.lane.b32.xlu0 %v1093, 96
      %v1205 = vpop.permute.xlu0 %1204
      %1208 = vst.msk [vmem:[#allocation2 + $0xa8] sm:$0xff] %vm204, %v1203
      %1209 = vst.msk [vmem:[#allocation2 + $0xb8] sm:$0xff] %vm204, %v1205
      %1210 = vrot.lane.b32.xlu0 %v1087, 64
      %v1211 = vpop.permute.xlu0 %1210
      %1212 = vrot.lane.b32.xlu0 %v1093, 64
      %v1213 = vpop.permute.xlu0 %1212
      %1216 = vst.msk [vmem:[#allocation2 + $0xc8] sm:$0xff] %vm204, %v1211
      %1217 = vst.msk [vmem:[#allocation2 + $0xd8] sm:$0xff] %vm204, %v1213
      %1218 = vrot.lane.b32.xlu0 %v1087, 32
      %v1219 = vpop.permute.xlu0 %1218
      %1220 = vrot.lane.b32.xlu0 %v1093, 32
      %v1221 = vpop.permute.xlu0 %1220
      %1224 = vst.msk [vmem:[#allocation2 + $0xe8] sm:$0xff] %vm204, %v1219
      %1225 = vst.msk [vmem:[#allocation2 + $0xf8] sm:$0xff] %vm204, %v1221
      %1226 = vst.msk [vmem:[#allocation2 + $0x108] sm:$0xff] %vm204, %v1162
      %1227 = vst.msk [vmem:[#allocation2 + $0x118] sm:$0xff] %vm204, %v1167
      %1230 = vrot.lane.b32.xlu0 %v1162, 96
      %v1231 = vpop.permute.xlu0 %1230
      %1232 = vrot.lane.b32.xlu0 %v1167, 96
      %v1233 = vpop.permute.xlu0 %1232
      %1236 = vst.msk [vmem:[#allocation2 + $0x128] sm:$0xff] %vm204, %v1231
      %1237 = vst.msk [vmem:[#allocation2 + $0x138] sm:$0xff] %vm204, %v1233
      %1238 = vrot.lane.b32.xlu0 %v1162, 64
      %v1239 = vpop.permute.xlu0 %1238
      %1240 = vrot.lane.b32.xlu0 %v1167, 64
      %v1241 = vpop.permute.xlu0 %1240
      %1244 = vst.msk [vmem:[#allocation2 + $0x148] sm:$0xff] %vm204, %v1239
      %1245 = vst.msk [vmem:[#allocation2 + $0x158] sm:$0xff] %vm204, %v1241
      %1246 = vrot.lane.b32.xlu0 %v1162, 32
      %v1247 = vpop.permute.xlu0 %1246
      %1248 = vrot.lane.b32.xlu0 %v1167, 32
      %v1249 = vpop.permute.xlu0 %1248
      %1252 = vst.msk [vmem:[#allocation2 + $0x168] sm:$0xff] %vm204, %v1247
      %1253 = vst.msk [vmem:[#allocation2 + $0x178] sm:$0xff] %vm204, %v1249
      %s1254 = scalar_lea.vmem %s1, 32
      %v1255 = vld [vmem:[%s1254] sm:$0xff]
      %v1256 = vld [vmem:[%s1254 + $0x8] sm:$0xff]
      %v1258 = vsel %vm291, %v1255, 0
      %v1261 = vsel %vm291, %v1256, 0
      %1263 = vmatprep.subr.mxu0 %v199
      %1264 = vmatpush1.msra.mxu0 %v198
      %1265 = vmatprep.subr.mxu0 %v202
      %1266 = vmatpush1.msra.mxu0 %v201
      %1267 = vmatprep.subr.mxu0 0.0
      %1268 = vmatpush1.msra.mxu0 0.0
      %1269 = vmatprep.subr.mxu0 0.0
      %1270 = vmatpush1.msra.mxu0 0.0
      %1271 = vmatprep.subr.mxu0 0.0
      %1272 = vmatpush1.msra.mxu0 0.0
      %1273 = vmatprep.subr.mxu0 0.0
      %1274 = vmatpush1.msra.mxu0 0.0
      %1275 = vmatprep.subr.mxu0 0.0
      %1276 = vmatpush1.msra.mxu0 0.0
      %1277 = vmatprep.subr.mxu0 0.0
      %1278 = vmatpush1.msra.mxu0 0.0
      %1279 = vmatprep.subr.mxu0 0.0
      %1280 = vmatpush1.msra.mxu0 0.0
      %1281 = vmatprep.subr.mxu0 0.0
      %1282 = vmatpush1.msra.mxu0 0.0
      %1283 = vmatprep.subr.mxu0 0.0
      %1284 = vmatpush1.msra.mxu0 0.0
      %1285 = vmatprep.subr.mxu0 0.0
      %1286 = vmatpush1.msra.mxu0 0.0
      %1287 = vmatprep.subr.mxu0 0.0
      %1288 = vmatpush1.msra.mxu0 0.0
      %1289 = vmatprep.subr.mxu0 0.0
      %1290 = vmatpush1.msra.mxu0 0.0
      %1291 = vmatprep.subr.mxu0 0.0
      %1292 = vmatpush1.msra.mxu0 0.0
      %1293 = vmatprep.subr.mxu0 0.0
      %1294 = vmatpush1.msra.mxu0 0.0
      %1295 = vmatprep.subr.mxu0 0.0
      %1296 = vmatpush1.msra.mxu0 0.0
      %1297 = vmatprep.subr.mxu0 0.0
      %1298 = vmatpush1.msra.mxu0 0.0
      %1299 = vmatprep.subr.mxu0 0.0
      %1300 = vmatpush1.msra.mxu0 0.0
      %1301 = vmatprep.subr.mxu0 0.0
      %1302 = vmatpush1.msra.mxu0 0.0
      %1303 = vmatprep.subr.mxu0 0.0
      %1304 = vmatpush1.msra.mxu0 0.0
      %1305 = vmatprep.subr.mxu0 0.0
      %1306 = vmatpush1.msra.mxu0 0.0
      %1307 = vmatprep.subr.mxu0 0.0
      %1308 = vmatpush1.msra.mxu0 0.0
      %1309 = vmatprep.subr.mxu0 0.0
      %1310 = vmatpush1.msra.mxu0 0.0
      %1311 = vmatprep.subr.mxu0 0.0
      %1312 = vmatpush1.msra.mxu0 0.0
      %1313 = vmatprep.subr.mxu0 0.0
      %1314 = vmatpush1.msra.mxu0 0.0
      %1315 = vmatprep.subr.mxu0 0.0
      %1316 = vmatpush1.msra.mxu0 0.0
      %1317 = vmatprep.subr.mxu0 0.0
      %1318 = vmatpush1.msra.mxu0 0.0
      %1319 = vmatprep.subr.mxu0 0.0
      %1320 = vmatpush1.msra.mxu0 0.0
      %1321 = vmatprep.subr.mxu0 0.0
      %1322 = vmatpush1.msra.mxu0 0.0
      %1323 = vmatprep.subr.mxu0 0.0
      %1324 = vmatpush1.msra.mxu0 0.0
      %1325 = vmatprep.subr.mxu0 0.0
      %1326 = vmatpush1.msra.mxu0 0.0
      %1327 = vmatprep.mubr.f32.mxu0 0.0
      %1328 = vmatmul.mubr.f32.gmra.mrb[0].mxu0 %v1258
      %v1329 = vpop.f32.mrb[0].mxu0
      %v1330 = vadd.f32 0.0, %v1329
      %v1331 = vpop.f32.mrb[0].mxu0
      %v1332 = vadd.f32 0.0, %v1331
      %1333 = vmatprep.mubr.f32.mxu0 0.0
      %1334 = vmatmul.mubr.f32.gmra.mrb[0].mxu0 %v1261
      %v1335 = vpop.f32.mrb[0].mxu0
      %v1336 = vadd.f32 0.0, %v1335
      %v1337 = vpop.f32.mrb[0].mxu0
      %v1338 = vadd.f32 0.0, %v1337
      %1339 = vdwg.mxu0
      %1340 = vmatprep.subr.mxu0 0.0
      %1341 = vmatpush1.msra.mxu0 %v200
      %1342 = vmatprep.subr.mxu0 0.0
      %1343 = vmatpush1.msra.mxu0 %v203
      %1344 = vmatprep.subr.mxu0 0.0
      %1345 = vmatpush1.msra.mxu0 0.0
      %1346 = vmatprep.subr.mxu0 0.0
      %1347 = vmatpush1.msra.mxu0 0.0
      %1348 = vmatprep.subr.mxu0 0.0
      %1349 = vmatpush1.msra.mxu0 0.0
      %1350 = vmatprep.subr.mxu0 0.0
      %1351 = vmatpush1.msra.mxu0 0.0
      %1352 = vmatprep.subr.mxu0 0.0
      %1353 = vmatpush1.msra.mxu0 0.0
      %1354 = vmatprep.subr.mxu0 0.0
      %1355 = vmatpush1.msra.mxu0 0.0
      %1356 = vmatprep.subr.mxu0 0.0
      %1357 = vmatpush1.msra.mxu0 0.0
      %1358 = vmatprep.subr.mxu0 0.0
      %1359 = vmatpush1.msra.mxu0 0.0
      %1360 = vmatprep.subr.mxu0 0.0
      %1361 = vmatpush1.msra.mxu0 0.0
      %1362 = vmatprep.subr.mxu0 0.0
      %1363 = vmatpush1.msra.mxu0 0.0
      %1364 = vmatprep.subr.mxu0 0.0
      %1365 = vmatpush1.msra.mxu0 0.0
      %1366 = vmatprep.subr.mxu0 0.0
      %1367 = vmatpush1.msra.mxu0 0.0
      %1368 = vmatprep.subr.mxu0 0.0
      %1369 = vmatpush1.msra.mxu0 0.0
      %1370 = vmatprep.subr.mxu0 0.0
      %1371 = vmatpush1.msra.mxu0 0.0
      %1372 = vmatprep.subr.mxu0 0.0
      %1373 = vmatpush1.msra.mxu0 0.0
      %1374 = vmatprep.subr.mxu0 0.0
      %1375 = vmatpush1.msra.mxu0 0.0
      %1376 = vmatprep.subr.mxu0 0.0
      %1377 = vmatpush1.msra.mxu0 0.0
      %1378 = vmatprep.subr.mxu0 0.0
      %1379 = vmatpush1.msra.mxu0 0.0
      %1380 = vmatprep.subr.mxu0 0.0
      %1381 = vmatpush1.msra.mxu0 0.0
      %1382 = vmatprep.subr.mxu0 0.0
      %1383 = vmatpush1.msra.mxu0 0.0
      %1384 = vmatprep.subr.mxu0 0.0
      %1385 = vmatpush1.msra.mxu0 0.0
      %1386 = vmatprep.subr.mxu0 0.0
      %1387 = vmatpush1.msra.mxu0 0.0
      %1388 = vmatprep.subr.mxu0 0.0
      %1389 = vmatpush1.msra.mxu0 0.0
      %1390 = vmatprep.subr.mxu0 0.0
      %1391 = vmatpush1.msra.mxu0 0.0
      %1392 = vmatprep.subr.mxu0 0.0
      %1393 = vmatpush1.msra.mxu0 0.0
      %1394 = vmatprep.subr.mxu0 0.0
      %1395 = vmatpush1.msra.mxu0 0.0
      %1396 = vmatprep.subr.mxu0 0.0
      %1397 = vmatpush1.msra.mxu0 0.0
      %1398 = vmatprep.subr.mxu0 0.0
      %1399 = vmatpush1.msra.mxu0 0.0
      %1400 = vmatprep.subr.mxu0 0.0
      %1401 = vmatpush1.msra.mxu0 0.0
      %1402 = vmatprep.subr.mxu0 0.0
      %1403 = vmatpush1.msra.mxu0 0.0
      %1404 = vmatprep.mubr.f32.mxu0 0.0
      %1405 = vmatmul.mubr.f32.gmra.mrb[0].mxu0 %v1258
      %v1406 = vpop.f32.mrb[0].mxu0
      %v1407 = vadd.f32 0.0, %v1406
      %v1408 = vpop.f32.mrb[0].mxu0
      %1409 = vmatprep.mubr.f32.mxu0 0.0
      %1410 = vmatmul.mubr.f32.gmra.mrb[0].mxu0 %v1261
      %v1411 = vpop.f32.mrb[0].mxu0
      %v1412 = vadd.f32 0.0, %v1411
      %v1413 = vpop.f32.mrb[0].mxu0
      %1414 = vdwg.mxu0
      %1417 = vrot.lane.b32.xlu0 %v1330, 32
      %v1418 = vpop.permute.xlu0 %1417
      %1419 = vrot.lane.b32.xlu0 %v1336, 32
      %v1420 = vpop.permute.xlu0 %1419
      %1423 = vst.msk [vmem:[#allocation2 + $0x8] sm:$0xff] %vm458, %v1418
      %1424 = vst.msk [vmem:[#allocation2 + $0x18] sm:$0xff] %vm458, %v1420
      %1425 = vst.msk [vmem:[#allocation2 + $0x28] sm:$0xff] %vm458, %v1330
      %1426 = vst.msk [vmem:[#allocation2 + $0x38] sm:$0xff] %vm458, %v1336
      %1427 = vrot.lane.b32.xlu0 %v1330, 96
      %v1428 = vpop.permute.xlu0 %1427
      %1429 = vrot.lane.b32.xlu0 %v1336, 96
      %v1430 = vpop.permute.xlu0 %1429
      %1433 = vst.msk [vmem:[#allocation2 + $0x48] sm:$0xff] %vm458, %v1428
      %1434 = vst.msk [vmem:[#allocation2 + $0x58] sm:$0xff] %vm458, %v1430
      %1435 = vrot.lane.b32.xlu0 %v1330, 64
      %v1436 = vpop.permute.xlu0 %1435
      %1437 = vrot.lane.b32.xlu0 %v1336, 64
      %v1438 = vpop.permute.xlu0 %1437
      %1441 = vst.msk [vmem:[#allocation2 + $0x68] sm:$0xff] %vm458, %v1436
      %1442 = vst.msk [vmem:[#allocation2 + $0x78] sm:$0xff] %vm458, %v1438
      %1445 = vrot.lane.b32.xlu0 %v1332, 32
      %v1446 = vpop.permute.xlu0 %1445
      %1447 = vrot.lane.b32.xlu0 %v1338, 32
      %v1448 = vpop.permute.xlu0 %1447
      %1451 = vst.msk [vmem:[#allocation2 + $0x88] sm:$0xff] %vm458, %v1446
      %1452 = vst.msk [vmem:[#allocation2 + $0x98] sm:$0xff] %vm458, %v1448
      %1453 = vst.msk [vmem:[#allocation2 + $0xa8] sm:$0xff] %vm458, %v1332
      %1454 = vst.msk [vmem:[#allocation2 + $0xb8] sm:$0xff] %vm458, %v1338
      %1455 = vrot.lane.b32.xlu0 %v1332, 96
      %v1456 = vpop.permute.xlu0 %1455
      %1457 = vrot.lane.b32.xlu0 %v1338, 96
      %v1458 = vpop.permute.xlu0 %1457
      %1461 = vst.msk [vmem:[#allocation2 + $0xc8] sm:$0xff] %vm458, %v1456
      %1462 = vst.msk [vmem:[#allocation2 + $0xd8] sm:$0xff] %vm458, %v1458
      %1463 = vrot.lane.b32.xlu0 %v1332, 64
      %v1464 = vpop.permute.xlu0 %1463
      %1465 = vrot.lane.b32.xlu0 %v1338, 64
      %v1466 = vpop.permute.xlu0 %1465
      %1469 = vst.msk [vmem:[#allocation2 + $0xe8] sm:$0xff] %vm458, %v1464
      %1470 = vst.msk [vmem:[#allocation2 + $0xf8] sm:$0xff] %vm458, %v1466
      %1473 = vrot.lane.b32.xlu0 %v1407, 32
      %v1474 = vpop.permute.xlu0 %1473
      %1475 = vrot.lane.b32.xlu0 %v1412, 32
      %v1476 = vpop.permute.xlu0 %1475
      %1479 = vst.msk [vmem:[#allocation2 + $0x108] sm:$0xff] %vm458, %v1474
      %1480 = vst.msk [vmem:[#allocation2 + $0x118] sm:$0xff] %vm458, %v1476
      %1481 = vst.msk [vmem:[#allocation2 + $0x128] sm:$0xff] %vm458, %v1407
      %1482 = vst.msk [vmem:[#allocation2 + $0x138] sm:$0xff] %vm458, %v1412
      %1483 = vrot.lane.b32.xlu0 %v1407, 96
      %v1484 = vpop.permute.xlu0 %1483
      %1485 = vrot.lane.b32.xlu0 %v1412, 96
      %v1486 = vpop.permute.xlu0 %1485
      %1489 = vst.msk [vmem:[#allocation2 + $0x148] sm:$0xff] %vm458, %v1484
      %1490 = vst.msk [vmem:[#allocation2 + $0x158] sm:$0xff] %vm458, %v1486
      %1491 = vrot.lane.b32.xlu0 %v1407, 64
      %v1492 = vpop.permute.xlu0 %1491
      %1493 = vrot.lane.b32.xlu0 %v1412, 64
      %v1494 = vpop.permute.xlu0 %1493
      %1497 = vst.msk [vmem:[#allocation2 + $0x168] sm:$0xff] %vm458, %v1492
      %1498 = vst.msk [vmem:[#allocation2 + $0x178] sm:$0xff] %vm458, %v1494
      %1499 = vmatprep.subr.mxu0 %v1332
      %1500 = vmatpush1.msra.mxu0 %v1330
      %1501 = vmatprep.subr.mxu0 %v1338
      %1502 = vmatpush1.msra.mxu0 %v1336
      %1503 = vmatprep.subr.mxu0 0.0
      %1504 = vmatpush1.msra.mxu0 0.0
      %1505 = vmatprep.subr.mxu0 0.0
      %1506 = vmatpush1.msra.mxu0 0.0
      %1507 = vmatprep.subr.mxu0 0.0
      %1508 = vmatpush1.msra.mxu0 0.0
      %1509 = vmatprep.subr.mxu0 0.0
      %1510 = vmatpush1.msra.mxu0 0.0
      %1511 = vmatprep.subr.mxu0 0.0
      %1512 = vmatpush1.msra.mxu0 0.0
      %1513 = vmatprep.subr.mxu0 0.0
      %1514 = vmatpush1.msra.mxu0 0.0
      %1515 = vmatprep.subr.mxu0 0.0
      %1516 = vmatpush1.msra.mxu0 0.0
      %1517 = vmatprep.subr.mxu0 0.0
      %1518 = vmatpush1.msra.mxu0 0.0
      %1519 = vmatprep.subr.mxu0 0.0
      %1520 = vmatpush1.msra.mxu0 0.0
      %1521 = vmatprep.subr.mxu0 0.0
      %1522 = vmatpush1.msra.mxu0 0.0
      %1523 = vmatprep.subr.mxu0 0.0
      %1524 = vmatpush1.msra.mxu0 0.0
      %1525 = vmatprep.subr.mxu0 0.0
      %1526 = vmatpush1.msra.mxu0 0.0
      %1527 = vmatprep.subr.mxu0 0.0
      %1528 = vmatpush1.msra.mxu0 0.0
      %1529 = vmatprep.subr.mxu0 0.0
      %1530 = vmatpush1.msra.mxu0 0.0
      %1531 = vmatprep.subr.mxu0 0.0
      %1532 = vmatpush1.msra.mxu0 0.0
      %1533 = vmatprep.subr.mxu0 0.0
      %1534 = vmatpush1.msra.mxu0 0.0
      %1535 = vmatprep.subr.mxu0 0.0
      %1536 = vmatpush1.msra.mxu0 0.0
      %1537 = vmatprep.subr.mxu0 0.0
      %1538 = vmatpush1.msra.mxu0 0.0
      %1539 = vmatprep.subr.mxu0 0.0
      %1540 = vmatpush1.msra.mxu0 0.0
      %1541 = vmatprep.subr.mxu0 0.0
      %1542 = vmatpush1.msra.mxu0 0.0
      %1543 = vmatprep.subr.mxu0 0.0
      %1544 = vmatpush1.msra.mxu0 0.0
      %1545 = vmatprep.subr.mxu0 0.0
      %1546 = vmatpush1.msra.mxu0 0.0
      %1547 = vmatprep.subr.mxu0 0.0
      %1548 = vmatpush1.msra.mxu0 0.0
      %1549 = vmatprep.subr.mxu0 0.0
      %1550 = vmatpush1.msra.mxu0 0.0
      %1551 = vmatprep.subr.mxu0 0.0
      %1552 = vmatpush1.msra.mxu0 0.0
      %1553 = vmatprep.subr.mxu0 0.0
      %1554 = vmatpush1.msra.mxu0 0.0
      %1555 = vmatprep.subr.mxu0 0.0
      %1556 = vmatpush1.msra.mxu0 0.0
      %1557 = vmatprep.subr.mxu0 0.0
      %1558 = vmatpush1.msra.mxu0 0.0
      %1559 = vmatprep.subr.mxu0 0.0
      %1560 = vmatpush1.msra.mxu0 0.0
      %1561 = vmatprep.subr.mxu0 0.0
      %1562 = vmatpush1.msra.mxu0 0.0
      %1563 = vmatprep.mubr.f32.mxu0 0.0
      %1564 = vmatmul.mubr.f32.gmra.mrb[0].mxu0 %v1258
      %v1565 = vpop.f32.mrb[0].mxu0
      %v1566 = vadd.f32 0.0, %v1565
      %v1567 = vpop.f32.mrb[0].mxu0
      %v1568 = vadd.f32 0.0, %v1567
      %1569 = vmatprep.mubr.f32.mxu0 0.0
      %1570 = vmatmul.mubr.f32.gmra.mrb[0].mxu0 %v1261
      %v1571 = vpop.f32.mrb[0].mxu0
      %v1572 = vadd.f32 0.0, %v1571
      %v1573 = vpop.f32.mrb[0].mxu0
      %v1574 = vadd.f32 0.0, %v1573
      %1575 = vdwg.mxu0
      %1576 = vmatprep.subr.mxu0 0.0
      %1577 = vmatpush1.msra.mxu0 %v1407
      %1578 = vmatprep.subr.mxu0 0.0
      %1579 = vmatpush1.msra.mxu0 %v1412
      %1580 = vmatprep.subr.mxu0 0.0
      %1581 = vmatpush1.msra.mxu0 0.0
      %1582 = vmatprep.subr.mxu0 0.0
      %1583 = vmatpush1.msra.mxu0 0.0
      %1584 = vmatprep.subr.mxu0 0.0
      %1585 = vmatpush1.msra.mxu0 0.0
      %1586 = vmatprep.subr.mxu0 0.0
      %1587 = vmatpush1.msra.mxu0 0.0
      %1588 = vmatprep.subr.mxu0 0.0
      %1589 = vmatpush1.msra.mxu0 0.0
      %1590 = vmatprep.subr.mxu0 0.0
      %1591 = vmatpush1.msra.mxu0 0.0
      %1592 = vmatprep.subr.mxu0 0.0
      %1593 = vmatpush1.msra.mxu0 0.0
      %1594 = vmatprep.subr.mxu0 0.0
      %1595 = vmatpush1.msra.mxu0 0.0
      %1596 = vmatprep.subr.mxu0 0.0
      %1597 = vmatpush1.msra.mxu0 0.0
      %1598 = vmatprep.subr.mxu0 0.0
      %1599 = vmatpush1.msra.mxu0 0.0
      %1600 = vmatprep.subr.mxu0 0.0
      %1601 = vmatpush1.msra.mxu0 0.0
      %1602 = vmatprep.subr.mxu0 0.0
      %1603 = vmatpush1.msra.mxu0 0.0
      %1604 = vmatprep.subr.mxu0 0.0
      %1605 = vmatpush1.msra.mxu0 0.0
      %1606 = vmatprep.subr.mxu0 0.0
      %1607 = vmatpush1.msra.mxu0 0.0
      %1608 = vmatprep.subr.mxu0 0.0
      %1609 = vmatpush1.msra.mxu0 0.0
      %1610 = vmatprep.subr.mxu0 0.0
      %1611 = vmatpush1.msra.mxu0 0.0
      %1612 = vmatprep.subr.mxu0 0.0
      %1613 = vmatpush1.msra.mxu0 0.0
      %1614 = vmatprep.subr.mxu0 0.0
      %1615 = vmatpush1.msra.mxu0 0.0
      %1616 = vmatprep.subr.mxu0 0.0
      %1617 = vmatpush1.msra.mxu0 0.0
      %1618 = vmatprep.subr.mxu0 0.0
      %1619 = vmatpush1.msra.mxu0 0.0
      %1620 = vmatprep.subr.mxu0 0.0
      %1621 = vmatpush1.msra.mxu0 0.0
      %1622 = vmatprep.subr.mxu0 0.0
      %1623 = vmatpush1.msra.mxu0 0.0
      %1624 = vmatprep.subr.mxu0 0.0
      %1625 = vmatpush1.msra.mxu0 0.0
      %1626 = vmatprep.subr.mxu0 0.0
      %1627 = vmatpush1.msra.mxu0 0.0
      %1628 = vmatprep.subr.mxu0 0.0
      %1629 = vmatpush1.msra.mxu0 0.0
      %1630 = vmatprep.subr.mxu0 0.0
      %1631 = vmatpush1.msra.mxu0 0.0
      %1632 = vmatprep.subr.mxu0 0.0
      %1633 = vmatpush1.msra.mxu0 0.0
      %1634 = vmatprep.subr.mxu0 0.0
      %1635 = vmatpush1.msra.mxu0 0.0
      %1636 = vmatprep.subr.mxu0 0.0
      %1637 = vmatpush1.msra.mxu0 0.0
      %1638 = vmatprep.subr.mxu0 0.0
      %1639 = vmatpush1.msra.mxu0 0.0
      %1640 = vmatprep.mubr.f32.mxu0 0.0
      %1641 = vmatmul.mubr.f32.gmra.mrb[0].mxu0 %v1258
      %v1642 = vpop.f32.mrb[0].mxu0
      %v1643 = vadd.f32 0.0, %v1642
      %v1644 = vpop.f32.mrb[0].mxu0
      %1645 = vmatprep.mubr.f32.mxu0 0.0
      %1646 = vmatmul.mubr.f32.gmra.mrb[0].mxu0 %v1261
      %v1647 = vpop.f32.mrb[0].mxu0
      %v1648 = vadd.f32 0.0, %v1647
      %v1649 = vpop.f32.mrb[0].mxu0
      %1650 = vdwg.mxu0
      %1653 = vrot.lane.b32.xlu0 %v1566, 64
      %v1654 = vpop.permute.xlu0 %1653
      %1655 = vrot.lane.b32.xlu0 %v1572, 64
      %v1656 = vpop.permute.xlu0 %1655
      %1659 = vst.msk [vmem:[#allocation2 + $0x8] sm:$0xff] %vm695, %v1654
      %1660 = vst.msk [vmem:[#allocation2 + $0x18] sm:$0xff] %vm695, %v1656
      %1661 = vrot.lane.b32.xlu0 %v1566, 32
      %v1662 = vpop.permute.xlu0 %1661
      %1663 = vrot.lane.b32.xlu0 %v1572, 32
      %v1664 = vpop.permute.xlu0 %1663
      %1667 = vst.msk [vmem:[#allocation2 + $0x28] sm:$0xff] %vm695, %v1662
      %1668 = vst.msk [vmem:[#allocation2 + $0x38] sm:$0xff] %vm695, %v1664
      %1669 = vst.msk [vmem:[#allocation2 + $0x48] sm:$0xff] %vm695, %v1566
      %1670 = vst.msk [vmem:[#allocation2 + $0x58] sm:$0xff] %vm695, %v1572
      %1671 = vrot.lane.b32.xlu0 %v1566, 96
      %v1672 = vpop.permute.xlu0 %1671
      %1673 = vrot.lane.b32.xlu0 %v1572, 96
      %v1674 = vpop.permute.xlu0 %1673
      %1677 = vst.msk [vmem:[#allocation2 + $0x68] sm:$0xff] %vm695, %v1672
      %1678 = vst.msk [vmem:[#allocation2 + $0x78] sm:$0xff] %vm695, %v1674
      %1681 = vrot.lane.b32.xlu0 %v1568, 64
      %v1682 = vpop.permute.xlu0 %1681
      %1683 = vrot.lane.b32.xlu0 %v1574, 64
      %v1684 = vpop.permute.xlu0 %1683
      %1687 = vst.msk [vmem:[#allocation2 + $0x88] sm:$0xff] %vm695, %v1682
      %1688 = vst.msk [vmem:[#allocation2 + $0x98] sm:$0xff] %vm695, %v1684
      %1689 = vrot.lane.b32.xlu0 %v1568, 32
      %v1690 = vpop.permute.xlu0 %1689
      %1691 = vrot.lane.b32.xlu0 %v1574, 32
      %v1692 = vpop.permute.xlu0 %1691
      %1695 = vst.msk [vmem:[#allocation2 + $0xa8] sm:$0xff] %vm695, %v1690
      %1696 = vst.msk [vmem:[#allocation2 + $0xb8] sm:$0xff] %vm695, %v1692
      %1697 = vst.msk [vmem:[#allocation2 + $0xc8] sm:$0xff] %vm695, %v1568
      %1698 = vst.msk [vmem:[#allocation2 + $0xd8] sm:$0xff] %vm695, %v1574
      %1699 = vrot.lane.b32.xlu0 %v1568, 96
      %v1700 = vpop.permute.xlu0 %1699
      %1701 = vrot.lane.b32.xlu0 %v1574, 96
      %v1702 = vpop.permute.xlu0 %1701
      %1705 = vst.msk [vmem:[#allocation2 + $0xe8] sm:$0xff] %vm695, %v1700
      %1706 = vst.msk [vmem:[#allocation2 + $0xf8] sm:$0xff] %vm695, %v1702
      %1709 = vrot.lane.b32.xlu0 %v1643, 64
      %v1710 = vpop.permute.xlu0 %1709
      %1711 = vrot.lane.b32.xlu0 %v1648, 64
      %v1712 = vpop.permute.xlu0 %1711
      %1715 = vst.msk [vmem:[#allocation2 + $0x108] sm:$0xff] %vm695, %v1710
      %1716 = vst.msk [vmem:[#allocation2 + $0x118] sm:$0xff] %vm695, %v1712
      %1717 = vrot.lane.b32.xlu0 %v1643, 32
      %v1718 = vpop.permute.xlu0 %1717
      %1719 = vrot.lane.b32.xlu0 %v1648, 32
      %v1720 = vpop.permute.xlu0 %1719
      %1723 = vst.msk [vmem:[#allocation2 + $0x128] sm:$0xff] %vm695, %v1718
      %1724 = vst.msk [vmem:[#allocation2 + $0x138] sm:$0xff] %vm695, %v1720
      %1725 = vst.msk [vmem:[#allocation2 + $0x148] sm:$0xff] %vm695, %v1643
      %1726 = vst.msk [vmem:[#allocation2 + $0x158] sm:$0xff] %vm695, %v1648
      %1727 = vrot.lane.b32.xlu0 %v1643, 96
      %v1728 = vpop.permute.xlu0 %1727
      %1729 = vrot.lane.b32.xlu0 %v1648, 96
      %v1730 = vpop.permute.xlu0 %1729
      %1733 = vst.msk [vmem:[#allocation2 + $0x168] sm:$0xff] %vm695, %v1728
      %1734 = vst.msk [vmem:[#allocation2 + $0x178] sm:$0xff] %vm695, %v1730
      %v1735 = vld [vmem:[#allocation2] sm:$0xff]
      %v1736 = vld [vmem:[#allocation2 + $0x8] sm:$0xff]
      %v1737 = vld [vmem:[#allocation2 + $0x10] sm:$0xff]
      %v1738 = vld [vmem:[#allocation2 + $0x18] sm:$0xff]
      %v1739 = vld [vmem:[#allocation2 + $0x20] sm:$0xff]
      %v1740 = vld [vmem:[#allocation2 + $0x28] sm:$0xff]
      %v1741 = vld [vmem:[#allocation2 + $0x30] sm:$0xff]
      %v1742 = vld [vmem:[#allocation2 + $0x38] sm:$0xff]
      %v1743 = vld [vmem:[#allocation2 + $0x40] sm:$0xff]
      %v1744 = vld [vmem:[#allocation2 + $0x48] sm:$0xff]
      %v1745 = vld [vmem:[#allocation2 + $0x50] sm:$0xff]
      %v1746 = vld [vmem:[#allocation2 + $0x58] sm:$0xff]
      %v1747 = vld [vmem:[#allocation2 + $0x60] sm:$0xff]
      %v1748 = vld [vmem:[#allocation2 + $0x68] sm:$0xff]
      %v1749 = vld [vmem:[#allocation2 + $0x70] sm:$0xff]
      %v1750 = vld [vmem:[#allocation2 + $0x78] sm:$0xff]
      %v1751 = vld [vmem:[#allocation2 + $0x80] sm:$0xff]
      %v1752 = vld [vmem:[#allocation2 + $0x88] sm:$0xff]
      %v1753 = vld [vmem:[#allocation2 + $0x90] sm:$0xff]
      %v1754 = vld [vmem:[#allocation2 + $0x98] sm:$0xff]
      %v1755 = vld [vmem:[#allocation2 + $0xa0] sm:$0xff]
      %v1756 = vld [vmem:[#allocation2 + $0xa8] sm:$0xff]
      %v1757 = vld [vmem:[#allocation2 + $0xb0] sm:$0xff]
      %v1758 = vld [vmem:[#allocation2 + $0xb8] sm:$0xff]
      %v1759 = vld [vmem:[#allocation2 + $0xc0] sm:$0xff]
      %v1760 = vld [vmem:[#allocation2 + $0xc8] sm:$0xff]
      %v1761 = vld [vmem:[#allocation2 + $0xd0] sm:$0xff]
      %v1762 = vld [vmem:[#allocation2 + $0xd8] sm:$0xff]
      %v1763 = vld [vmem:[#allocation2 + $0xe0] sm:$0xff]
      %v1764 = vld [vmem:[#allocation2 + $0xe8] sm:$0xff]
      %v1765 = vld [vmem:[#allocation2 + $0xf0] sm:$0xff]
      %v1766 = vld [vmem:[#allocation2 + $0xf8] sm:$0xff]
      %v1767 = vld [vmem:[#allocation2 + $0x100] sm:$0xff]
      %v1768 = vld [vmem:[#allocation2 + $0x108] sm:$0xff]
      %v1769 = vld [vmem:[#allocation2 + $0x110] sm:$0xff]
      %v1770 = vld [vmem:[#allocation2 + $0x118] sm:$0xff]
      %v1771 = vld [vmem:[#allocation2 + $0x120] sm:$0xff]
      %v1772 = vld [vmem:[#allocation2 + $0x128] sm:$0xff]
      %v1773 = vld [vmem:[#allocation2 + $0x130] sm:$0xff]
      %v1774 = vld [vmem:[#allocation2 + $0x138] sm:$0xff]
      %v1775 = vld [vmem:[#allocation2 + $0x140] sm:$0xff]
      %v1776 = vld [vmem:[#allocation2 + $0x148] sm:$0xff]
      %v1777 = vld [vmem:[#allocation2 + $0x150] sm:$0xff]
      %v1778 = vld [vmem:[#allocation2 + $0x158] sm:$0xff]
      %v1779 = vld [vmem:[#allocation2 + $0x160] sm:$0xff]
      %v1780 = vld [vmem:[#allocation2 + $0x168] sm:$0xff]
      %v1781 = vld [vmem:[#allocation2 + $0x170] sm:$0xff]
      %v1782 = vld [vmem:[#allocation2 + $0x178] sm:$0xff]
      %v1783 = vld [vmem:[%s2] sm:$0xff]
      %v1784 = vld [vmem:[%s2 + $0x8] sm:$0xff]
      %v1785 = vld [vmem:[%s2 + $0x10] sm:$0xff]
      %v1786 = vld [vmem:[%s2 + $0x18] sm:$0xff]
      %v1787 = vld [vmem:[%s2 + $0x20] sm:$0xff]
      %v1788 = vld [vmem:[%s2 + $0x28] sm:$0xff]
      %v1789 = vld [vmem:[%s2 + $0x30] sm:$0xff]
      %v1790 = vld [vmem:[%s2 + $0x38] sm:$0xff]
      %v1791 = vld [vmem:[%s2 + $0x40] sm:$0xff]
      %v1792 = vld [vmem:[%s2 + $0x48] sm:$0xff]
      %v1793 = vld [vmem:[%s2 + $0x50] sm:$0xff]
      %v1794 = vld [vmem:[%s2 + $0x58] sm:$0xff]
      %v1795 = vld [vmem:[%s2 + $0x60] sm:$0xff]
      %v1796 = vld [vmem:[%s2 + $0x68] sm:$0xff]
      %v1797 = vld [vmem:[%s2 + $0x70] sm:$0xff]
      %v1798 = vld [vmem:[%s2 + $0x78] sm:$0xff]
      %v1799 = vld [vmem:[%s2 + $0x80] sm:$0xff]
      %v1800 = vld [vmem:[%s2 + $0x88] sm:$0xff]
      %v1801 = vld [vmem:[%s2 + $0x90] sm:$0xff]
      %v1802 = vld [vmem:[%s2 + $0x98] sm:$0xff]
      %v1803 = vld [vmem:[%s2 + $0xa0] sm:$0xff]
      %v1804 = vld [vmem:[%s2 + $0xa8] sm:$0xff]
      %v1805 = vld [vmem:[%s2 + $0xb0] sm:$0xff]
      %v1806 = vld [vmem:[%s2 + $0xb8] sm:$0xff]
      %v1807 = vld [vmem:[%s2 + $0xc0] sm:$0xff]
      %v1808 = vld [vmem:[%s2 + $0xc8] sm:$0xff]
      %v1809 = vld [vmem:[%s2 + $0xd0] sm:$0xff]
      %v1810 = vld [vmem:[%s2 + $0xd8] sm:$0xff]
      %v1811 = vld [vmem:[%s3] sm:$0x1]
      %v1813 = vlaneseq
      %v1814 = vshrl.u32 %v1813, 7
      %v1815 = vsub.s32 0, %v1814
      %v1816 = vrot.slane %v1811, %v1815
      %vm1818 = vcmask 785408
      %v1820 = vsel %vm1818, %v1736, 0
      %v1823 = vsel %vm1818, %v1738, 0
      %v1826 = vsel %vm1818, %v1740, 0
      %v1829 = vsel %vm1818, %v1742, 0
      %v1832 = vsel %vm1818, %v1744, 0
      %v1835 = vsel %vm1818, %v1746, 0
      %v1838 = vsel %vm1818, %v1748, 0
      %v1841 = vsel %vm1818, %v1750, 0
      %v1844 = vsel %vm1818, %v1752, 0
      %v1847 = vsel %vm1818, %v1754, 0
      %v1850 = vsel %vm1818, %v1756, 0
      %v1853 = vsel %vm1818, %v1758, 0
      %v1856 = vsel %vm1818, %v1760, 0
      %v1859 = vsel %vm1818, %v1762, 0
      %v1862 = vsel %vm1818, %v1764, 0
      %v1865 = vsel %vm1818, %v1766, 0
      %v1868 = vsel %vm1818, %v1768, 0
      %v1871 = vsel %vm1818, %v1770, 0
      %v1874 = vsel %vm1818, %v1772, 0
      %v1877 = vsel %vm1818, %v1774, 0
      %v1880 = vsel %vm1818, %v1776, 0
      %v1883 = vsel %vm1818, %v1778, 0
      %v1886 = vsel %vm1818, %v1780, 0
      %v1889 = vsel %vm1818, %v1782, 0
      %1891 = vmatprep.subr.mxu0 0.0
      %1892 = vmatpush1.msra.mxu0 %v1783
      %1893 = vmatprep.subr.mxu0 0.0
      %1894 = vmatpush1.msra.mxu0 %v1784
      %1895 = vmatprep.subr.mxu0 0.0
      %1896 = vmatpush1.msra.mxu0 %v1785
      %1897 = vmatprep.subr.mxu0 0.0
      %1898 = vmatpush1.msra.mxu0 %v1786
      %1899 = vmatprep.subr.mxu0 0.0
      %1900 = vmatpush1.msra.mxu0 %v1787
      %1901 = vmatprep.subr.mxu0 0.0
      %1902 = vmatpush1.msra.mxu0 %v1788
      %1903 = vmatprep.subr.mxu0 0.0
      %1904 = vmatpush1.msra.mxu0 %v1789
      %1905 = vmatprep.subr.mxu0 0.0
      %1906 = vmatpush1.msra.mxu0 %v1790
      %1907 = vmatprep.subr.mxu0 0.0
      %1908 = vmatpush1.msra.mxu0 %v1791
      %1909 = vmatprep.subr.mxu0 0.0
      %1910 = vmatpush1.msra.mxu0 %v1792
      %1911 = vmatprep.subr.mxu0 0.0
      %1912 = vmatpush1.msra.mxu0 %v1793
      %1913 = vmatprep.subr.mxu0 0.0
      %1914 = vmatpush1.msra.mxu0 %v1794
      %1915 = vmatprep.subr.mxu0 0.0
      %1916 = vmatpush1.msra.mxu0 %v1795
      %1917 = vmatprep.subr.mxu0 0.0
      %1918 = vmatpush1.msra.mxu0 %v1796
      %1919 = vmatprep.subr.mxu0 0.0
      %1920 = vmatpush1.msra.mxu0 %v1797
      %1921 = vmatprep.subr.mxu0 0.0
      %1922 = vmatpush1.msra.mxu0 %v1798
      %1923 = vmatprep.subr.mxu0 0.0
      %1924 = vmatpush1.msra.mxu0 %v1799
      %1925 = vmatprep.subr.mxu0 0.0
      %1926 = vmatpush1.msra.mxu0 %v1800
      %1927 = vmatprep.subr.mxu0 0.0
      %1928 = vmatpush1.msra.mxu0 %v1801
      %1929 = vmatprep.subr.mxu0 0.0
      %1930 = vmatpush1.msra.mxu0 %v1802
      %1931 = vmatprep.subr.mxu0 0.0
      %1932 = vmatpush1.msra.mxu0 %v1803
      %1933 = vmatprep.subr.mxu0 0.0
      %1934 = vmatpush1.msra.mxu0 %v1804
      %1935 = vmatprep.subr.mxu0 0.0
      %1936 = vmatpush1.msra.mxu0 %v1805
      %1937 = vmatprep.subr.mxu0 0.0
      %1938 = vmatpush1.msra.mxu0 %v1806
      %1939 = vmatprep.subr.mxu0 0.0
      %1940 = vmatpush1.msra.mxu0 %v1807
      %1941 = vmatprep.subr.mxu0 0.0
      %1942 = vmatpush1.msra.mxu0 %v1808
      %1943 = vmatprep.subr.mxu0 0.0
      %1944 = vmatpush1.msra.mxu0 %v1809
      %1945 = vmatprep.subr.mxu0 0.0
      %1946 = vmatpush1.msra.mxu0 %v1810
      %1947 = vmatprep.subr.mxu0 0.0
      %1948 = vmatpush1.msra.mxu0 0.0
      %1949 = vmatprep.subr.mxu0 0.0
      %1950 = vmatpush1.msra.mxu0 0.0
      %1951 = vmatprep.subr.mxu0 0.0
      %1952 = vmatpush1.msra.mxu0 0.0
      %1953 = vmatprep.subr.mxu0 0.0
      %1954 = vmatpush1.msra.mxu0 0.0
      %1955 = vmatprep.mubr.f32.mxu0 %v1820
      %1956 = vmatmul.mubr.f32.gmra.mrb[0].mxu0 %v1735
      %v1957 = vpop.f32.mrb[0].mxu0
      %v1958 = vadd.f32 %v1816, %v1957
      %v1959 = vpop.f32.mrb[0].mxu0
      %1960 = vmatprep.mubr.f32.mxu0 %v1823
      %1961 = vmatmul.mubr.f32.gmra.mrb[0].mxu0 %v1737
      %v1962 = vpop.f32.mrb[0].mxu0
      %v1963 = vadd.f32 %v1816, %v1962
      %v1964 = vpop.f32.mrb[0].mxu0
      %1965 = vmatprep.mubr.f32.mxu0 %v1826
      %1966 = vmatmul.mubr.f32.gmra.mrb[0].mxu0 %v1739
      %v1967 = vpop.f32.mrb[0].mxu0
      %v1968 = vadd.f32 %v1816, %v1967
      %v1969 = vpop.f32.mrb[0].mxu0
      %1970 = vmatprep.mubr.f32.mxu0 %v1829
      %1971 = vmatmul.mubr.f32.gmra.mrb[0].mxu0 %v1741
      %v1972 = vpop.f32.mrb[0].mxu0
      %v1973 = vadd.f32 %v1816, %v1972
      %v1974 = vpop.f32.mrb[0].mxu0
      %1975 = vmatprep.mubr.f32.mxu0 %v1832
      %1976 = vmatmul.mubr.f32.gmra.mrb[0].mxu0 %v1743
      %v1977 = vpop.f32.mrb[0].mxu0
      %v1978 = vadd.f32 %v1816, %v1977
      %v1979 = vpop.f32.mrb[0].mxu0
      %1980 = vmatprep.mubr.f32.mxu0 %v1835
      %1981 = vmatmul.mubr.f32.gmra.mrb[0].mxu0 %v1745
      %v1982 = vpop.f32.mrb[0].mxu0
      %v1983 = vadd.f32 %v1816, %v1982
      %v1984 = vpop.f32.mrb[0].mxu0
      %1985 = vmatprep.mubr.f32.mxu0 %v1838
      %1986 = vmatmul.mubr.f32.gmra.mrb[0].mxu0 %v1747
      %v1987 = vpop.f32.mrb[0].mxu0
      %v1988 = vadd.f32 %v1816, %v1987
      %v1989 = vpop.f32.mrb[0].mxu0
      %1990 = vmatprep.mubr.f32.mxu0 %v1841
      %1991 = vmatmul.mubr.f32.gmra.mrb[0].mxu0 %v1749
      %v1992 = vpop.f32.mrb[0].mxu0
      %v1993 = vadd.f32 %v1816, %v1992
      %v1994 = vpop.f32.mrb[0].mxu0
      %1995 = vmatprep.mubr.f32.mxu0 %v1844
      %1996 = vmatmul.mubr.f32.gmra.mrb[0].mxu0 %v1751
      %v1997 = vpop.f32.mrb[0].mxu0
      %v1998 = vadd.f32 %v1816, %v1997
      %v1999 = vpop.f32.mrb[0].mxu0
      %2000 = vmatprep.mubr.f32.mxu0 %v1847
      %2001 = vmatmul.mubr.f32.gmra.mrb[0].mxu0 %v1753
      %v2002 = vpop.f32.mrb[0].mxu0
      %v2003 = vadd.f32 %v1816, %v2002
      %v2004 = vpop.f32.mrb[0].mxu0
      %2005 = vmatprep.mubr.f32.mxu0 %v1850
      %2006 = vmatmul.mubr.f32.gmra.mrb[0].mxu0 %v1755
      %v2007 = vpop.f32.mrb[0].mxu0
      %v2008 = vadd.f32 %v1816, %v2007
      %v2009 = vpop.f32.mrb[0].mxu0
      %2010 = vmatprep.mubr.f32.mxu0 %v1853
      %2011 = vmatmul.mubr.f32.gmra.mrb[0].mxu0 %v1757
      %v2012 = vpop.f32.mrb[0].mxu0
      %v2013 = vadd.f32 %v1816, %v2012
      %v2014 = vpop.f32.mrb[0].mxu0
      %2015 = vmatprep.mubr.f32.mxu0 %v1856
      %2016 = vmatmul.mubr.f32.gmra.mrb[0].mxu0 %v1759
      %v2017 = vpop.f32.mrb[0].mxu0
      %v2018 = vadd.f32 %v1816, %v2017
      %v2019 = vpop.f32.mrb[0].mxu0
      %2020 = vmatprep.mubr.f32.mxu0 %v1859
      %2021 = vmatmul.mubr.f32.gmra.mrb[0].mxu0 %v1761
      %v2022 = vpop.f32.mrb[0].mxu0
      %v2023 = vadd.f32 %v1816, %v2022
      %v2024 = vpop.f32.mrb[0].mxu0
      %2025 = vmatprep.mubr.f32.mxu0 %v1862
      %2026 = vmatmul.mubr.f32.gmra.mrb[0].mxu0 %v1763
      %v2027 = vpop.f32.mrb[0].mxu0
      %v2028 = vadd.f32 %v1816, %v2027
      %v2029 = vpop.f32.mrb[0].mxu0
      %2030 = vmatprep.mubr.f32.mxu0 %v1865
      %2031 = vmatmul.mubr.f32.gmra.mrb[0].mxu0 %v1765
      %v2032 = vpop.f32.mrb[0].mxu0
      %v2033 = vadd.f32 %v1816, %v2032
      %v2034 = vpop.f32.mrb[0].mxu0
      %2035 = vmatprep.mubr.f32.mxu0 %v1868
      %2036 = vmatmul.mubr.f32.gmra.mrb[0].mxu0 %v1767
      %v2037 = vpop.f32.mrb[0].mxu0
      %v2038 = vadd.f32 %v1816, %v2037
      %v2039 = vpop.f32.mrb[0].mxu0
      %2040 = vmatprep.mubr.f32.mxu0 %v1871
      %2041 = vmatmul.mubr.f32.gmra.mrb[0].mxu0 %v1769
      %v2042 = vpop.f32.mrb[0].mxu0
      %v2043 = vadd.f32 %v1816, %v2042
      %v2044 = vpop.f32.mrb[0].mxu0
      %2045 = vmatprep.mubr.f32.mxu0 %v1874
      %2046 = vmatmul.mubr.f32.gmra.mrb[0].mxu0 %v1771
      %v2047 = vpop.f32.mrb[0].mxu0
      %v2048 = vadd.f32 %v1816, %v2047
      %v2049 = vpop.f32.mrb[0].mxu0
      %2050 = vmatprep.mubr.f32.mxu0 %v1877
      %2051 = vmatmul.mubr.f32.gmra.mrb[0].mxu0 %v1773
      %v2052 = vpop.f32.mrb[0].mxu0
      %v2053 = vadd.f32 %v1816, %v2052
      %v2054 = vpop.f32.mrb[0].mxu0
      %2055 = vmatprep.mubr.f32.mxu0 %v1880
      %2056 = vmatmul.mubr.f32.gmra.mrb[0].mxu0 %v1775
      %v2057 = vpop.f32.mrb[0].mxu0
      %v2058 = vadd.f32 %v1816, %v2057
      %v2059 = vpop.f32.mrb[0].mxu0
      %2060 = vmatprep.mubr.f32.mxu0 %v1883
      %2061 = vmatmul.mubr.f32.gmra.mrb[0].mxu0 %v1777
      %v2062 = vpop.f32.mrb[0].mxu0
      %v2063 = vadd.f32 %v1816, %v2062
      %v2064 = vpop.f32.mrb[0].mxu0
      %2065 = vmatprep.mubr.f32.mxu0 %v1886
      %2066 = vmatmul.mubr.f32.gmra.mrb[0].mxu0 %v1779
      %v2067 = vpop.f32.mrb[0].mxu0
      %v2068 = vadd.f32 %v1816, %v2067
      %v2069 = vpop.f32.mrb[0].mxu0
      %2070 = vmatprep.mubr.f32.mxu0 %v1889
      %2071 = vmatmul.mubr.f32.gmra.mrb[0].mxu0 %v1781
      %v2072 = vpop.f32.mrb[0].mxu0
      %v2073 = vadd.f32 %v1816, %v2072
      %v2074 = vpop.f32.mrb[0].mxu0
      %2075 = vdwg.mxu0
      %2076 = vst.msk [vmem:[%s197] sm:$0xff] %vm204, %v1958
      %2077 = vst.msk [vmem:[%s197 + $0x18] sm:$0xff] %vm204, %v1963
      %2080 = vrot.lane.b32.xlu0 %v1968, 32
      %v2081 = vpop.permute.xlu0 %2080
      %2082 = vrot.lane.b32.xlu0 %v1973, 32
      %v2083 = vpop.permute.xlu0 %2082
      %2086 = vst.msk [vmem:[%s197] sm:$0xff] %vm458, %v2081
      %2087 = vst.msk [vmem:[%s197 + $0x18] sm:$0xff] %vm458, %v2083
      %2090 = vrot.lane.b32.xlu0 %v1978, 64
      %v2091 = vpop.permute.xlu0 %2090
      %2092 = vrot.lane.b32.xlu0 %v1983, 64
      %v2093 = vpop.permute.xlu0 %2092
      %2096 = vst.msk [vmem:[%s197] sm:$0xff] %vm695, %v2091
      %2097 = vst.msk [vmem:[%s197 + $0x18] sm:$0xff] %vm695, %v2093
      %2100 = vrot.lane.b32.xlu0 %v1988, 96
      %v2101 = vpop.permute.xlu0 %2100
      %2102 = vrot.lane.b32.xlu0 %v1993, 96
      %v2103 = vpop.permute.xlu0 %2102
      %2106 = vst.msk [vmem:[%s197] sm:$0xff] %vm941, %v2101
      %2107 = vst.msk [vmem:[%s197 + $0x18] sm:$0xff] %vm941, %v2103
      %2108 = vst.msk [vmem:[%s197 + $0x8] sm:$0xff] %vm204, %v1998
      %2109 = vst.msk [vmem:[%s197 + $0x20] sm:$0xff] %vm204, %v2003
      %2112 = vrot.lane.b32.xlu0 %v2008, 32
      %v2113 = vpop.permute.xlu0 %2112
      %2114 = vrot.lane.b32.xlu0 %v2013, 32
      %v2115 = vpop.permute.xlu0 %2114
      %2118 = vst.msk [vmem:[%s197 + $0x8] sm:$0xff] %vm458, %v2113
      %2119 = vst.msk [vmem:[%s197 + $0x20] sm:$0xff] %vm458, %v2115
      %2122 = vrot.lane.b32.xlu0 %v2018, 64
      %v2123 = vpop.permute.xlu0 %2122
      %2124 = vrot.lane.b32.xlu0 %v2023, 64
      %v2125 = vpop.permute.xlu0 %2124
      %2128 = vst.msk [vmem:[%s197 + $0x8] sm:$0xff] %vm695, %v2123
      %2129 = vst.msk [vmem:[%s197 + $0x20] sm:$0xff] %vm695, %v2125
      %2132 = vrot.lane.b32.xlu0 %v2028, 96
      %v2133 = vpop.permute.xlu0 %2132
      %2134 = vrot.lane.b32.xlu0 %v2033, 96
      %v2135 = vpop.permute.xlu0 %2134
      %2138 = vst.msk [vmem:[%s197 + $0x8] sm:$0xff] %vm941, %v2133
      %2139 = vst.msk [vmem:[%s197 + $0x20] sm:$0xff] %vm941, %v2135
      %2140 = vst.msk [vmem:[%s197 + $0x10] sm:$0xff] %vm204, %v2038
      %2141 = vst.msk [vmem:[%s197 + $0x28] sm:$0xff] %vm204, %v2043
      %2144 = vrot.lane.b32.xlu0 %v2048, 32
      %v2145 = vpop.permute.xlu0 %2144
      %2146 = vrot.lane.b32.xlu0 %v2053, 32
      %v2147 = vpop.permute.xlu0 %2146
      %2150 = vst.msk [vmem:[%s197 + $0x10] sm:$0xff] %vm458, %v2145
      %2151 = vst.msk [vmem:[%s197 + $0x28] sm:$0xff] %vm458, %v2147
      %2154 = vrot.lane.b32.xlu0 %v2058, 64
      %v2155 = vpop.permute.xlu0 %2154
      %2156 = vrot.lane.b32.xlu0 %v2063, 64
      %v2157 = vpop.permute.xlu0 %2156
      %2160 = vst.msk [vmem:[%s197 + $0x10] sm:$0xff] %vm695, %v2155
      %2161 = vst.msk [vmem:[%s197 + $0x28] sm:$0xff] %vm695, %v2157
      %2164 = vrot.lane.b32.xlu0 %v2068, 96
      %v2165 = vpop.permute.xlu0 %2164
      %2166 = vrot.lane.b32.xlu0 %v2073, 96
      %v2167 = vpop.permute.xlu0 %2166
      %2170 = vst.msk [vmem:[%s197 + $0x10] sm:$0xff] %vm941, %v2165
      %2171 = vst.msk [vmem:[%s197 + $0x28] sm:$0xff] %vm941, %v2167
      %p2172 = scmp.lt.s32.totalorder %s15, 3
      %s2173 = scalar_select %p2172, %s15, 3
      %s2174 = smul.addr %s2173, 6
      %s2175 = smul.addr %s2174, 8
      %s2176 = scalar_lea.vmem %s4, %s2175
      // Predicated region
      $region37: #{multi_gcn_pallas.1} parent=35 // pred_check
        %p2177 = pneg %p122
      $region38: #{multi_gcn_pallas.1} parent=35 // pred_check_branch
        %2179 = sbr.rel (%p2177) target = $region40
      $region39: #{multi_gcn_pallas.1} parent=35 // pred_region
        _
      $region40: #{multi_gcn_pallas.1} parent=35 // pred_fallthru
        _
    $region36: #{multi_gcn_pallas.1} parent=5 // pred_fallthru
      _
    %p2180 = scmp.le.s32.totalorder 2, %s10
    // Predicated region
    $region41: #{multi_gcn_pallas.1} parent=5 // pred_check
      %p2181 = pneg %p2180
    $region42: #{multi_gcn_pallas.1} parent=5 // pred_check_branch
      %2183 = sbr.rel (%p2181) target = $region44
    $region43: #{multi_gcn_pallas.1} parent=5 // pred_region
      %s2184 = ssub.s32 %s10, 2
      // Predicated region
      $region45: #{multi_gcn_pallas.1} parent=43 // pred_check
        %p2185 = pneg %p128
      $region46: #{multi_gcn_pallas.1} parent=43 // pred_check_branch
        %2187 = sbr.rel (%p2185) target = $region48
      $region47: #{multi_gcn_pallas.1} parent=43 // pred_region
        %p2188 = scmp.lt.s32.totalorder %s16, 3
        %s2189 = scalar_select %p2188, %s16, 3
        %s2190 = smul.addr %s2189, 6
        %s2191 = smul.addr %s2190, 8
        %s2192 = scalar_lea.vmem %s4, %s2191
      $region48: #{multi_gcn_pallas.1} parent=43 // pred_fallthru
        _
    $region44: #{multi_gcn_pallas.1} parent=5 // pred_fallthru
      _
  $region6: #{multi_gcn_pallas.1} parent=0 // loop_footer
    %s14 = sadd.s32 1, %s10
  $region7: #{multi_gcn_pallas.1} parent=0 // loop_footer_branch
    %9 = sbr.rel target = $region3
  $region8: #{multi_gcn_pallas.1} parent=0 // loop_exit
    _

</llo_original>
